<compile_context>
chip_gen: v7x
topology: tpu7x:2x2x1
jax: 0.10.0
libtpu: 0.0.40
codegen_flags: <defaults>
</compile_context>

<pallas_src>
import functools

import jax
import jax.numpy as jnp
from jax.experimental import pallas as pl
from jax.experimental.pallas import tpu as pltpu


# ----------------------------------------------------------------------------
# Kernel
# ----------------------------------------------------------------------------
def _traj_lstm_kernel(x_ref,      # (T*BP, D)  time-major, batch-padded input (f32)
                      wi0_ref,    # (D, 4H)    layer-0 input weights^T (f32)
                      b0_ref,     # (1, 4H)    layer-0 bias (b_ih + b_hh) (f32)
                      wstep_ref,  # (2H, 8H)   fused step weight [[Wi1^T, Wh0^T],[Wh1^T, 0]] (bf16)
                      b1_ref,     # (1, 4H)    layer-1 bias (b_ih + b_hh) (f32)
                      wfc_ref,    # (H, OUTP)  fc weight^T, lane-padded (bf16)
                      bfc_ref,    # (1, OUTP)  fc bias, lane-padded (f32)
                      out_ref,    # (BP, OUTP) predictions (f32)
                      *, T, BP):
    H = wstep_ref.shape[0] // 2
    D = x_ref.shape[1]

    wstep = wstep_ref[...]                         # (2H, 8H) bf16, loop-invariant

    # ---- layer-0 input projection for ALL steps, on the VPU in f32 ----------
    # K = D = 2: an MXU matmul would pad the contraction with zeros and force an
    # awkward (T*BP, 2) bf16 layout.  Two broadcast FMAs are cheaper and keep the
    # raw coordinates in f32 (prologue work, off the recurrence critical path).
    x = x_ref[...]                                 # (T*BP, D) f32
    wi0 = wi0_ref[...]                             # (D, 4H)   f32
    gates0_all = jnp.broadcast_to(b0_ref[...], (T * BP, 4 * H))
    for d in range(D):
        gates0_all = gates0_all + x[:, d:d + 1] * wi0[d:d + 1, :]   # (T*BP, 4H) f32

    # Hoisted layer-1 bias broadcast (once, not per step).
    b1b = jnp.broadcast_to(b1_ref[...], (BP, 4 * H))

    def lstm_cell(gates, c_prev):
        # PyTorch gate order (i, f, g, o).  sigmoid via the tanh identity:
        # sigmoid(x) = 0.5*tanh(0.5*x) + 0.5  -> one EUP op + two free VPU ops.
        i = 0.5 * jnp.tanh(0.5 * gates[:, 0 * H:1 * H]) + 0.5
        f = 0.5 * jnp.tanh(0.5 * gates[:, 1 * H:2 * H]) + 0.5
        g = jnp.tanh(gates[:, 2 * H:3 * H])
        o = 0.5 * jnp.tanh(0.5 * gates[:, 3 * H:4 * H]) + 0.5
        c = f * c_prev + i * g
        h = o * jnp.tanh(c)
        return h, c

    # ---- skewed / fused recurrence -------------------------------------------
    # Per iteration t, ONE (BP,2H)@(2H,8H) matmul yields
    #   fused[:, :4H] = h0_t @ Wi1^T + h1_{t-1} @ Wh1^T   (layer-1 gates, step t)
    #   fused[:, 4H:] = h0_t @ Wh0^T                      (hidden contrib to g0_{t+1})
    # so the two activation chains are independent and each step has a single
    # MXU round-trip on the serial path.
    zeros = jnp.zeros((BP, H), jnp.float32)

    # Prologue: layer-0 at step 0 (h0_init = 0 -> gates are just the input proj).
    h0, c0 = lstm_cell(gates0_all[0:BP, :], zeros)
    h1, c1 = zeros, zeros

    for t in range(T):           # fully unrolled: T is a small static constant
        # [h0_t ; h1_{t-1}]: both halves are (BP=8, H=128) -> 128-lane-aligned
        # tiles, so this concatenate is pure vreg placement (no relayout).
        hcat = jnp.concatenate(
            [h0.astype(jnp.bfloat16), h1.astype(jnp.bfloat16)], axis=-1)
        fused = jnp.dot(hcat, wstep, preferred_element_type=jnp.float32)   # (BP, 8H)

        # layer-1 cell at step t
        h1, c1 = lstm_cell(fused[:, :4 * H] + b1b, c1)

        # layer-0 cell at step t+1 (independent of the layer-1 chain above)
        if t + 1 < T:
            g0 = gates0_all[(t + 1) * BP:(t + 2) * BP, :] + fused[:, 4 * H:]
            h0, c0 = lstm_cell(g0, c0)

    # ---- fc head on the last top-layer hidden state (lane-dense store) -------
    out_ref[...] = (jnp.dot(h1.astype(jnp.bfloat16), wfc_ref[...],
                            preferred_element_type=jnp.float32)
                    + bfc_ref[...])


# ----------------------------------------------------------------------------
# Wrapper
# ----------------------------------------------------------------------------
def trajectory_prediction_forward(x, params, *, output_steps: int, input_dim: int):
    """x: (B, T, input_dim) float32, batch_first (PyTorch convention).
    Returns (B, output_steps, input_dim)."""
    B, T, D = x.shape
    H = params["wh0"].shape[1]                     # weight_hh_l0: (4H, H)
    out_dim = output_steps * input_dim
    out_pad = max(128, ((out_dim + 127) // 128) * 128)   # lane-dense output
    BP = max(8, ((B + 7) // 8) * 8)                # sublane-aligned batch

    # Zero-pad batch, go time-major, flatten. Keep coordinates in f32.
    x_pad = jnp.zeros((BP, T, D), jnp.float32).at[:B].set(x.astype(jnp.float32))
    x2d = jnp.transpose(x_pad, (1, 0, 2)).reshape(T * BP, D)

    wi0 = params["wi0"].T.astype(jnp.float32)                              # (D, 4H)
    b0 = (params["bi0"] + params["bh0"]).reshape(1, 4 * H).astype(jnp.float32)
    b1 = (params["bi1"] + params["bh1"]).reshape(1, 4 * H).astype(jnp.float32)

    # Fused step weight:
    #   [h0_t ; h1_{t-1}] @ [[Wi1^T, Wh0^T],
    #                        [Wh1^T,   0  ]]  ->  [ g1_t (sans bias) | h-contrib to g0_{t+1} ]
    top = jnp.concatenate([params["wi1"].T, params["wh0"].T], axis=1)      # (H, 8H)
    bot = jnp.concatenate([params["wh1"].T,
                           jnp.zeros((H, 4 * H), jnp.float32)], axis=1)    # (H, 8H)
    wstep = jnp.concatenate([top, bot], axis=0).astype(jnp.bfloat16)       # (2H, 8H)

    # fc weights, transposed and zero-padded along lanes to out_pad.
    wfc_pad = jnp.zeros((H, out_pad), jnp.float32).at[:, :out_dim].set(
        params["wfc"].T).astype(jnp.bfloat16)
    bfc_pad = jnp.zeros((1, out_pad), jnp.float32).at[:, :out_dim].set(
        params["bfc"].reshape(1, out_dim))

    vmem = pl.BlockSpec(memory_space=pltpu.MemorySpace.VMEM)

    # TODO(synk): at production batch sizes, add a batch-tiled grid axis with
    # dimension_semantics=("parallel",) so both v7x TensorCores are used.
    flat = pl.pallas_call(
        functools.partial(_traj_lstm_kernel, T=T, BP=BP),
        out_shape=jax.ShapeDtypeStruct((BP, out_pad), jnp.float32),
        in_specs=[vmem] * 7,
        out_specs=vmem,
    )(x2d, wi0, b0, wstep, b1, wfc_pad, bfc_pad)

    return flat[:B, :out_dim].reshape(B, output_steps, input_dim)


# ----------------------------------------------------------------------------
# Pure-JAX reference (mirrors torch.nn.LSTM + Linear semantics, f32)
# ----------------------------------------------------------------------------
def _reference_forward(x, params, *, output_steps: int, input_dim: int):
    B, T, D = x.shape
    H = params["wh0"].shape[1]

    def cell(x_t, h, c, w_ih, w_hh, b_ih, b_hh):
        gates = x_t @ w_ih.T + b_ih + h @ w_hh.T + b_hh
        i = jax.nn.sigmoid(gates[:, 0 * H:1 * H])
        f = jax.nn.sigmoid(gates[:, 1 * H:2 * H])
        g = jnp.tanh(gates[:, 2 * H:3 * H])
        o = jax.nn.sigmoid(gates[:, 3 * H:4 * H])
        c = f * c + i * g
        h = o * jnp.tanh(c)
        return h, c

    h0 = c0 = h1 = c1 = jnp.zeros((B, H), jnp.float32)
    for t in range(T):
        h0, c0 = cell(x[:, t, :], h0, c0, params["wi0"], params["wh0"],
                      params["bi0"], params["bh0"])
        h1, c1 = cell(h0, h1, c1, params["wi1"], params["wh1"],
                      params["bi1"], params["bh1"])
    out = h1 @ params["wfc"].T + params["bfc"]
    return out.reshape(B, output_steps, input_dim)


def init_params(key, input_dim=2, hidden_dim=128, output_steps=10):
    """Deterministic synthetic parameters with PyTorch nn.LSTM / nn.Linear shapes."""
    H = hidden_dim
    out_dim = output_steps * input_dim
    keys = jax.random.split(key, 10)
    s = 1.0 / jnp.sqrt(jnp.float32(H))
    u = lambda k, shape: jax.random.uniform(k, shape, jnp.float32, -s, s)
    return {
        "wi0": u(keys[0], (4 * H, input_dim)),   # weight_ih_l0
        "wh0": u(keys[1], (4 * H, H)),           # weight_hh_l0
        "bi0": u(keys[2], (4 * H,)),             # bias_ih_l0
        "bh0": u(keys[3], (4 * H,)),             # bias_hh_l0
        "wi1": u(keys[4], (4 * H, H)),           # weight_ih_l1
        "wh1": u(keys[5], (4 * H, H)),           # weight_hh_l1
        "bi1": u(keys[6], (4 * H,)),             # bias_ih_l1
        "bh1": u(keys[7], (4 * H,)),             # bias_hh_l1
        "wfc": u(keys[8], (out_dim, H)),         # fc.weight
        "bfc": u(keys[9], (out_dim,)),           # fc.bias
    }


if __name__ == "__main__":
    INPUT_DIM = 2
    HIDDEN_DIM = 128
    OUTPUT_STEPS = 10
    B, T = 2, 8

    key = jax.random.PRNGKey(0)
    k_x, k_p = jax.random.split(key)
    x = jax.random.normal(k_x, (B, T, INPUT_DIM), jnp.float32)
    params = init_params(k_p, INPUT_DIM, HIDDEN_DIM, OUTPUT_STEPS)

    fwd = jax.jit(functools.partial(trajectory_prediction_forward,
                                    output_steps=OUTPUT_STEPS,
                                    input_dim=INPUT_DIM))
    preds = fwd(x, params)
    jax.block_until_ready(preds)

    assert preds.shape == (B, OUTPUT_STEPS, INPUT_DIM), preds.shape

    ref = _reference_forward(x, params, output_steps=OUTPUT_STEPS,
                             input_dim=INPUT_DIM)
    # bf16 MXU operands on the recurrent state (f32 gates / cell state / accum)
    # drift slightly from the pure-f32 reference; well within this tolerance.
    assert jnp.allclose(preds, ref, atol=1e-2, rtol=1e-2), (
        float(jnp.max(jnp.abs(preds - ref))))

    print("KERNEL_OK")
</pallas_src>

<mosaic_0001>
module attributes {stable_mosaic.version = 11 : i64} {
  func.func @_traj_lstm_kernel(%arg0: memref<64x2xf32, #tpu.memory_space<vmem>>, %arg1: memref<2x512xf32, #tpu.memory_space<vmem>>, %arg2: memref<1x512xf32, #tpu.memory_space<vmem>>, %arg3: memref<256x1024xbf16, #tpu.memory_space<vmem>>, %arg4: memref<1x512xf32, #tpu.memory_space<vmem>>, %arg5: memref<128x128xbf16, #tpu.memory_space<vmem>>, %arg6: memref<1x128xf32, #tpu.memory_space<vmem>>, %arg7: memref<8x128xf32, #tpu.memory_space<vmem>>) attributes {dimension_semantics = [], scalar_prefetch = 0 : i64, scratch_operands = 0 : i64, tpu.core_type = #tpu.core_type<tc>} {
    %c0 = arith.constant 0 : index
    %c0_0 = arith.constant 0 : index
    %0 = vector.load %arg3[%c0, %c0_0] : memref<256x1024xbf16, #tpu.memory_space<vmem>>, vector<256x1024xbf16>
    %c0_1 = arith.constant 0 : index
    %c0_2 = arith.constant 0 : index
    %1 = vector.load %arg0[%c0_1, %c0_2] : memref<64x2xf32, #tpu.memory_space<vmem>>, vector<64x2xf32>
    %c0_3 = arith.constant 0 : index
    %c0_4 = arith.constant 0 : index
    %2 = vector.load %arg1[%c0_3, %c0_4] : memref<2x512xf32, #tpu.memory_space<vmem>>, vector<2x512xf32>
    %c0_5 = arith.constant 0 : index
    %c0_6 = arith.constant 0 : index
    %3 = vector.load %arg2[%c0_5, %c0_6] : memref<1x512xf32, #tpu.memory_space<vmem>>, vector<1x512xf32>
    %4 = vector.shape_cast %3 : vector<1x512xf32> to vector<1x512xf32>
    %5 = vector.broadcast %4 : vector<1x512xf32> to vector<64x512xf32>
    %6 = vector.extract_strided_slice %1 {offsets = [0, 0], sizes = [64, 1], strides = [1, 1]} : vector<64x2xf32> to vector<64x1xf32>
    %7 = vector.extract_strided_slice %2 {offsets = [0, 0], sizes = [1, 512], strides = [1, 1]} : vector<2x512xf32> to vector<1x512xf32>
    %8 = vector.broadcast %6 : vector<64x1xf32> to vector<64x512xf32>
    %9 = vector.broadcast %7 : vector<1x512xf32> to vector<64x512xf32>
    %10 = arith.mulf %8, %9 : vector<64x512xf32>
    %11 = arith.addf %5, %10 : vector<64x512xf32>
    %12 = vector.extract_strided_slice %1 {offsets = [0, 1], sizes = [64, 1], strides = [1, 1]} : vector<64x2xf32> to vector<64x1xf32>
    %13 = vector.extract_strided_slice %2 {offsets = [1, 0], sizes = [1, 512], strides = [1, 1]} : vector<2x512xf32> to vector<1x512xf32>
    %14 = vector.broadcast %12 : vector<64x1xf32> to vector<64x512xf32>
    %15 = vector.broadcast %13 : vector<1x512xf32> to vector<64x512xf32>
    %16 = arith.mulf %14, %15 : vector<64x512xf32>
    %17 = arith.addf %11, %16 : vector<64x512xf32>
    %c0_7 = arith.constant 0 : index
    %c0_8 = arith.constant 0 : index
    %18 = vector.load %arg4[%c0_7, %c0_8] : memref<1x512xf32, #tpu.memory_space<vmem>>, vector<1x512xf32>
    %19 = vector.shape_cast %18 : vector<1x512xf32> to vector<1x512xf32>
    %20 = vector.broadcast %19 : vector<1x512xf32> to vector<8x512xf32>
    %cst = arith.constant 0.000000e+00 : f32
    %21 = vector.broadcast %cst : f32 to vector<8x128xf32>
    %22 = vector.extract_strided_slice %17 {offsets = [0, 0], sizes = [8, 512], strides = [1, 1]} : vector<64x512xf32> to vector<8x512xf32>
    %23 = vector.extract_strided_slice %22 {offsets = [0, 0], sizes = [8, 128], strides = [1, 1]} : vector<8x512xf32> to vector<8x128xf32>
    %cst_9 = arith.constant 5.000000e-01 : f32
    %24 = vector.broadcast %cst_9 : f32 to vector<8x128xf32>
    %25 = arith.mulf %24, %23 : vector<8x128xf32>
    %26 = math.tanh %25 : vector<8x128xf32>
    %cst_10 = arith.constant 5.000000e-01 : f32
    %27 = vector.broadcast %cst_10 : f32 to vector<8x128xf32>
    %28 = arith.mulf %27, %26 : vector<8x128xf32>
    %cst_11 = arith.constant 5.000000e-01 : f32
    %29 = vector.broadcast %cst_11 : f32 to vector<8x128xf32>
    %30 = arith.addf %28, %29 : vector<8x128xf32>
    %31 = vector.extract_strided_slice %22 {offsets = [0, 128], sizes = [8, 128], strides = [1, 1]} : vector<8x512xf32> to vector<8x128xf32>
    %cst_12 = arith.constant 5.000000e-01 : f32
    %32 = vector.broadcast %cst_12 : f32 to vector<8x128xf32>
    %33 = arith.mulf %32, %31 : vector<8x128xf32>
    %34 = math.tanh %33 : vector<8x128xf32>
    %cst_13 = arith.constant 5.000000e-01 : f32
    %35 = vector.broadcast %cst_13 : f32 to vector<8x128xf32>
    %36 = arith.mulf %35, %34 : vector<8x128xf32>
    %cst_14 = arith.constant 5.000000e-01 : f32
    %37 = vector.broadcast %cst_14 : f32 to vector<8x128xf32>
    %38 = arith.addf %36, %37 : vector<8x128xf32>
    %39 = vector.extract_strided_slice %22 {offsets = [0, 256], sizes = [8, 128], strides = [1, 1]} : vector<8x512xf32> to vector<8x128xf32>
    %40 = math.tanh %39 : vector<8x128xf32>
    %41 = vector.extract_strided_slice %22 {offsets = [0, 384], sizes = [8, 128], strides = [1, 1]} : vector<8x512xf32> to vector<8x128xf32>
    %cst_15 = arith.constant 5.000000e-01 : f32
    %42 = vector.broadcast %cst_15 : f32 to vector<8x128xf32>
    %43 = arith.mulf %42, %41 : vector<8x128xf32>
    %44 = math.tanh %43 : vector<8x128xf32>
    %cst_16 = arith.constant 5.000000e-01 : f32
    %45 = vector.broadcast %cst_16 : f32 to vector<8x128xf32>
    %46 = arith.mulf %45, %44 : vector<8x128xf32>
    %cst_17 = arith.constant 5.000000e-01 : f32
    %47 = vector.broadcast %cst_17 : f32 to vector<8x128xf32>
    %48 = arith.addf %46, %47 : vector<8x128xf32>
    %49 = arith.mulf %38, %21 : vector<8x128xf32>
    %50 = arith.mulf %30, %40 : vector<8x128xf32>
    %51 = arith.addf %49, %50 : vector<8x128xf32>
    %52 = math.tanh %51 : vector<8x128xf32>
    %53 = arith.mulf %48, %52 : vector<8x128xf32>
    %54 = arith.truncf %53 : vector<8x128xf32> to vector<8x128xbf16>
    %55 = arith.truncf %21 : vector<8x128xf32> to vector<8x128xbf16>
    %56 = tpu.concatenate %54, %55 in 1 : vector<8x128xbf16>, vector<8x128xbf16> -> vector<8x256xbf16>
    %cst_18 = arith.constant dense<0.000000e+00> : vector<8x1024xf32>
    %57 = tpu.matmul %56, %0, %cst_18 {dimension_numbers = #tpu.dot_dimension_numbers<[1], [0], [0], [1], [0, 0, 1, 1], [], []>} : vector<8x256xbf16>, vector<256x1024xbf16>, vector<8x1024xf32> -> vector<8x1024xf32>
    %58 = vector.extract_strided_slice %57 {offsets = [0, 0], sizes = [8, 512], strides = [1, 1]} : vector<8x1024xf32> to vector<8x512xf32>
    %59 = arith.addf %58, %20 : vector<8x512xf32>
    %60 = vector.extract_strided_slice %59 {offsets = [0, 0], sizes = [8, 128], strides = [1, 1]} : vector<8x512xf32> to vector<8x128xf32>
    %cst_19 = arith.constant 5.000000e-01 : f32
    %61 = vector.broadcast %cst_19 : f32 to vector<8x128xf32>
    %62 = arith.mulf %61, %60 : vector<8x128xf32>
    %63 = math.tanh %62 : vector<8x128xf32>
    %cst_20 = arith.constant 5.000000e-01 : f32
    %64 = vector.broadcast %cst_20 : f32 to vector<8x128xf32>
    %65 = arith.mulf %64, %63 : vector<8x128xf32>
    %cst_21 = arith.constant 5.000000e-01 : f32
    %66 = vector.broadcast %cst_21 : f32 to vector<8x128xf32>
    %67 = arith.addf %65, %66 : vector<8x128xf32>
    %68 = vector.extract_strided_slice %59 {offsets = [0, 128], sizes = [8, 128], strides = [1, 1]} : vector<8x512xf32> to vector<8x128xf32>
    %cst_22 = arith.constant 5.000000e-01 : f32
    %69 = vector.broadcast %cst_22 : f32 to vector<8x128xf32>
    %70 = arith.mulf %69, %68 : vector<8x128xf32>
    %71 = math.tanh %70 : vector<8x128xf32>
    %cst_23 = arith.constant 5.000000e-01 : f32
    %72 = vector.broadcast %cst_23 : f32 to vector<8x128xf32>
    %73 = arith.mulf %72, %71 : vector<8x128xf32>
    %cst_24 = arith.constant 5.000000e-01 : f32
    %74 = vector.broadcast %cst_24 : f32 to vector<8x128xf32>
    %75 = arith.addf %73, %74 : vector<8x128xf32>
    %76 = vector.extract_strided_slice %59 {offsets = [0, 256], sizes = [8, 128], strides = [1, 1]} : vector<8x512xf32> to vector<8x128xf32>
    %77 = math.tanh %76 : vector<8x128xf32>
    %78 = vector.extract_strided_slice %59 {offsets = [0, 384], sizes = [8, 128], strides = [1, 1]} : vector<8x512xf32> to vector<8x128xf32>
    %cst_25 = arith.constant 5.000000e-01 : f32
    %79 = vector.broadcast %cst_25 : f32 to vector<8x128xf32>
    %80 = arith.mulf %79, %78 : vector<8x128xf32>
    %81 = math.tanh %80 : vector<8x128xf32>
    %cst_26 = arith.constant 5.000000e-01 : f32
    %82 = vector.broadcast %cst_26 : f32 to vector<8x128xf32>
    %83 = arith.mulf %82, %81 : vector<8x128xf32>
    %cst_27 = arith.constant 5.000000e-01 : f32
    %84 = vector.broadcast %cst_27 : f32 to vector<8x128xf32>
    %85 = arith.addf %83, %84 : vector<8x128xf32>
    %86 = arith.mulf %75, %21 : vector<8x128xf32>
    %87 = arith.mulf %67, %77 : vector<8x128xf32>
    %88 = arith.addf %86, %87 : vector<8x128xf32>
    %89 = math.tanh %88 : vector<8x128xf32>
    %90 = arith.mulf %85, %89 : vector<8x128xf32>
    %91 = vector.extract_strided_slice %17 {offsets = [8, 0], sizes = [8, 512], strides = [1, 1]} : vector<64x512xf32> to vector<8x512xf32>
    %92 = vector.extract_strided_slice %57 {offsets = [0, 512], sizes = [8, 512], strides = [1, 1]} : vector<8x1024xf32> to vector<8x512xf32>
    %93 = arith.addf %91, %92 : vector<8x512xf32>
    %94 = vector.extract_strided_slice %93 {offsets = [0, 0], sizes = [8, 128], strides = [1, 1]} : vector<8x512xf32> to vector<8x128xf32>
    %cst_28 = arith.constant 5.000000e-01 : f32
    %95 = vector.broadcast %cst_28 : f32 to vector<8x128xf32>
    %96 = arith.mulf %95, %94 : vector<8x128xf32>
    %97 = math.tanh %96 : vector<8x128xf32>
    %cst_29 = arith.constant 5.000000e-01 : f32
    %98 = vector.broadcast %cst_29 : f32 to vector<8x128xf32>
    %99 = arith.mulf %98, %97 : vector<8x128xf32>
    %cst_30 = arith.constant 5.000000e-01 : f32
    %100 = vector.broadcast %cst_30 : f32 to vector<8x128xf32>
    %101 = arith.addf %99, %100 : vector<8x128xf32>
    %102 = vector.extract_strided_slice %93 {offsets = [0, 128], sizes = [8, 128], strides = [1, 1]} : vector<8x512xf32> to vector<8x128xf32>
    %cst_31 = arith.constant 5.000000e-01 : f32
    %103 = vector.broadcast %cst_31 : f32 to vector<8x128xf32>
    %104 = arith.mulf %103, %102 : vector<8x128xf32>
    %105 = math.tanh %104 : vector<8x128xf32>
    %cst_32 = arith.constant 5.000000e-01 : f32
    %106 = vector.broadcast %cst_32 : f32 to vector<8x128xf32>
    %107 = arith.mulf %106, %105 : vector<8x128xf32>
    %cst_33 = arith.constant 5.000000e-01 : f32
    %108 = vector.broadcast %cst_33 : f32 to vector<8x128xf32>
    %109 = arith.addf %107, %108 : vector<8x128xf32>
    %110 = vector.extract_strided_slice %93 {offsets = [0, 256], sizes = [8, 128], strides = [1, 1]} : vector<8x512xf32> to vector<8x128xf32>
    %111 = math.tanh %110 : vector<8x128xf32>
    %112 = vector.extract_strided_slice %93 {offsets = [0, 384], sizes = [8, 128], strides = [1, 1]} : vector<8x512xf32> to vector<8x128xf32>
    %cst_34 = arith.constant 5.000000e-01 : f32
    %113 = vector.broadcast %cst_34 : f32 to vector<8x128xf32>
    %114 = arith.mulf %113, %112 : vector<8x128xf32>
    %115 = math.tanh %114 : vector<8x128xf32>
    %cst_35 = arith.constant 5.000000e-01 : f32
    %116 = vector.broadcast %cst_35 : f32 to vector<8x128xf32>
    %117 = arith.mulf %116, %115 : vector<8x128xf32>
    %cst_36 = arith.constant 5.000000e-01 : f32
    %118 = vector.broadcast %cst_36 : f32 to vector<8x128xf32>
    %119 = arith.addf %117, %118 : vector<8x128xf32>
    %120 = arith.mulf %109, %51 : vector<8x128xf32>
    %121 = arith.mulf %101, %111 : vector<8x128xf32>
    %122 = arith.addf %120, %121 : vector<8x128xf32>
    %123 = math.tanh %122 : vector<8x128xf32>
    %124 = arith.mulf %119, %123 : vector<8x128xf32>
    %125 = arith.truncf %124 : vector<8x128xf32> to vector<8x128xbf16>
    %126 = arith.truncf %90 : vector<8x128xf32> to vector<8x128xbf16>
    %127 = tpu.concatenate %125, %126 in 1 : vector<8x128xbf16>, vector<8x128xbf16> -> vector<8x256xbf16>
    %cst_37 = arith.constant dense<0.000000e+00> : vector<8x1024xf32>
    %128 = tpu.matmul %127, %0, %cst_37 {dimension_numbers = #tpu.dot_dimension_numbers<[1], [0], [0], [1], [0, 0, 1, 1], [], []>} : vector<8x256xbf16>, vector<256x1024xbf16>, vector<8x1024xf32> -> vector<8x1024xf32>
    %129 = vector.extract_strided_slice %128 {offsets = [0, 0], sizes = [8, 512], strides = [1, 1]} : vector<8x1024xf32> to vector<8x512xf32>
    %130 = arith.addf %129, %20 : vector<8x512xf32>
    %131 = vector.extract_strided_slice %130 {offsets = [0, 0], sizes = [8, 128], strides = [1, 1]} : vector<8x512xf32> to vector<8x128xf32>
    %cst_38 = arith.constant 5.000000e-01 : f32
    %132 = vector.broadcast %cst_38 : f32 to vector<8x128xf32>
    %133 = arith.mulf %132, %131 : vector<8x128xf32>
    %134 = math.tanh %133 : vector<8x128xf32>
    %cst_39 = arith.constant 5.000000e-01 : f32
    %135 = vector.broadcast %cst_39 : f32 to vector<8x128xf32>
    %136 = arith.mulf %135, %134 : vector<8x128xf32>
    %cst_40 = arith.constant 5.000000e-01 : f32
    %137 = vector.broadcast %cst_40 : f32 to vector<8x128xf32>
    %138 = arith.addf %136, %137 : vector<8x128xf32>
    %139 = vector.extract_strided_slice %130 {offsets = [0, 128], sizes = [8, 128], strides = [1, 1]} : vector<8x512xf32> to vector<8x128xf32>
    %cst_41 = arith.constant 5.000000e-01 : f32
    %140 = vector.broadcast %cst_41 : f32 to vector<8x128xf32>
    %141 = arith.mulf %140, %139 : vector<8x128xf32>
    %142 = math.tanh %141 : vector<8x128xf32>
    %cst_42 = arith.constant 5.000000e-01 : f32
    %143 = vector.broadcast %cst_42 : f32 to vector<8x128xf32>
    %144 = arith.mulf %143, %142 : vector<8x128xf32>
    %cst_43 = arith.constant 5.000000e-01 : f32
    %145 = vector.broadcast %cst_43 : f32 to vector<8x128xf32>
    %146 = arith.addf %144, %145 : vector<8x128xf32>
    %147 = vector.extract_strided_slice %130 {offsets = [0, 256], sizes = [8, 128], strides = [1, 1]} : vector<8x512xf32> to vector<8x128xf32>
    %148 = math.tanh %147 : vector<8x128xf32>
    %149 = vector.extract_strided_slice %130 {offsets = [0, 384], sizes = [8, 128], strides = [1, 1]} : vector<8x512xf32> to vector<8x128xf32>
    %cst_44 = arith.constant 5.000000e-01 : f32
    %150 = vector.broadcast %cst_44 : f32 to vector<8x128xf32>
    %151 = arith.mulf %150, %149 : vector<8x128xf32>
    %152 = math.tanh %151 : vector<8x128xf32>
    %cst_45 = arith.constant 5.000000e-01 : f32
    %153 = vector.broadcast %cst_45 : f32 to vector<8x128xf32>
    %154 = arith.mulf %153, %152 : vector<8x128xf32>
    %cst_46 = arith.constant 5.000000e-01 : f32
    %155 = vector.broadcast %cst_46 : f32 to vector<8x128xf32>
    %156 = arith.addf %154, %155 : vector<8x128xf32>
    %157 = arith.mulf %146, %88 : vector<8x128xf32>
    %158 = arith.mulf %138, %148 : vector<8x128xf32>
    %159 = arith.addf %157, %158 : vector<8x128xf32>
    %160 = math.tanh %159 : vector<8x128xf32>
    %161 = arith.mulf %156, %160 : vector<8x128xf32>
    %162 = vector.extract_strided_slice %17 {offsets = [16, 0], sizes = [8, 512], strides = [1, 1]} : vector<64x512xf32> to vector<8x512xf32>
    %163 = vector.extract_strided_slice %128 {offsets = [0, 512], sizes = [8, 512], strides = [1, 1]} : vector<8x1024xf32> to vector<8x512xf32>
    %164 = arith.addf %162, %163 : vector<8x512xf32>
    %165 = vector.extract_strided_slice %164 {offsets = [0, 0], sizes = [8, 128], strides = [1, 1]} : vector<8x512xf32> to vector<8x128xf32>
    %cst_47 = arith.constant 5.000000e-01 : f32
    %166 = vector.broadcast %cst_47 : f32 to vector<8x128xf32>
    %167 = arith.mulf %166, %165 : vector<8x128xf32>
    %168 = math.tanh %167 : vector<8x128xf32>
    %cst_48 = arith.constant 5.000000e-01 : f32
    %169 = vector.broadcast %cst_48 : f32 to vector<8x128xf32>
    %170 = arith.mulf %169, %168 : vector<8x128xf32>
    %cst_49 = arith.constant 5.000000e-01 : f32
    %171 = vector.broadcast %cst_49 : f32 to vector<8x128xf32>
    %172 = arith.addf %170, %171 : vector<8x128xf32>
    %173 = vector.extract_strided_slice %164 {offsets = [0, 128], sizes = [8, 128], strides = [1, 1]} : vector<8x512xf32> to vector<8x128xf32>
    %cst_50 = arith.constant 5.000000e-01 : f32
    %174 = vector.broadcast %cst_50 : f32 to vector<8x128xf32>
    %175 = arith.mulf %174, %173 : vector<8x128xf32>
    %176 = math.tanh %175 : vector<8x128xf32>
    %cst_51 = arith.constant 5.000000e-01 : f32
    %177 = vector.broadcast %cst_51 : f32 to vector<8x128xf32>
    %178 = arith.mulf %177, %176 : vector<8x128xf32>
    %cst_52 = arith.constant 5.000000e-01 : f32
    %179 = vector.broadcast %cst_52 : f32 to vector<8x128xf32>
    %180 = arith.addf %178, %179 : vector<8x128xf32>
    %181 = vector.extract_strided_slice %164 {offsets = [0, 256], sizes = [8, 128], strides = [1, 1]} : vector<8x512xf32> to vector<8x128xf32>
    %182 = math.tanh %181 : vector<8x128xf32>
    %183 = vector.extract_strided_slice %164 {offsets = [0, 384], sizes = [8, 128], strides = [1, 1]} : vector<8x512xf32> to vector<8x128xf32>
    %cst_53 = arith.constant 5.000000e-01 : f32
    %184 = vector.broadcast %cst_53 : f32 to vector<8x128xf32>
    %185 = arith.mulf %184, %183 : vector<8x128xf32>
    %186 = math.tanh %185 : vector<8x128xf32>
    %cst_54 = arith.constant 5.000000e-01 : f32
    %187 = vector.broadcast %cst_54 : f32 to vector<8x128xf32>
    %188 = arith.mulf %187, %186 : vector<8x128xf32>
    %cst_55 = arith.constant 5.000000e-01 : f32
    %189 = vector.broadcast %cst_55 : f32 to vector<8x128xf32>
    %190 = arith.addf %188, %189 : vector<8x128xf32>
    %191 = arith.mulf %180, %122 : vector<8x128xf32>
    %192 = arith.mulf %172, %182 : vector<8x128xf32>
    %193 = arith.addf %191, %192 : vector<8x128xf32>
    %194 = math.tanh %193 : vector<8x128xf32>
    %195 = arith.mulf %190, %194 : vector<8x128xf32>
    %196 = arith.truncf %195 : vector<8x128xf32> to vector<8x128xbf16>
    %197 = arith.truncf %161 : vector<8x128xf32> to vector<8x128xbf16>
    %198 = tpu.concatenate %196, %197 in 1 : vector<8x128xbf16>, vector<8x128xbf16> -> vector<8x256xbf16>
    %cst_56 = arith.constant dense<0.000000e+00> : vector<8x1024xf32>
    %199 = tpu.matmul %198, %0, %cst_56 {dimension_numbers = #tpu.dot_dimension_numbers<[1], [0], [0], [1], [0, 0, 1, 1], [], []>} : vector<8x256xbf16>, vector<256x1024xbf16>, vector<8x1024xf32> -> vector<8x1024xf32>
    %200 = vector.extract_strided_slice %199 {offsets = [0, 0], sizes = [8, 512], strides = [1, 1]} : vector<8x1024xf32> to vector<8x512xf32>
    %201 = arith.addf %200, %20 : vector<8x512xf32>
    %202 = vector.extract_strided_slice %201 {offsets = [0, 0], sizes = [8, 128], strides = [1, 1]} : vector<8x512xf32> to vector<8x128xf32>
    %cst_57 = arith.constant 5.000000e-01 : f32
    %203 = vector.broadcast %cst_57 : f32 to vector<8x128xf32>
    %204 = arith.mulf %203, %202 : vector<8x128xf32>
    %205 = math.tanh %204 : vector<8x128xf32>
    %cst_58 = arith.constant 5.000000e-01 : f32
    %206 = vector.broadcast %cst_58 : f32 to vector<8x128xf32>
    %207 = arith.mulf %206, %205 : vector<8x128xf32>
    %cst_59 = arith.constant 5.000000e-01 : f32
    %208 = vector.broadcast %cst_59 : f32 to vector<8x128xf32>
    %209 = arith.addf %207, %208 : vector<8x128xf32>
    %210 = vector.extract_strided_slice %201 {offsets = [0, 128], sizes = [8, 128], strides = [1, 1]} : vector<8x512xf32> to vector<8x128xf32>
    %cst_60 = arith.constant 5.000000e-01 : f32
    %211 = vector.broadcast %cst_60 : f32 to vector<8x128xf32>
    %212 = arith.mulf %211, %210 : vector<8x128xf32>
    %213 = math.tanh %212 : vector<8x128xf32>
    %cst_61 = arith.constant 5.000000e-01 : f32
    %214 = vector.broadcast %cst_61 : f32 to vector<8x128xf32>
    %215 = arith.mulf %214, %213 : vector<8x128xf32>
    %cst_62 = arith.constant 5.000000e-01 : f32
    %216 = vector.broadcast %cst_62 : f32 to vector<8x128xf32>
    %217 = arith.addf %215, %216 : vector<8x128xf32>
    %218 = vector.extract_strided_slice %201 {offsets = [0, 256], sizes = [8, 128], strides = [1, 1]} : vector<8x512xf32> to vector<8x128xf32>
    %219 = math.tanh %218 : vector<8x128xf32>
    %220 = vector.extract_strided_slice %201 {offsets = [0, 384], sizes = [8, 128], strides = [1, 1]} : vector<8x512xf32> to vector<8x128xf32>
    %cst_63 = arith.constant 5.000000e-01 : f32
    %221 = vector.broadcast %cst_63 : f32 to vector<8x128xf32>
    %222 = arith.mulf %221, %220 : vector<8x128xf32>
    %223 = math.tanh %222 : vector<8x128xf32>
    %cst_64 = arith.constant 5.000000e-01 : f32
    %224 = vector.broadcast %cst_64 : f32 to vector<8x128xf32>
    %225 = arith.mulf %224, %223 : vector<8x128xf32>
    %cst_65 = arith.constant 5.000000e-01 : f32
    %226 = vector.broadcast %cst_65 : f32 to vector<8x128xf32>
    %227 = arith.addf %225, %226 : vector<8x128xf32>
    %228 = arith.mulf %217, %159 : vector<8x128xf32>
    %229 = arith.mulf %209, %219 : vector<8x128xf32>
    %230 = arith.addf %228, %229 : vector<8x128xf32>
    %231 = math.tanh %230 : vector<8x128xf32>
    %232 = arith.mulf %227, %231 : vector<8x128xf32>
    %233 = vector.extract_strided_slice %17 {offsets = [24, 0], sizes = [8, 512], strides = [1, 1]} : vector<64x512xf32> to vector<8x512xf32>
    %234 = vector.extract_strided_slice %199 {offsets = [0, 512], sizes = [8, 512], strides = [1, 1]} : vector<8x1024xf32> to vector<8x512xf32>
    %235 = arith.addf %233, %234 : vector<8x512xf32>
    %236 = vector.extract_strided_slice %235 {offsets = [0, 0], sizes = [8, 128], strides = [1, 1]} : vector<8x512xf32> to vector<8x128xf32>
    %cst_66 = arith.constant 5.000000e-01 : f32
    %237 = vector.broadcast %cst_66 : f32 to vector<8x128xf32>
    %238 = arith.mulf %237, %236 : vector<8x128xf32>
    %239 = math.tanh %238 : vector<8x128xf32>
    %cst_67 = arith.constant 5.000000e-01 : f32
    %240 = vector.broadcast %cst_67 : f32 to vector<8x128xf32>
    %241 = arith.mulf %240, %239 : vector<8x128xf32>
    %cst_68 = arith.constant 5.000000e-01 : f32
    %242 = vector.broadcast %cst_68 : f32 to vector<8x128xf32>
    %243 = arith.addf %241, %242 : vector<8x128xf32>
    %244 = vector.extract_strided_slice %235 {offsets = [0, 128], sizes = [8, 128], strides = [1, 1]} : vector<8x512xf32> to vector<8x128xf32>
    %cst_69 = arith.constant 5.000000e-01 : f32
    %245 = vector.broadcast %cst_69 : f32 to vector<8x128xf32>
    %246 = arith.mulf %245, %244 : vector<8x128xf32>
    %247 = math.tanh %246 : vector<8x128xf32>
    %cst_70 = arith.constant 5.000000e-01 : f32
    %248 = vector.broadcast %cst_70 : f32 to vector<8x128xf32>
    %249 = arith.mulf %248, %247 : vector<8x128xf32>
    %cst_71 = arith.constant 5.000000e-01 : f32
    %250 = vector.broadcast %cst_71 : f32 to vector<8x128xf32>
    %251 = arith.addf %249, %250 : vector<8x128xf32>
    %252 = vector.extract_strided_slice %235 {offsets = [0, 256], sizes = [8, 128], strides = [1, 1]} : vector<8x512xf32> to vector<8x128xf32>
    %253 = math.tanh %252 : vector<8x128xf32>
    %254 = vector.extract_strided_slice %235 {offsets = [0, 384], sizes = [8, 128], strides = [1, 1]} : vector<8x512xf32> to vector<8x128xf32>
    %cst_72 = arith.constant 5.000000e-01 : f32
    %255 = vector.broadcast %cst_72 : f32 to vector<8x128xf32>
    %256 = arith.mulf %255, %254 : vector<8x128xf32>
    %257 = math.tanh %256 : vector<8x128xf32>
    %cst_73 = arith.constant 5.000000e-01 : f32
    %258 = vector.broadcast %cst_73 : f32 to vector<8x128xf32>
    %259 = arith.mulf %258, %257 : vector<8x128xf32>
    %cst_74 = arith.constant 5.000000e-01 : f32
    %260 = vector.broadcast %cst_74 : f32 to vector<8x128xf32>
    %261 = arith.addf %259, %260 : vector<8x128xf32>
    %262 = arith.mulf %251, %193 : vector<8x128xf32>
    %263 = arith.mulf %243, %253 : vector<8x128xf32>
    %264 = arith.addf %262, %263 : vector<8x128xf32>
    %265 = math.tanh %264 : vector<8x128xf32>
    %266 = arith.mulf %261, %265 : vector<8x128xf32>
    %267 = arith.truncf %266 : vector<8x128xf32> to vector<8x128xbf16>
    %268 = arith.truncf %232 : vector<8x128xf32> to vector<8x128xbf16>
    %269 = tpu.concatenate %267, %268 in 1 : vector<8x128xbf16>, vector<8x128xbf16> -> vector<8x256xbf16>
    %cst_75 = arith.constant dense<0.000000e+00> : vector<8x1024xf32>
    %270 = tpu.matmul %269, %0, %cst_75 {dimension_numbers = #tpu.dot_dimension_numbers<[1], [0], [0], [1], [0, 0, 1, 1], [], []>} : vector<8x256xbf16>, vector<256x1024xbf16>, vector<8x1024xf32> -> vector<8x1024xf32>
    %271 = vector.extract_strided_slice %270 {offsets = [0, 0], sizes = [8, 512], strides = [1, 1]} : vector<8x1024xf32> to vector<8x512xf32>
    %272 = arith.addf %271, %20 : vector<8x512xf32>
    %273 = vector.extract_strided_slice %272 {offsets = [0, 0], sizes = [8, 128], strides = [1, 1]} : vector<8x512xf32> to vector<8x128xf32>
    %cst_76 = arith.constant 5.000000e-01 : f32
    %274 = vector.broadcast %cst_76 : f32 to vector<8x128xf32>
    %275 = arith.mulf %274, %273 : vector<8x128xf32>
    %276 = math.tanh %275 : vector<8x128xf32>
    %cst_77 = arith.constant 5.000000e-01 : f32
    %277 = vector.broadcast %cst_77 : f32 to vector<8x128xf32>
    %278 = arith.mulf %277, %276 : vector<8x128xf32>
    %cst_78 = arith.constant 5.000000e-01 : f32
    %279 = vector.broadcast %cst_78 : f32 to vector<8x128xf32>
    %280 = arith.addf %278, %279 : vector<8x128xf32>
    %281 = vector.extract_strided_slice %272 {offsets = [0, 128], sizes = [8, 128], strides = [1, 1]} : vector<8x512xf32> to vector<8x128xf32>
    %cst_79 = arith.constant 5.000000e-01 : f32
    %282 = vector.broadcast %cst_79 : f32 to vector<8x128xf32>
    %283 = arith.mulf %282, %281 : vector<8x128xf32>
    %284 = math.tanh %283 : vector<8x128xf32>
    %cst_80 = arith.constant 5.000000e-01 : f32
    %285 = vector.broadcast %cst_80 : f32 to vector<8x128xf32>
    %286 = arith.mulf %285, %284 : vector<8x128xf32>
    %cst_81 = arith.constant 5.000000e-01 : f32
    %287 = vector.broadcast %cst_81 : f32 to vector<8x128xf32>
    %288 = arith.addf %286, %287 : vector<8x128xf32>
    %289 = vector.extract_strided_slice %272 {offsets = [0, 256], sizes = [8, 128], strides = [1, 1]} : vector<8x512xf32> to vector<8x128xf32>
    %290 = math.tanh %289 : vector<8x128xf32>
    %291 = vector.extract_strided_slice %272 {offsets = [0, 384], sizes = [8, 128], strides = [1, 1]} : vector<8x512xf32> to vector<8x128xf32>
    %cst_82 = arith.constant 5.000000e-01 : f32
    %292 = vector.broadcast %cst_82 : f32 to vector<8x128xf32>
    %293 = arith.mulf %292, %291 : vector<8x128xf32>
    %294 = math.tanh %293 : vector<8x128xf32>
    %cst_83 = arith.constant 5.000000e-01 : f32
    %295 = vector.broadcast %cst_83 : f32 to vector<8x128xf32>
    %296 = arith.mulf %295, %294 : vector<8x128xf32>
    %cst_84 = arith.constant 5.000000e-01 : f32
    %297 = vector.broadcast %cst_84 : f32 to vector<8x128xf32>
    %298 = arith.addf %296, %297 : vector<8x128xf32>
    %299 = arith.mulf %288, %230 : vector<8x128xf32>
    %300 = arith.mulf %280, %290 : vector<8x128xf32>
    %301 = arith.addf %299, %300 : vector<8x128xf32>
    %302 = math.tanh %301 : vector<8x128xf32>
    %303 = arith.mulf %298, %302 : vector<8x128xf32>
    %304 = vector.extract_strided_slice %17 {offsets = [32, 0], sizes = [8, 512], strides = [1, 1]} : vector<64x512xf32> to vector<8x512xf32>
    %305 = vector.extract_strided_slice %270 {offsets = [0, 512], sizes = [8, 512], strides = [1, 1]} : vector<8x1024xf32> to vector<8x512xf32>
    %306 = arith.addf %304, %305 : vector<8x512xf32>
    %307 = vector.extract_strided_slice %306 {offsets = [0, 0], sizes = [8, 128], strides = [1, 1]} : vector<8x512xf32> to vector<8x128xf32>
    %cst_85 = arith.constant 5.000000e-01 : f32
    %308 = vector.broadcast %cst_85 : f32 to vector<8x128xf32>
    %309 = arith.mulf %308, %307 : vector<8x128xf32>
    %310 = math.tanh %309 : vector<8x128xf32>
    %cst_86 = arith.constant 5.000000e-01 : f32
    %311 = vector.broadcast %cst_86 : f32 to vector<8x128xf32>
    %312 = arith.mulf %311, %310 : vector<8x128xf32>
    %cst_87 = arith.constant 5.000000e-01 : f32
    %313 = vector.broadcast %cst_87 : f32 to vector<8x128xf32>
    %314 = arith.addf %312, %313 : vector<8x128xf32>
    %315 = vector.extract_strided_slice %306 {offsets = [0, 128], sizes = [8, 128], strides = [1, 1]} : vector<8x512xf32> to vector<8x128xf32>
    %cst_88 = arith.constant 5.000000e-01 : f32
    %316 = vector.broadcast %cst_88 : f32 to vector<8x128xf32>
    %317 = arith.mulf %316, %315 : vector<8x128xf32>
    %318 = math.tanh %317 : vector<8x128xf32>
    %cst_89 = arith.constant 5.000000e-01 : f32
    %319 = vector.broadcast %cst_89 : f32 to vector<8x128xf32>
    %320 = arith.mulf %319, %318 : vector<8x128xf32>
    %cst_90 = arith.constant 5.000000e-01 : f32
    %321 = vector.broadcast %cst_90 : f32 to vector<8x128xf32>
    %322 = arith.addf %320, %321 : vector<8x128xf32>
    %323 = vector.extract_strided_slice %306 {offsets = [0, 256], sizes = [8, 128], strides = [1, 1]} : vector<8x512xf32> to vector<8x128xf32>
    %324 = math.tanh %323 : vector<8x128xf32>
    %325 = vector.extract_strided_slice %306 {offsets = [0, 384], sizes = [8, 128], strides = [1, 1]} : vector<8x512xf32> to vector<8x128xf32>
    %cst_91 = arith.constant 5.000000e-01 : f32
    %326 = vector.broadcast %cst_91 : f32 to vector<8x128xf32>
    %327 = arith.mulf %326, %325 : vector<8x128xf32>
    %328 = math.tanh %327 : vector<8x128xf32>
    %cst_92 = arith.constant 5.000000e-01 : f32
    %329 = vector.broadcast %cst_92 : f32 to vector<8x128xf32>
    %330 = arith.mulf %329, %328 : vector<8x128xf32>
    %cst_93 = arith.constant 5.000000e-01 : f32
    %331 = vector.broadcast %cst_93 : f32 to vector<8x128xf32>
    %332 = arith.addf %330, %331 : vector<8x128xf32>
    %333 = arith.mulf %322, %264 : vector<8x128xf32>
    %334 = arith.mulf %314, %324 : vector<8x128xf32>
    %335 = arith.addf %333, %334 : vector<8x128xf32>
    %336 = math.tanh %335 : vector<8x128xf32>
    %337 = arith.mulf %332, %336 : vector<8x128xf32>
    %338 = arith.truncf %337 : vector<8x128xf32> to vector<8x128xbf16>
    %339 = arith.truncf %303 : vector<8x128xf32> to vector<8x128xbf16>
    %340 = tpu.concatenate %338, %339 in 1 : vector<8x128xbf16>, vector<8x128xbf16> -> vector<8x256xbf16>
    %cst_94 = arith.constant dense<0.000000e+00> : vector<8x1024xf32>
    %341 = tpu.matmul %340, %0, %cst_94 {dimension_numbers = #tpu.dot_dimension_numbers<[1], [0], [0], [1], [0, 0, 1, 1], [], []>} : vector<8x256xbf16>, vector<256x1024xbf16>, vector<8x1024xf32> -> vector<8x1024xf32>
    %342 = vector.extract_strided_slice %341 {offsets = [0, 0], sizes = [8, 512], strides = [1, 1]} : vector<8x1024xf32> to vector<8x512xf32>
    %343 = arith.addf %342, %20 : vector<8x512xf32>
    %344 = vector.extract_strided_slice %343 {offsets = [0, 0], sizes = [8, 128], strides = [1, 1]} : vector<8x512xf32> to vector<8x128xf32>
    %cst_95 = arith.constant 5.000000e-01 : f32
    %345 = vector.broadcast %cst_95 : f32 to vector<8x128xf32>
    %346 = arith.mulf %345, %344 : vector<8x128xf32>
    %347 = math.tanh %346 : vector<8x128xf32>
    %cst_96 = arith.constant 5.000000e-01 : f32
    %348 = vector.broadcast %cst_96 : f32 to vector<8x128xf32>
    %349 = arith.mulf %348, %347 : vector<8x128xf32>
    %cst_97 = arith.constant 5.000000e-01 : f32
    %350 = vector.broadcast %cst_97 : f32 to vector<8x128xf32>
    %351 = arith.addf %349, %350 : vector<8x128xf32>
    %352 = vector.extract_strided_slice %343 {offsets = [0, 128], sizes = [8, 128], strides = [1, 1]} : vector<8x512xf32> to vector<8x128xf32>
    %cst_98 = arith.constant 5.000000e-01 : f32
    %353 = vector.broadcast %cst_98 : f32 to vector<8x128xf32>
    %354 = arith.mulf %353, %352 : vector<8x128xf32>
    %355 = math.tanh %354 : vector<8x128xf32>
    %cst_99 = arith.constant 5.000000e-01 : f32
    %356 = vector.broadcast %cst_99 : f32 to vector<8x128xf32>
    %357 = arith.mulf %356, %355 : vector<8x128xf32>
    %cst_100 = arith.constant 5.000000e-01 : f32
    %358 = vector.broadcast %cst_100 : f32 to vector<8x128xf32>
    %359 = arith.addf %357, %358 : vector<8x128xf32>
    %360 = vector.extract_strided_slice %343 {offsets = [0, 256], sizes = [8, 128], strides = [1, 1]} : vector<8x512xf32> to vector<8x128xf32>
    %361 = math.tanh %360 : vector<8x128xf32>
    %362 = vector.extract_strided_slice %343 {offsets = [0, 384], sizes = [8, 128], strides = [1, 1]} : vector<8x512xf32> to vector<8x128xf32>
    %cst_101 = arith.constant 5.000000e-01 : f32
    %363 = vector.broadcast %cst_101 : f32 to vector<8x128xf32>
    %364 = arith.mulf %363, %362 : vector<8x128xf32>
    %365 = math.tanh %364 : vector<8x128xf32>
    %cst_102 = arith.constant 5.000000e-01 : f32
    %366 = vector.broadcast %cst_102 : f32 to vector<8x128xf32>
    %367 = arith.mulf %366, %365 : vector<8x128xf32>
    %cst_103 = arith.constant 5.000000e-01 : f32
    %368 = vector.broadcast %cst_103 : f32 to vector<8x128xf32>
    %369 = arith.addf %367, %368 : vector<8x128xf32>
    %370 = arith.mulf %359, %301 : vector<8x128xf32>
    %371 = arith.mulf %351, %361 : vector<8x128xf32>
    %372 = arith.addf %370, %371 : vector<8x128xf32>
    %373 = math.tanh %372 : vector<8x128xf32>
    %374 = arith.mulf %369, %373 : vector<8x128xf32>
    %375 = vector.extract_strided_slice %17 {offsets = [40, 0], sizes = [8, 512], strides = [1, 1]} : vector<64x512xf32> to vector<8x512xf32>
    %376 = vector.extract_strided_slice %341 {offsets = [0, 512], sizes = [8, 512], strides = [1, 1]} : vector<8x1024xf32> to vector<8x512xf32>
    %377 = arith.addf %375, %376 : vector<8x512xf32>
    %378 = vector.extract_strided_slice %377 {offsets = [0, 0], sizes = [8, 128], strides = [1, 1]} : vector<8x512xf32> to vector<8x128xf32>
    %cst_104 = arith.constant 5.000000e-01 : f32
    %379 = vector.broadcast %cst_104 : f32 to vector<8x128xf32>
    %380 = arith.mulf %379, %378 : vector<8x128xf32>
    %381 = math.tanh %380 : vector<8x128xf32>
    %cst_105 = arith.constant 5.000000e-01 : f32
    %382 = vector.broadcast %cst_105 : f32 to vector<8x128xf32>
    %383 = arith.mulf %382, %381 : vector<8x128xf32>
    %cst_106 = arith.constant 5.000000e-01 : f32
    %384 = vector.broadcast %cst_106 : f32 to vector<8x128xf32>
    %385 = arith.addf %383, %384 : vector<8x128xf32>
    %386 = vector.extract_strided_slice %377 {offsets = [0, 128], sizes = [8, 128], strides = [1, 1]} : vector<8x512xf32> to vector<8x128xf32>
    %cst_107 = arith.constant 5.000000e-01 : f32
    %387 = vector.broadcast %cst_107 : f32 to vector<8x128xf32>
    %388 = arith.mulf %387, %386 : vector<8x128xf32>
    %389 = math.tanh %388 : vector<8x128xf32>
    %cst_108 = arith.constant 5.000000e-01 : f32
    %390 = vector.broadcast %cst_108 : f32 to vector<8x128xf32>
    %391 = arith.mulf %390, %389 : vector<8x128xf32>
    %cst_109 = arith.constant 5.000000e-01 : f32
    %392 = vector.broadcast %cst_109 : f32 to vector<8x128xf32>
    %393 = arith.addf %391, %392 : vector<8x128xf32>
    %394 = vector.extract_strided_slice %377 {offsets = [0, 256], sizes = [8, 128], strides = [1, 1]} : vector<8x512xf32> to vector<8x128xf32>
    %395 = math.tanh %394 : vector<8x128xf32>
    %396 = vector.extract_strided_slice %377 {offsets = [0, 384], sizes = [8, 128], strides = [1, 1]} : vector<8x512xf32> to vector<8x128xf32>
    %cst_110 = arith.constant 5.000000e-01 : f32
    %397 = vector.broadcast %cst_110 : f32 to vector<8x128xf32>
    %398 = arith.mulf %397, %396 : vector<8x128xf32>
    %399 = math.tanh %398 : vector<8x128xf32>
    %cst_111 = arith.constant 5.000000e-01 : f32
    %400 = vector.broadcast %cst_111 : f32 to vector<8x128xf32>
    %401 = arith.mulf %400, %399 : vector<8x128xf32>
    %cst_112 = arith.constant 5.000000e-01 : f32
    %402 = vector.broadcast %cst_112 : f32 to vector<8x128xf32>
    %403 = arith.addf %401, %402 : vector<8x128xf32>
    %404 = arith.mulf %393, %335 : vector<8x128xf32>
    %405 = arith.mulf %385, %395 : vector<8x128xf32>
    %406 = arith.addf %404, %405 : vector<8x128xf32>
    %407 = math.tanh %406 : vector<8x128xf32>
    %408 = arith.mulf %403, %407 : vector<8x128xf32>
    %409 = arith.truncf %408 : vector<8x128xf32> to vector<8x128xbf16>
    %410 = arith.truncf %374 : vector<8x128xf32> to vector<8x128xbf16>
    %411 = tpu.concatenate %409, %410 in 1 : vector<8x128xbf16>, vector<8x128xbf16> -> vector<8x256xbf16>
    %cst_113 = arith.constant dense<0.000000e+00> : vector<8x1024xf32>
    %412 = tpu.matmul %411, %0, %cst_113 {dimension_numbers = #tpu.dot_dimension_numbers<[1], [0], [0], [1], [0, 0, 1, 1], [], []>} : vector<8x256xbf16>, vector<256x1024xbf16>, vector<8x1024xf32> -> vector<8x1024xf32>
    %413 = vector.extract_strided_slice %412 {offsets = [0, 0], sizes = [8, 512], strides = [1, 1]} : vector<8x1024xf32> to vector<8x512xf32>
    %414 = arith.addf %413, %20 : vector<8x512xf32>
    %415 = vector.extract_strided_slice %414 {offsets = [0, 0], sizes = [8, 128], strides = [1, 1]} : vector<8x512xf32> to vector<8x128xf32>
    %cst_114 = arith.constant 5.000000e-01 : f32
    %416 = vector.broadcast %cst_114 : f32 to vector<8x128xf32>
    %417 = arith.mulf %416, %415 : vector<8x128xf32>
    %418 = math.tanh %417 : vector<8x128xf32>
    %cst_115 = arith.constant 5.000000e-01 : f32
    %419 = vector.broadcast %cst_115 : f32 to vector<8x128xf32>
    %420 = arith.mulf %419, %418 : vector<8x128xf32>
    %cst_116 = arith.constant 5.000000e-01 : f32
    %421 = vector.broadcast %cst_116 : f32 to vector<8x128xf32>
    %422 = arith.addf %420, %421 : vector<8x128xf32>
    %423 = vector.extract_strided_slice %414 {offsets = [0, 128], sizes = [8, 128], strides = [1, 1]} : vector<8x512xf32> to vector<8x128xf32>
    %cst_117 = arith.constant 5.000000e-01 : f32
    %424 = vector.broadcast %cst_117 : f32 to vector<8x128xf32>
    %425 = arith.mulf %424, %423 : vector<8x128xf32>
    %426 = math.tanh %425 : vector<8x128xf32>
    %cst_118 = arith.constant 5.000000e-01 : f32
    %427 = vector.broadcast %cst_118 : f32 to vector<8x128xf32>
    %428 = arith.mulf %427, %426 : vector<8x128xf32>
    %cst_119 = arith.constant 5.000000e-01 : f32
    %429 = vector.broadcast %cst_119 : f32 to vector<8x128xf32>
    %430 = arith.addf %428, %429 : vector<8x128xf32>
    %431 = vector.extract_strided_slice %414 {offsets = [0, 256], sizes = [8, 128], strides = [1, 1]} : vector<8x512xf32> to vector<8x128xf32>
    %432 = math.tanh %431 : vector<8x128xf32>
    %433 = vector.extract_strided_slice %414 {offsets = [0, 384], sizes = [8, 128], strides = [1, 1]} : vector<8x512xf32> to vector<8x128xf32>
    %cst_120 = arith.constant 5.000000e-01 : f32
    %434 = vector.broadcast %cst_120 : f32 to vector<8x128xf32>
    %435 = arith.mulf %434, %433 : vector<8x128xf32>
    %436 = math.tanh %435 : vector<8x128xf32>
    %cst_121 = arith.constant 5.000000e-01 : f32
    %437 = vector.broadcast %cst_121 : f32 to vector<8x128xf32>
    %438 = arith.mulf %437, %436 : vector<8x128xf32>
    %cst_122 = arith.constant 5.000000e-01 : f32
    %439 = vector.broadcast %cst_122 : f32 to vector<8x128xf32>
    %440 = arith.addf %438, %439 : vector<8x128xf32>
    %441 = arith.mulf %430, %372 : vector<8x128xf32>
    %442 = arith.mulf %422, %432 : vector<8x128xf32>
    %443 = arith.addf %441, %442 : vector<8x128xf32>
    %444 = math.tanh %443 : vector<8x128xf32>
    %445 = arith.mulf %440, %444 : vector<8x128xf32>
    %446 = vector.extract_strided_slice %17 {offsets = [48, 0], sizes = [8, 512], strides = [1, 1]} : vector<64x512xf32> to vector<8x512xf32>
    %447 = vector.extract_strided_slice %412 {offsets = [0, 512], sizes = [8, 512], strides = [1, 1]} : vector<8x1024xf32> to vector<8x512xf32>
    %448 = arith.addf %446, %447 : vector<8x512xf32>
    %449 = vector.extract_strided_slice %448 {offsets = [0, 0], sizes = [8, 128], strides = [1, 1]} : vector<8x512xf32> to vector<8x128xf32>
    %cst_123 = arith.constant 5.000000e-01 : f32
    %450 = vector.broadcast %cst_123 : f32 to vector<8x128xf32>
    %451 = arith.mulf %450, %449 : vector<8x128xf32>
    %452 = math.tanh %451 : vector<8x128xf32>
    %cst_124 = arith.constant 5.000000e-01 : f32
    %453 = vector.broadcast %cst_124 : f32 to vector<8x128xf32>
    %454 = arith.mulf %453, %452 : vector<8x128xf32>
    %cst_125 = arith.constant 5.000000e-01 : f32
    %455 = vector.broadcast %cst_125 : f32 to vector<8x128xf32>
    %456 = arith.addf %454, %455 : vector<8x128xf32>
    %457 = vector.extract_strided_slice %448 {offsets = [0, 128], sizes = [8, 128], strides = [1, 1]} : vector<8x512xf32> to vector<8x128xf32>
    %cst_126 = arith.constant 5.000000e-01 : f32
    %458 = vector.broadcast %cst_126 : f32 to vector<8x128xf32>
    %459 = arith.mulf %458, %457 : vector<8x128xf32>
    %460 = math.tanh %459 : vector<8x128xf32>
    %cst_127 = arith.constant 5.000000e-01 : f32
    %461 = vector.broadcast %cst_127 : f32 to vector<8x128xf32>
    %462 = arith.mulf %461, %460 : vector<8x128xf32>
    %cst_128 = arith.constant 5.000000e-01 : f32
    %463 = vector.broadcast %cst_128 : f32 to vector<8x128xf32>
    %464 = arith.addf %462, %463 : vector<8x128xf32>
    %465 = vector.extract_strided_slice %448 {offsets = [0, 256], sizes = [8, 128], strides = [1, 1]} : vector<8x512xf32> to vector<8x128xf32>
    %466 = math.tanh %465 : vector<8x128xf32>
    %467 = vector.extract_strided_slice %448 {offsets = [0, 384], sizes = [8, 128], strides = [1, 1]} : vector<8x512xf32> to vector<8x128xf32>
    %cst_129 = arith.constant 5.000000e-01 : f32
    %468 = vector.broadcast %cst_129 : f32 to vector<8x128xf32>
    %469 = arith.mulf %468, %467 : vector<8x128xf32>
    %470 = math.tanh %469 : vector<8x128xf32>
    %cst_130 = arith.constant 5.000000e-01 : f32
    %471 = vector.broadcast %cst_130 : f32 to vector<8x128xf32>
    %472 = arith.mulf %471, %470 : vector<8x128xf32>
    %cst_131 = arith.constant 5.000000e-01 : f32
    %473 = vector.broadcast %cst_131 : f32 to vector<8x128xf32>
    %474 = arith.addf %472, %473 : vector<8x128xf32>
    %475 = arith.mulf %464, %406 : vector<8x128xf32>
    %476 = arith.mulf %456, %466 : vector<8x128xf32>
    %477 = arith.addf %475, %476 : vector<8x128xf32>
    %478 = math.tanh %477 : vector<8x128xf32>
    %479 = arith.mulf %474, %478 : vector<8x128xf32>
    %480 = arith.truncf %479 : vector<8x128xf32> to vector<8x128xbf16>
    %481 = arith.truncf %445 : vector<8x128xf32> to vector<8x128xbf16>
    %482 = tpu.concatenate %480, %481 in 1 : vector<8x128xbf16>, vector<8x128xbf16> -> vector<8x256xbf16>
    %cst_132 = arith.constant dense<0.000000e+00> : vector<8x1024xf32>
    %483 = tpu.matmul %482, %0, %cst_132 {dimension_numbers = #tpu.dot_dimension_numbers<[1], [0], [0], [1], [0, 0, 1, 1], [], []>} : vector<8x256xbf16>, vector<256x1024xbf16>, vector<8x1024xf32> -> vector<8x1024xf32>
    %484 = vector.extract_strided_slice %483 {offsets = [0, 0], sizes = [8, 512], strides = [1, 1]} : vector<8x1024xf32> to vector<8x512xf32>
    %485 = arith.addf %484, %20 : vector<8x512xf32>
    %486 = vector.extract_strided_slice %485 {offsets = [0, 0], sizes = [8, 128], strides = [1, 1]} : vector<8x512xf32> to vector<8x128xf32>
    %cst_133 = arith.constant 5.000000e-01 : f32
    %487 = vector.broadcast %cst_133 : f32 to vector<8x128xf32>
    %488 = arith.mulf %487, %486 : vector<8x128xf32>
    %489 = math.tanh %488 : vector<8x128xf32>
    %cst_134 = arith.constant 5.000000e-01 : f32
    %490 = vector.broadcast %cst_134 : f32 to vector<8x128xf32>
    %491 = arith.mulf %490, %489 : vector<8x128xf32>
    %cst_135 = arith.constant 5.000000e-01 : f32
    %492 = vector.broadcast %cst_135 : f32 to vector<8x128xf32>
    %493 = arith.addf %491, %492 : vector<8x128xf32>
    %494 = vector.extract_strided_slice %485 {offsets = [0, 128], sizes = [8, 128], strides = [1, 1]} : vector<8x512xf32> to vector<8x128xf32>
    %cst_136 = arith.constant 5.000000e-01 : f32
    %495 = vector.broadcast %cst_136 : f32 to vector<8x128xf32>
    %496 = arith.mulf %495, %494 : vector<8x128xf32>
    %497 = math.tanh %496 : vector<8x128xf32>
    %cst_137 = arith.constant 5.000000e-01 : f32
    %498 = vector.broadcast %cst_137 : f32 to vector<8x128xf32>
    %499 = arith.mulf %498, %497 : vector<8x128xf32>
    %cst_138 = arith.constant 5.000000e-01 : f32
    %500 = vector.broadcast %cst_138 : f32 to vector<8x128xf32>
    %501 = arith.addf %499, %500 : vector<8x128xf32>
    %502 = vector.extract_strided_slice %485 {offsets = [0, 256], sizes = [8, 128], strides = [1, 1]} : vector<8x512xf32> to vector<8x128xf32>
    %503 = math.tanh %502 : vector<8x128xf32>
    %504 = vector.extract_strided_slice %485 {offsets = [0, 384], sizes = [8, 128], strides = [1, 1]} : vector<8x512xf32> to vector<8x128xf32>
    %cst_139 = arith.constant 5.000000e-01 : f32
    %505 = vector.broadcast %cst_139 : f32 to vector<8x128xf32>
    %506 = arith.mulf %505, %504 : vector<8x128xf32>
    %507 = math.tanh %506 : vector<8x128xf32>
    %cst_140 = arith.constant 5.000000e-01 : f32
    %508 = vector.broadcast %cst_140 : f32 to vector<8x128xf32>
    %509 = arith.mulf %508, %507 : vector<8x128xf32>
    %cst_141 = arith.constant 5.000000e-01 : f32
    %510 = vector.broadcast %cst_141 : f32 to vector<8x128xf32>
    %511 = arith.addf %509, %510 : vector<8x128xf32>
    %512 = arith.mulf %501, %443 : vector<8x128xf32>
    %513 = arith.mulf %493, %503 : vector<8x128xf32>
    %514 = arith.addf %512, %513 : vector<8x128xf32>
    %515 = math.tanh %514 : vector<8x128xf32>
    %516 = arith.mulf %511, %515 : vector<8x128xf32>
    %517 = vector.extract_strided_slice %17 {offsets = [56, 0], sizes = [8, 512], strides = [1, 1]} : vector<64x512xf32> to vector<8x512xf32>
    %518 = vector.extract_strided_slice %483 {offsets = [0, 512], sizes = [8, 512], strides = [1, 1]} : vector<8x1024xf32> to vector<8x512xf32>
    %519 = arith.addf %517, %518 : vector<8x512xf32>
    %520 = vector.extract_strided_slice %519 {offsets = [0, 0], sizes = [8, 128], strides = [1, 1]} : vector<8x512xf32> to vector<8x128xf32>
    %cst_142 = arith.constant 5.000000e-01 : f32
    %521 = vector.broadcast %cst_142 : f32 to vector<8x128xf32>
    %522 = arith.mulf %521, %520 : vector<8x128xf32>
    %523 = math.tanh %522 : vector<8x128xf32>
    %cst_143 = arith.constant 5.000000e-01 : f32
    %524 = vector.broadcast %cst_143 : f32 to vector<8x128xf32>
    %525 = arith.mulf %524, %523 : vector<8x128xf32>
    %cst_144 = arith.constant 5.000000e-01 : f32
    %526 = vector.broadcast %cst_144 : f32 to vector<8x128xf32>
    %527 = arith.addf %525, %526 : vector<8x128xf32>
    %528 = vector.extract_strided_slice %519 {offsets = [0, 128], sizes = [8, 128], strides = [1, 1]} : vector<8x512xf32> to vector<8x128xf32>
    %cst_145 = arith.constant 5.000000e-01 : f32
    %529 = vector.broadcast %cst_145 : f32 to vector<8x128xf32>
    %530 = arith.mulf %529, %528 : vector<8x128xf32>
    %531 = math.tanh %530 : vector<8x128xf32>
    %cst_146 = arith.constant 5.000000e-01 : f32
    %532 = vector.broadcast %cst_146 : f32 to vector<8x128xf32>
    %533 = arith.mulf %532, %531 : vector<8x128xf32>
    %cst_147 = arith.constant 5.000000e-01 : f32
    %534 = vector.broadcast %cst_147 : f32 to vector<8x128xf32>
    %535 = arith.addf %533, %534 : vector<8x128xf32>
    %536 = vector.extract_strided_slice %519 {offsets = [0, 256], sizes = [8, 128], strides = [1, 1]} : vector<8x512xf32> to vector<8x128xf32>
    %537 = math.tanh %536 : vector<8x128xf32>
    %538 = vector.extract_strided_slice %519 {offsets = [0, 384], sizes = [8, 128], strides = [1, 1]} : vector<8x512xf32> to vector<8x128xf32>
    %cst_148 = arith.constant 5.000000e-01 : f32
    %539 = vector.broadcast %cst_148 : f32 to vector<8x128xf32>
    %540 = arith.mulf %539, %538 : vector<8x128xf32>
    %541 = math.tanh %540 : vector<8x128xf32>
    %cst_149 = arith.constant 5.000000e-01 : f32
    %542 = vector.broadcast %cst_149 : f32 to vector<8x128xf32>
    %543 = arith.mulf %542, %541 : vector<8x128xf32>
    %cst_150 = arith.constant 5.000000e-01 : f32
    %544 = vector.broadcast %cst_150 : f32 to vector<8x128xf32>
    %545 = arith.addf %543, %544 : vector<8x128xf32>
    %546 = arith.mulf %535, %477 : vector<8x128xf32>
    %547 = arith.mulf %527, %537 : vector<8x128xf32>
    %548 = arith.addf %546, %547 : vector<8x128xf32>
    %549 = math.tanh %548 : vector<8x128xf32>
    %550 = arith.mulf %545, %549 : vector<8x128xf32>
    %551 = arith.truncf %550 : vector<8x128xf32> to vector<8x128xbf16>
    %552 = arith.truncf %516 : vector<8x128xf32> to vector<8x128xbf16>
    %553 = tpu.concatenate %551, %552 in 1 : vector<8x128xbf16>, vector<8x128xbf16> -> vector<8x256xbf16>
    %cst_151 = arith.constant dense<0.000000e+00> : vector<8x1024xf32>
    %554 = tpu.matmul %553, %0, %cst_151 {dimension_numbers = #tpu.dot_dimension_numbers<[1], [0], [0], [1], [0, 0, 1, 1], [], []>} : vector<8x256xbf16>, vector<256x1024xbf16>, vector<8x1024xf32> -> vector<8x1024xf32>
    %555 = vector.extract_strided_slice %554 {offsets = [0, 0], sizes = [8, 512], strides = [1, 1]} : vector<8x1024xf32> to vector<8x512xf32>
    %556 = arith.addf %555, %20 : vector<8x512xf32>
    %557 = vector.extract_strided_slice %556 {offsets = [0, 0], sizes = [8, 128], strides = [1, 1]} : vector<8x512xf32> to vector<8x128xf32>
    %cst_152 = arith.constant 5.000000e-01 : f32
    %558 = vector.broadcast %cst_152 : f32 to vector<8x128xf32>
    %559 = arith.mulf %558, %557 : vector<8x128xf32>
    %560 = math.tanh %559 : vector<8x128xf32>
    %cst_153 = arith.constant 5.000000e-01 : f32
    %561 = vector.broadcast %cst_153 : f32 to vector<8x128xf32>
    %562 = arith.mulf %561, %560 : vector<8x128xf32>
    %cst_154 = arith.constant 5.000000e-01 : f32
    %563 = vector.broadcast %cst_154 : f32 to vector<8x128xf32>
    %564 = arith.addf %562, %563 : vector<8x128xf32>
    %565 = vector.extract_strided_slice %556 {offsets = [0, 128], sizes = [8, 128], strides = [1, 1]} : vector<8x512xf32> to vector<8x128xf32>
    %cst_155 = arith.constant 5.000000e-01 : f32
    %566 = vector.broadcast %cst_155 : f32 to vector<8x128xf32>
    %567 = arith.mulf %566, %565 : vector<8x128xf32>
    %568 = math.tanh %567 : vector<8x128xf32>
    %cst_156 = arith.constant 5.000000e-01 : f32
    %569 = vector.broadcast %cst_156 : f32 to vector<8x128xf32>
    %570 = arith.mulf %569, %568 : vector<8x128xf32>
    %cst_157 = arith.constant 5.000000e-01 : f32
    %571 = vector.broadcast %cst_157 : f32 to vector<8x128xf32>
    %572 = arith.addf %570, %571 : vector<8x128xf32>
    %573 = vector.extract_strided_slice %556 {offsets = [0, 256], sizes = [8, 128], strides = [1, 1]} : vector<8x512xf32> to vector<8x128xf32>
    %574 = math.tanh %573 : vector<8x128xf32>
    %575 = vector.extract_strided_slice %556 {offsets = [0, 384], sizes = [8, 128], strides = [1, 1]} : vector<8x512xf32> to vector<8x128xf32>
    %cst_158 = arith.constant 5.000000e-01 : f32
    %576 = vector.broadcast %cst_158 : f32 to vector<8x128xf32>
    %577 = arith.mulf %576, %575 : vector<8x128xf32>
    %578 = math.tanh %577 : vector<8x128xf32>
    %cst_159 = arith.constant 5.000000e-01 : f32
    %579 = vector.broadcast %cst_159 : f32 to vector<8x128xf32>
    %580 = arith.mulf %579, %578 : vector<8x128xf32>
    %cst_160 = arith.constant 5.000000e-01 : f32
    %581 = vector.broadcast %cst_160 : f32 to vector<8x128xf32>
    %582 = arith.addf %580, %581 : vector<8x128xf32>
    %583 = arith.mulf %572, %514 : vector<8x128xf32>
    %584 = arith.mulf %564, %574 : vector<8x128xf32>
    %585 = arith.addf %583, %584 : vector<8x128xf32>
    %586 = math.tanh %585 : vector<8x128xf32>
    %587 = arith.mulf %582, %586 : vector<8x128xf32>
    %588 = arith.truncf %587 : vector<8x128xf32> to vector<8x128xbf16>
    %c0_161 = arith.constant 0 : index
    %c0_162 = arith.constant 0 : index
    %589 = vector.load %arg5[%c0_161, %c0_162] : memref<128x128xbf16, #tpu.memory_space<vmem>>, vector<128x128xbf16>
    %cst_163 = arith.constant dense<0.000000e+00> : vector<8x128xf32>
    %590 = tpu.matmul %588, %589, %cst_163 {dimension_numbers = #tpu.dot_dimension_numbers<[1], [0], [0], [1], [0, 0, 1, 1], [], []>} : vector<8x128xbf16>, vector<128x128xbf16>, vector<8x128xf32> -> vector<8x128xf32>
    %c0_164 = arith.constant 0 : index
    %c0_165 = arith.constant 0 : index
    %591 = vector.load %arg6[%c0_164, %c0_165] : memref<1x128xf32, #tpu.memory_space<vmem>>, vector<1x128xf32>
    %592 = vector.broadcast %591 : vector<1x128xf32> to vector<8x128xf32>
    %593 = arith.addf %590, %592 : vector<8x128xf32>
    %c0_166 = arith.constant 0 : index
    %c0_167 = arith.constant 0 : index
    %594 = vector.load %arg7[%c0_166, %c0_167] : memref<8x128xf32, #tpu.memory_space<vmem>>, vector<8x128xf32>
    tpu.vector_store %arg7[%c0_166, %c0_167], %593 {strides = array<i32>} : memref<8x128xf32, #tpu.memory_space<vmem>>, vector<8x128xf32>,
    return
  }
}

</mosaic_0001>

<llo_original>
// kernel: trajectory_prediction_forward.1
$region0: #{trajectory_prediction_forward.1}
  #allocation0 [shape = 'u32[]', space=smem, size = 0x4, offset = 0x4, fixed_abs, tag = 'smem constant byte address 0x4 - core index']
  #allocation1 [shape = 'u32[144,128]{1,0:T(1,128)}', space=vmem, size = 0x12000, scoped, tag = 'internal scratch']
  %s0 = inlined_call_operand.vmem [shape: f32[64,2], index: 0, kind: input, shape index: {}]
  %s1 = inlined_call_operand.vmem [shape: f32[2,512], index: 1, kind: input, shape index: {}]
  %s2 = inlined_call_operand.vmem [shape: f32[1,512], index: 2, kind: input, shape index: {}]
  %s3 = inlined_call_operand.vmem [shape: bf16[256,1024], index: 3, kind: input, shape index: {}]
  %s4 = inlined_call_operand.vmem [shape: f32[1,512], index: 4, kind: input, shape index: {}]
  %s5 = inlined_call_operand.vmem [shape: bf16[128,128], index: 5, kind: input, shape index: {}]
  %s6 = inlined_call_operand.vmem [shape: f32[1,128], index: 6, kind: input, shape index: {}]
  %s7 = inlined_call_operand.vmem [shape: f32[8,128], index: 7, kind: output, shape index: {}]
  %s8 = sld [smem:[#allocation0]]
  $region38: #{trajectory_prediction_forward.1} parent=0
    _
  %s10 = ssub.s32 1, %s8
  %s11 = scalar_select 0, %s10, %s8
  // Predicated region
  $region2: #{trajectory_prediction_forward.1} parent=0 // pred_check
    _
  $region3: #{trajectory_prediction_forward.1} parent=0 // pred_check_branch
    %13 = sbr.rel (0) target = $region5
  $region4: #{trajectory_prediction_forward.1} parent=0 // pred_region
    _
  $region5: #{trajectory_prediction_forward.1} parent=0 // pred_fallthru
    _
  // Predicated region
  $region6: #{trajectory_prediction_forward.1} parent=0 // pred_check
    _
  $region7: #{trajectory_prediction_forward.1} parent=0 // pred_check_branch
    %15 = sbr.rel (0) target = $region9
  $region8: #{trajectory_prediction_forward.1} parent=0 // pred_region
    _
  $region9: #{trajectory_prediction_forward.1} parent=0 // pred_fallthru
    _
  // Predicated region
  $region10: #{trajectory_prediction_forward.1} parent=0 // pred_check
    _
  $region11: #{trajectory_prediction_forward.1} parent=0 // pred_check_branch
    %17 = sbr.rel (0) target = $region13
  $region12: #{trajectory_prediction_forward.1} parent=0 // pred_region
    _
  $region13: #{trajectory_prediction_forward.1} parent=0 // pred_fallthru
    _
  // Predicated region
  $region14: #{trajectory_prediction_forward.1} parent=0 // pred_check
    _
  $region15: #{trajectory_prediction_forward.1} parent=0 // pred_check_branch
    %19 = sbr.rel (0) target = $region17
  $region16: #{trajectory_prediction_forward.1} parent=0 // pred_region
    _
  $region17: #{trajectory_prediction_forward.1} parent=0 // pred_fallthru
    _
  // Predicated region
  $region18: #{trajectory_prediction_forward.1} parent=0 // pred_check
    _
  $region19: #{trajectory_prediction_forward.1} parent=0 // pred_check_branch
    %21 = sbr.rel (0) target = $region21
  $region20: #{trajectory_prediction_forward.1} parent=0 // pred_region
    _
  $region21: #{trajectory_prediction_forward.1} parent=0 // pred_fallthru
    _
  // Predicated region
  $region22: #{trajectory_prediction_forward.1} parent=0 // pred_check
    _
  $region23: #{trajectory_prediction_forward.1} parent=0 // pred_check_branch
    %23 = sbr.rel (0) target = $region25
  $region24: #{trajectory_prediction_forward.1} parent=0 // pred_region
    _
  $region25: #{trajectory_prediction_forward.1} parent=0 // pred_fallthru
    _
  // Predicated region
  $region26: #{trajectory_prediction_forward.1} parent=0 // pred_check
    _
  $region27: #{trajectory_prediction_forward.1} parent=0 // pred_check_branch
    %25 = sbr.rel (0) target = $region29
  $region28: #{trajectory_prediction_forward.1} parent=0 // pred_region
    _
  $region29: #{trajectory_prediction_forward.1} parent=0 // pred_fallthru
    _
  %v27 = vld [vmem:[%s3] sm:$0xff]
  %v28 = vld [vmem:[%s3 + $0x8] sm:$0xff]
  %v29 = vld [vmem:[%s3 + $0x10] sm:$0xff]
  %v30 = vld [vmem:[%s3 + $0x18] sm:$0xff]
  %v31 = vld [vmem:[%s3 + $0x20] sm:$0xff]
  %v32 = vld [vmem:[%s3 + $0x28] sm:$0xff]
  %v33 = vld [vmem:[%s3 + $0x30] sm:$0xff]
  %v34 = vld [vmem:[%s3 + $0x38] sm:$0xff]
  %v35 = vld [vmem:[%s3 + $0x40] sm:$0xff]
  %v36 = vld [vmem:[%s3 + $0x48] sm:$0xff]
  %v37 = vld [vmem:[%s3 + $0x50] sm:$0xff]
  %v38 = vld [vmem:[%s3 + $0x58] sm:$0xff]
  %v39 = vld [vmem:[%s3 + $0x60] sm:$0xff]
  %v40 = vld [vmem:[%s3 + $0x68] sm:$0xff]
  %v41 = vld [vmem:[%s3 + $0x70] sm:$0xff]
  %v42 = vld [vmem:[%s3 + $0x78] sm:$0xff]
  %v43 = vld [vmem:[%s3 + $0x80] sm:$0xff]
  %v44 = vld [vmem:[%s3 + $0x88] sm:$0xff]
  %v45 = vld [vmem:[%s3 + $0x90] sm:$0xff]
  %v46 = vld [vmem:[%s3 + $0x98] sm:$0xff]
  %v47 = vld [vmem:[%s3 + $0xa0] sm:$0xff]
  %v48 = vld [vmem:[%s3 + $0xa8] sm:$0xff]
  %v49 = vld [vmem:[%s3 + $0xb0] sm:$0xff]
  %v50 = vld [vmem:[%s3 + $0xb8] sm:$0xff]
  %v51 = vld [vmem:[%s3 + $0xc0] sm:$0xff]
  %v52 = vld [vmem:[%s3 + $0xc8] sm:$0xff]
  %v53 = vld [vmem:[%s3 + $0xd0] sm:$0xff]
  %v54 = vld [vmem:[%s3 + $0xd8] sm:$0xff]
  %v55 = vld [vmem:[%s3 + $0xe0] sm:$0xff]
  %v56 = vld [vmem:[%s3 + $0xe8] sm:$0xff]
  %v57 = vld [vmem:[%s3 + $0xf0] sm:$0xff]
  %v58 = vld [vmem:[%s3 + $0xf8] sm:$0xff]
  %v59 = vld [vmem:[%s3 + $0x100] sm:$0xff]
  %v60 = vld [vmem:[%s3 + $0x108] sm:$0xff]
  %v61 = vld [vmem:[%s3 + $0x110] sm:$0xff]
  %v62 = vld [vmem:[%s3 + $0x118] sm:$0xff]
  %v63 = vld [vmem:[%s3 + $0x120] sm:$0xff]
  %v64 = vld [vmem:[%s3 + $0x128] sm:$0xff]
  %v65 = vld [vmem:[%s3 + $0x130] sm:$0xff]
  %v66 = vld [vmem:[%s3 + $0x138] sm:$0xff]
  %v67 = vld [vmem:[%s3 + $0x140] sm:$0xff]
  %v68 = vld [vmem:[%s3 + $0x148] sm:$0xff]
  %v69 = vld [vmem:[%s3 + $0x150] sm:$0xff]
  %v70 = vld [vmem:[%s3 + $0x158] sm:$0xff]
  %v71 = vld [vmem:[%s3 + $0x160] sm:$0xff]
  %v72 = vld [vmem:[%s3 + $0x168] sm:$0xff]
  %v73 = vld [vmem:[%s3 + $0x170] sm:$0xff]
  %v74 = vld [vmem:[%s3 + $0x178] sm:$0xff]
  %v75 = vld [vmem:[%s3 + $0x180] sm:$0xff]
  %v76 = vld [vmem:[%s3 + $0x188] sm:$0xff]
  %v77 = vld [vmem:[%s3 + $0x190] sm:$0xff]
  %v78 = vld [vmem:[%s3 + $0x198] sm:$0xff]
  %v79 = vld [vmem:[%s3 + $0x1a0] sm:$0xff]
  %v80 = vld [vmem:[%s3 + $0x1a8] sm:$0xff]
  %v81 = vld [vmem:[%s3 + $0x1b0] sm:$0xff]
  %v82 = vld [vmem:[%s3 + $0x1b8] sm:$0xff]
  %v83 = vld [vmem:[%s3 + $0x1c0] sm:$0xff]
  %v84 = vld [vmem:[%s3 + $0x1c8] sm:$0xff]
  %v85 = vld [vmem:[%s3 + $0x1d0] sm:$0xff]
  %v86 = vld [vmem:[%s3 + $0x1d8] sm:$0xff]
  %v87 = vld [vmem:[%s3 + $0x1e0] sm:$0xff]
  %v88 = vld [vmem:[%s3 + $0x1e8] sm:$0xff]
  %v89 = vld [vmem:[%s3 + $0x1f0] sm:$0xff]
  %v90 = vld [vmem:[%s3 + $0x1f8] sm:$0xff]
  %v91 = vld [vmem:[%s3 + $0x200] sm:$0xff]
  %v92 = vld [vmem:[%s3 + $0x208] sm:$0xff]
  %v93 = vld [vmem:[%s3 + $0x210] sm:$0xff]
  %v94 = vld [vmem:[%s3 + $0x218] sm:$0xff]
  %v95 = vld [vmem:[%s3 + $0x220] sm:$0xff]
  %v96 = vld [vmem:[%s3 + $0x228] sm:$0xff]
  %v97 = vld [vmem:[%s3 + $0x230] sm:$0xff]
  %v98 = vld [vmem:[%s3 + $0x238] sm:$0xff]
  %v99 = vld [vmem:[%s3 + $0x240] sm:$0xff]
  %v100 = vld [vmem:[%s3 + $0x248] sm:$0xff]
  %v101 = vld [vmem:[%s3 + $0x250] sm:$0xff]
  %v102 = vld [vmem:[%s3 + $0x258] sm:$0xff]
  %v103 = vld [vmem:[%s3 + $0x260] sm:$0xff]
  %v104 = vld [vmem:[%s3 + $0x268] sm:$0xff]
  %v105 = vld [vmem:[%s3 + $0x270] sm:$0xff]
  %v106 = vld [vmem:[%s3 + $0x278] sm:$0xff]
  %v107 = vld [vmem:[%s3 + $0x280] sm:$0xff]
  %v108 = vld [vmem:[%s3 + $0x288] sm:$0xff]
  %v109 = vld [vmem:[%s3 + $0x290] sm:$0xff]
  %v110 = vld [vmem:[%s3 + $0x298] sm:$0xff]
  %v111 = vld [vmem:[%s3 + $0x2a0] sm:$0xff]
  %v112 = vld [vmem:[%s3 + $0x2a8] sm:$0xff]
  %v113 = vld [vmem:[%s3 + $0x2b0] sm:$0xff]
  %v114 = vld [vmem:[%s3 + $0x2b8] sm:$0xff]
  %v115 = vld [vmem:[%s3 + $0x2c0] sm:$0xff]
  %v116 = vld [vmem:[%s3 + $0x2c8] sm:$0xff]
  %v117 = vld [vmem:[%s3 + $0x2d0] sm:$0xff]
  %v118 = vld [vmem:[%s3 + $0x2d8] sm:$0xff]
  %v119 = vld [vmem:[%s3 + $0x2e0] sm:$0xff]
  %v120 = vld [vmem:[%s3 + $0x2e8] sm:$0xff]
  %v121 = vld [vmem:[%s3 + $0x2f0] sm:$0xff]
  %v122 = vld [vmem:[%s3 + $0x2f8] sm:$0xff]
  %v123 = vld [vmem:[%s3 + $0x300] sm:$0xff]
  %v124 = vld [vmem:[%s3 + $0x308] sm:$0xff]
  %v125 = vld [vmem:[%s3 + $0x310] sm:$0xff]
  %v126 = vld [vmem:[%s3 + $0x318] sm:$0xff]
  %v127 = vld [vmem:[%s3 + $0x320] sm:$0xff]
  %v128 = vld [vmem:[%s3 + $0x328] sm:$0xff]
  %v129 = vld [vmem:[%s3 + $0x330] sm:$0xff]
  %v130 = vld [vmem:[%s3 + $0x338] sm:$0xff]
  %v131 = vld [vmem:[%s3 + $0x340] sm:$0xff]
  %v132 = vld [vmem:[%s3 + $0x348] sm:$0xff]
  %v133 = vld [vmem:[%s3 + $0x350] sm:$0xff]
  %v134 = vld [vmem:[%s3 + $0x358] sm:$0xff]
  %v135 = vld [vmem:[%s3 + $0x360] sm:$0xff]
  %v136 = vld [vmem:[%s3 + $0x368] sm:$0xff]
  %v137 = vld [vmem:[%s3 + $0x370] sm:$0xff]
  %v138 = vld [vmem:[%s3 + $0x378] sm:$0xff]
  %v139 = vld [vmem:[%s3 + $0x380] sm:$0xff]
  %v140 = vld [vmem:[%s3 + $0x388] sm:$0xff]
  %v141 = vld [vmem:[%s3 + $0x390] sm:$0xff]
  %v142 = vld [vmem:[%s3 + $0x398] sm:$0xff]
  %v143 = vld [vmem:[%s3 + $0x3a0] sm:$0xff]
  %v144 = vld [vmem:[%s3 + $0x3a8] sm:$0xff]
  %v145 = vld [vmem:[%s3 + $0x3b0] sm:$0xff]
  %v146 = vld [vmem:[%s3 + $0x3b8] sm:$0xff]
  %v147 = vld [vmem:[%s3 + $0x3c0] sm:$0xff]
  %v148 = vld [vmem:[%s3 + $0x3c8] sm:$0xff]
  %v149 = vld [vmem:[%s3 + $0x3d0] sm:$0xff]
  %v150 = vld [vmem:[%s3 + $0x3d8] sm:$0xff]
  %v151 = vld [vmem:[%s3 + $0x3e0] sm:$0xff]
  %v152 = vld [vmem:[%s3 + $0x3e8] sm:$0xff]
  %v153 = vld [vmem:[%s3 + $0x3f0] sm:$0xff]
  %v154 = vld [vmem:[%s3 + $0x3f8] sm:$0xff]
  %v155 = vld [vmem:[%s0] sm:$0xff]
  %v156 = vld [vmem:[%s0 + $0x8] sm:$0xff]
  %v157 = vld [vmem:[%s0 + $0x10] sm:$0xff]
  %v158 = vld [vmem:[%s0 + $0x18] sm:$0xff]
  %v159 = vld [vmem:[%s0 + $0x20] sm:$0xff]
  %v160 = vld [vmem:[%s0 + $0x28] sm:$0xff]
  %v161 = vld [vmem:[%s0 + $0x30] sm:$0xff]
  %v162 = vld [vmem:[%s0 + $0x38] sm:$0xff]
  %v163 = vld [vmem:[%s1] sm:$0xff]
  %v164 = vld [vmem:[%s2] sm:$0xf]
  %v166 = vlaneseq
  %v167 = vshrl.u32 %v166, 7
  %v168 = vsub.s32 0, %v167
  %v169 = vrot.slane %v164, %v168
  %v170 = vlaneseq
  %v171 = vshrl.u32 %v170, 7
  %v172 = vsub.s32 1, %v171
  %v173 = vrot.slane %v164, %v172
  %v174 = vlaneseq
  %v175 = vshrl.u32 %v174, 7
  %v176 = vsub.s32 2, %v175
  %v177 = vrot.slane %v164, %v176
  %v178 = vlaneseq
  %v179 = vshrl.u32 %v178, 7
  %v180 = vsub.s32 3, %v179
  %v181 = vrot.slane %v164, %v180
  %187 = vset.pattern.permute.xlu0 0
  %188 = vperm.xlu0 %187, %v155
  %v189 = vpop.permute.xlu0 %188
  %192 = vset.pattern.permute.xlu0 0
  %193 = vperm.xlu0 %192, %v156
  %v194 = vpop.permute.xlu0 %193
  %197 = vset.pattern.permute.xlu0 0
  %198 = vperm.xlu0 %197, %v157
  %v199 = vpop.permute.xlu0 %198
  %202 = vset.pattern.permute.xlu0 0
  %203 = vperm.xlu0 %202, %v158
  %v204 = vpop.permute.xlu0 %203
  %207 = vset.pattern.permute.xlu0 0
  %208 = vperm.xlu0 %207, %v159
  %v209 = vpop.permute.xlu0 %208
  %212 = vset.pattern.permute.xlu0 0
  %213 = vperm.xlu0 %212, %v160
  %v214 = vpop.permute.xlu0 %213
  %217 = vset.pattern.permute.xlu0 0
  %218 = vperm.xlu0 %217, %v161
  %v219 = vpop.permute.xlu0 %218
  %222 = vset.pattern.permute.xlu0 0
  %223 = vperm.xlu0 %222, %v162
  %v224 = vpop.permute.xlu0 %223
  %v227 = vlaneseq
  %v228 = vshrl.u32 %v227, 7
  %v229 = vsub.s32 0, %v228
  %v230 = vrot.slane %v163, %v229
  %v231 = vlaneseq
  %v232 = vshrl.u32 %v231, 7
  %v233 = vsub.s32 2, %v232
  %v234 = vrot.slane %v163, %v233
  %v235 = vlaneseq
  %v236 = vshrl.u32 %v235, 7
  %v237 = vsub.s32 4, %v236
  %v238 = vrot.slane %v163, %v237
  %v239 = vlaneseq
  %v240 = vshrl.u32 %v239, 7
  %v241 = vsub.s32 6, %v240
  %v242 = vrot.slane %v163, %v241
  %v247 = vlaneseq
  %v248 = vshrl.u32 %v247, 7
  %v249 = vsub.s32 0, %v248
  %v250 = vrot.slane %v230, %v249
  %v251 = vlaneseq
  %v252 = vshrl.u32 %v251, 7
  %v253 = vsub.s32 0, %v252
  %v254 = vrot.slane %v234, %v253
  %v255 = vlaneseq
  %v256 = vshrl.u32 %v255, 7
  %v257 = vsub.s32 0, %v256
  %v258 = vrot.slane %v238, %v257
  %v259 = vlaneseq
  %v260 = vshrl.u32 %v259, 7
  %v261 = vsub.s32 0, %v260
  %v262 = vrot.slane %v242, %v261
  %v263 = vmul.f32 %v189, %v250
  %v264 = vmul.f32 %v189, %v254
  %v265 = vmul.f32 %v189, %v258
  %v266 = vmul.f32 %v189, %v262
  %v267 = vmul.f32 %v194, %v250
  %v268 = vmul.f32 %v194, %v254
  %v269 = vmul.f32 %v194, %v258
  %v270 = vmul.f32 %v194, %v262
  %v271 = vmul.f32 %v199, %v250
  %v272 = vmul.f32 %v199, %v254
  %v273 = vmul.f32 %v199, %v258
  %v274 = vmul.f32 %v199, %v262
  %v275 = vmul.f32 %v204, %v250
  %v276 = vmul.f32 %v204, %v254
  %v277 = vmul.f32 %v204, %v258
  %v278 = vmul.f32 %v204, %v262
  %v279 = vmul.f32 %v209, %v250
  %v280 = vmul.f32 %v209, %v254
  %v281 = vmul.f32 %v209, %v258
  %v282 = vmul.f32 %v209, %v262
  %v283 = vmul.f32 %v214, %v250
  %v284 = vmul.f32 %v214, %v254
  %v285 = vmul.f32 %v214, %v258
  %v286 = vmul.f32 %v214, %v262
  %v287 = vmul.f32 %v219, %v250
  %v288 = vmul.f32 %v219, %v254
  %v289 = vmul.f32 %v219, %v258
  %v290 = vmul.f32 %v219, %v262
  %v291 = vmul.f32 %v224, %v250
  %v292 = vmul.f32 %v224, %v254
  %v293 = vmul.f32 %v224, %v258
  %v294 = vmul.f32 %v224, %v262
  %v295 = vadd.f32 %v169, %v263
  %v296 = vadd.f32 %v173, %v264
  %v297 = vadd.f32 %v177, %v265
  %v298 = vadd.f32 %v181, %v266
  %v299 = vadd.f32 %v169, %v267
  %v300 = vadd.f32 %v173, %v268
  %v301 = vadd.f32 %v177, %v269
  %v302 = vadd.f32 %v181, %v270
  %v303 = vadd.f32 %v169, %v271
  %v304 = vadd.f32 %v173, %v272
  %v305 = vadd.f32 %v177, %v273
  %v306 = vadd.f32 %v181, %v274
  %v307 = vadd.f32 %v169, %v275
  %v308 = vadd.f32 %v173, %v276
  %v309 = vadd.f32 %v177, %v277
  %v310 = vadd.f32 %v181, %v278
  %v311 = vadd.f32 %v169, %v279
  %v312 = vadd.f32 %v173, %v280
  %v313 = vadd.f32 %v177, %v281
  %v314 = vadd.f32 %v181, %v282
  %v315 = vadd.f32 %v169, %v283
  %v316 = vadd.f32 %v173, %v284
  %v317 = vadd.f32 %v177, %v285
  %v318 = vadd.f32 %v181, %v286
  %v319 = vadd.f32 %v169, %v287
  %v320 = vadd.f32 %v173, %v288
  %v321 = vadd.f32 %v177, %v289
  %v322 = vadd.f32 %v181, %v290
  %v323 = vadd.f32 %v169, %v291
  %v324 = vadd.f32 %v173, %v292
  %v325 = vadd.f32 %v177, %v293
  %v326 = vadd.f32 %v181, %v294
  %327 = vset.pattern.permute.xlu0 1
  %328 = vperm.xlu0 %327, %v155
  %v329 = vpop.permute.xlu0 %328
  %331 = vset.pattern.permute.xlu0 1
  %332 = vperm.xlu0 %331, %v156
  %v333 = vpop.permute.xlu0 %332
  %335 = vset.pattern.permute.xlu0 1
  %336 = vperm.xlu0 %335, %v157
  %v337 = vpop.permute.xlu0 %336
  %339 = vset.pattern.permute.xlu0 1
  %340 = vperm.xlu0 %339, %v158
  %v341 = vpop.permute.xlu0 %340
  %343 = vset.pattern.permute.xlu0 1
  %344 = vperm.xlu0 %343, %v159
  %v345 = vpop.permute.xlu0 %344
  %347 = vset.pattern.permute.xlu0 1
  %348 = vperm.xlu0 %347, %v160
  %v349 = vpop.permute.xlu0 %348
  %351 = vset.pattern.permute.xlu0 1
  %352 = vperm.xlu0 %351, %v161
  %v353 = vpop.permute.xlu0 %352
  %355 = vset.pattern.permute.xlu0 1
  %356 = vperm.xlu0 %355, %v162
  %v357 = vpop.permute.xlu0 %356
  %v359 = vlaneseq
  %v360 = vshrl.u32 %v359, 7
  %v361 = vsub.s32 1, %v360
  %v362 = vrot.slane %v163, %v361
  %v363 = vlaneseq
  %v364 = vshrl.u32 %v363, 7
  %v365 = vsub.s32 3, %v364
  %v366 = vrot.slane %v163, %v365
  %v367 = vlaneseq
  %v368 = vshrl.u32 %v367, 7
  %v369 = vsub.s32 5, %v368
  %v370 = vrot.slane %v163, %v369
  %v371 = vlaneseq
  %v372 = vshrl.u32 %v371, 7
  %v373 = vsub.s32 7, %v372
  %v374 = vrot.slane %v163, %v373
  %v379 = vlaneseq
  %v380 = vshrl.u32 %v379, 7
  %v381 = vsub.s32 1, %v380
  %v382 = vrot.slane %v362, %v381
  %v383 = vlaneseq
  %v384 = vshrl.u32 %v383, 7
  %v385 = vsub.s32 1, %v384
  %v386 = vrot.slane %v366, %v385
  %v387 = vlaneseq
  %v388 = vshrl.u32 %v387, 7
  %v389 = vsub.s32 1, %v388
  %v390 = vrot.slane %v370, %v389
  %v391 = vlaneseq
  %v392 = vshrl.u32 %v391, 7
  %v393 = vsub.s32 1, %v392
  %v394 = vrot.slane %v374, %v393
  %v395 = vmul.f32 %v329, %v382
  %v396 = vmul.f32 %v329, %v386
  %v397 = vmul.f32 %v329, %v390
  %v398 = vmul.f32 %v329, %v394
  %v399 = vmul.f32 %v333, %v382
  %v400 = vmul.f32 %v333, %v386
  %v401 = vmul.f32 %v333, %v390
  %v402 = vmul.f32 %v333, %v394
  %v403 = vmul.f32 %v337, %v382
  %v404 = vmul.f32 %v337, %v386
  %v405 = vmul.f32 %v337, %v390
  %v406 = vmul.f32 %v337, %v394
  %v407 = vmul.f32 %v341, %v382
  %v408 = vmul.f32 %v341, %v386
  %v409 = vmul.f32 %v341, %v390
  %v410 = vmul.f32 %v341, %v394
  %v411 = vmul.f32 %v345, %v382
  %v412 = vmul.f32 %v345, %v386
  %v413 = vmul.f32 %v345, %v390
  %v414 = vmul.f32 %v345, %v394
  %v415 = vmul.f32 %v349, %v382
  %v416 = vmul.f32 %v349, %v386
  %v417 = vmul.f32 %v349, %v390
  %v418 = vmul.f32 %v349, %v394
  %v419 = vmul.f32 %v353, %v382
  %v420 = vmul.f32 %v353, %v386
  %v421 = vmul.f32 %v353, %v390
  %v422 = vmul.f32 %v353, %v394
  %v423 = vmul.f32 %v357, %v382
  %v424 = vmul.f32 %v357, %v386
  %v425 = vmul.f32 %v357, %v390
  %v426 = vmul.f32 %v357, %v394
  %v427 = vadd.f32 %v295, %v395
  %v428 = vadd.f32 %v296, %v396
  %v429 = vadd.f32 %v297, %v397
  %v430 = vadd.f32 %v298, %v398
  %v431 = vadd.f32 %v299, %v399
  %v432 = vadd.f32 %v300, %v400
  %v433 = vadd.f32 %v301, %v401
  %v434 = vadd.f32 %v302, %v402
  %v435 = vadd.f32 %v303, %v403
  %v436 = vadd.f32 %v304, %v404
  %v437 = vadd.f32 %v305, %v405
  %v438 = vadd.f32 %v306, %v406
  %v439 = vadd.f32 %v307, %v407
  %v440 = vadd.f32 %v308, %v408
  %v441 = vadd.f32 %v309, %v409
  %v442 = vadd.f32 %v310, %v410
  %v443 = vadd.f32 %v311, %v411
  %v444 = vadd.f32 %v312, %v412
  %v445 = vadd.f32 %v313, %v413
  %v446 = vadd.f32 %v314, %v414
  %v447 = vadd.f32 %v315, %v415
  %v448 = vadd.f32 %v316, %v416
  %v449 = vadd.f32 %v317, %v417
  %v450 = vadd.f32 %v318, %v418
  %v451 = vadd.f32 %v319, %v419
  %v452 = vadd.f32 %v320, %v420
  %v453 = vadd.f32 %v321, %v421
  %v454 = vadd.f32 %v322, %v422
  %v455 = vadd.f32 %v323, %v423
  %v456 = vadd.f32 %v324, %v424
  %v457 = vadd.f32 %v325, %v425
  %v458 = vadd.f32 %v326, %v426
  %v459 = vld [vmem:[%s4] sm:$0xf]
  %v461 = vlaneseq
  %v462 = vshrl.u32 %v461, 7
  %v463 = vsub.s32 0, %v462
  %v464 = vrot.slane %v459, %v463
  %v465 = vlaneseq
  %v466 = vshrl.u32 %v465, 7
  %v467 = vsub.s32 1, %v466
  %v468 = vrot.slane %v459, %v467
  %v469 = vlaneseq
  %v470 = vshrl.u32 %v469, 7
  %v471 = vsub.s32 2, %v470
  %v472 = vrot.slane %v459, %v471
  %v473 = vlaneseq
  %v474 = vshrl.u32 %v473, 7
  %v475 = vsub.s32 3, %v474
  %v476 = vrot.slane %v459, %v475
  %v481 = vmul.f32 %v427, 0.5
  %v482 = vtanh.pop %v481
  %v483 = vmul.f32 %v482, 0.5
  %v484 = vadd.f32 %v483, 0.5
  %v485 = vmul.f32 %v428, 0.5
  %v486 = vtanh.pop %v485
  %v487 = vmul.f32 %v486, 0.5
  %v488 = vadd.f32 %v487, 0.5
  %v489 = vtanh.pop %v429
  %v490 = vmul.f32 %v430, 0.5
  %v491 = vtanh.pop %v490
  %v492 = vmul.f32 %v491, 0.5
  %v493 = vadd.f32 %v492, 0.5
  %v494 = vmul.f32 %v488, 0.0
  %v495 = vmul.f32 %v484, %v489
  %v496 = vadd.f32 %v494, %v495
  %v497 = vtanh.pop %v496
  %v498 = vmul.f32 %v493, %v497
  %v499 = vpack.c.bf16 %v498, %v498
  %v628 = vunpack.c.l.b16 %v27
  %v629 = vunpack.c.h.b16 %v27
  %v630 = vunpack.c.l.b16 %v28
  %v631 = vunpack.c.h.b16 %v28
  %v632 = vunpack.c.l.b16 %v29
  %v633 = vunpack.c.h.b16 %v29
  %v634 = vunpack.c.l.b16 %v30
  %v635 = vunpack.c.h.b16 %v30
  %v636 = vunpack.c.l.b16 %v31
  %v637 = vunpack.c.h.b16 %v31
  %v638 = vunpack.c.l.b16 %v32
  %v639 = vunpack.c.h.b16 %v32
  %v640 = vunpack.c.l.b16 %v33
  %v641 = vunpack.c.h.b16 %v33
  %v642 = vunpack.c.l.b16 %v34
  %v643 = vunpack.c.h.b16 %v34
  %v644 = vunpack.c.l.b16 %v35
  %v645 = vunpack.c.h.b16 %v35
  %v646 = vunpack.c.l.b16 %v36
  %v647 = vunpack.c.h.b16 %v36
  %v648 = vunpack.c.l.b16 %v37
  %v649 = vunpack.c.h.b16 %v37
  %v650 = vunpack.c.l.b16 %v38
  %v651 = vunpack.c.h.b16 %v38
  %v652 = vunpack.c.l.b16 %v39
  %v653 = vunpack.c.h.b16 %v39
  %v654 = vunpack.c.l.b16 %v40
  %v655 = vunpack.c.h.b16 %v40
  %v656 = vunpack.c.l.b16 %v41
  %v657 = vunpack.c.h.b16 %v41
  %v658 = vunpack.c.l.b16 %v42
  %v659 = vunpack.c.h.b16 %v42
  %v660 = vunpack.c.l.b16 %v43
  %v661 = vunpack.c.h.b16 %v43
  %v662 = vunpack.c.l.b16 %v44
  %v663 = vunpack.c.h.b16 %v44
  %v664 = vunpack.c.l.b16 %v45
  %v665 = vunpack.c.h.b16 %v45
  %v666 = vunpack.c.l.b16 %v46
  %v667 = vunpack.c.h.b16 %v46
  %v668 = vunpack.c.l.b16 %v47
  %v669 = vunpack.c.h.b16 %v47
  %v670 = vunpack.c.l.b16 %v48
  %v671 = vunpack.c.h.b16 %v48
  %v672 = vunpack.c.l.b16 %v49
  %v673 = vunpack.c.h.b16 %v49
  %v674 = vunpack.c.l.b16 %v50
  %v675 = vunpack.c.h.b16 %v50
  %v676 = vunpack.c.l.b16 %v51
  %v677 = vunpack.c.h.b16 %v51
  %v678 = vunpack.c.l.b16 %v52
  %v679 = vunpack.c.h.b16 %v52
  %v680 = vunpack.c.l.b16 %v53
  %v681 = vunpack.c.h.b16 %v53
  %v682 = vunpack.c.l.b16 %v54
  %v683 = vunpack.c.h.b16 %v54
  %v684 = vunpack.c.l.b16 %v55
  %v685 = vunpack.c.h.b16 %v55
  %v686 = vunpack.c.l.b16 %v56
  %v687 = vunpack.c.h.b16 %v56
  %v688 = vunpack.c.l.b16 %v57
  %v689 = vunpack.c.h.b16 %v57
  %v690 = vunpack.c.l.b16 %v58
  %v691 = vunpack.c.h.b16 %v58
  %v692 = vunpack.c.l.b16 %v59
  %v693 = vunpack.c.h.b16 %v59
  %v694 = vunpack.c.l.b16 %v60
  %v695 = vunpack.c.h.b16 %v60
  %v696 = vunpack.c.l.b16 %v61
  %v697 = vunpack.c.h.b16 %v61
  %v698 = vunpack.c.l.b16 %v62
  %v699 = vunpack.c.h.b16 %v62
  %v700 = vunpack.c.l.b16 %v63
  %v701 = vunpack.c.h.b16 %v63
  %v702 = vunpack.c.l.b16 %v64
  %v703 = vunpack.c.h.b16 %v64
  %v704 = vunpack.c.l.b16 %v65
  %v705 = vunpack.c.h.b16 %v65
  %v706 = vunpack.c.l.b16 %v66
  %v707 = vunpack.c.h.b16 %v66
  %v708 = vunpack.c.l.b16 %v67
  %v709 = vunpack.c.h.b16 %v67
  %v710 = vunpack.c.l.b16 %v68
  %v711 = vunpack.c.h.b16 %v68
  %v712 = vunpack.c.l.b16 %v69
  %v713 = vunpack.c.h.b16 %v69
  %v714 = vunpack.c.l.b16 %v70
  %v715 = vunpack.c.h.b16 %v70
  %v716 = vunpack.c.l.b16 %v71
  %v717 = vunpack.c.h.b16 %v71
  %v718 = vunpack.c.l.b16 %v72
  %v719 = vunpack.c.h.b16 %v72
  %v720 = vunpack.c.l.b16 %v73
  %v721 = vunpack.c.h.b16 %v73
  %v722 = vunpack.c.l.b16 %v74
  %v723 = vunpack.c.h.b16 %v74
  %v724 = vunpack.c.l.b16 %v75
  %v725 = vunpack.c.h.b16 %v75
  %v726 = vunpack.c.l.b16 %v76
  %v727 = vunpack.c.h.b16 %v76
  %v728 = vunpack.c.l.b16 %v77
  %v729 = vunpack.c.h.b16 %v77
  %v730 = vunpack.c.l.b16 %v78
  %v731 = vunpack.c.h.b16 %v78
  %v732 = vunpack.c.l.b16 %v79
  %v733 = vunpack.c.h.b16 %v79
  %v734 = vunpack.c.l.b16 %v80
  %v735 = vunpack.c.h.b16 %v80
  %v736 = vunpack.c.l.b16 %v81
  %v737 = vunpack.c.h.b16 %v81
  %v738 = vunpack.c.l.b16 %v82
  %v739 = vunpack.c.h.b16 %v82
  %v740 = vunpack.c.l.b16 %v83
  %v741 = vunpack.c.h.b16 %v83
  %v742 = vunpack.c.l.b16 %v84
  %v743 = vunpack.c.h.b16 %v84
  %v744 = vunpack.c.l.b16 %v85
  %v745 = vunpack.c.h.b16 %v85
  %v746 = vunpack.c.l.b16 %v86
  %v747 = vunpack.c.h.b16 %v86
  %v748 = vunpack.c.l.b16 %v87
  %v749 = vunpack.c.h.b16 %v87
  %v750 = vunpack.c.l.b16 %v88
  %v751 = vunpack.c.h.b16 %v88
  %v752 = vunpack.c.l.b16 %v89
  %v753 = vunpack.c.h.b16 %v89
  %v754 = vunpack.c.l.b16 %v90
  %v755 = vunpack.c.h.b16 %v90
  %v756 = vunpack.c.l.b16 %v91
  %v757 = vunpack.c.h.b16 %v91
  %v758 = vunpack.c.l.b16 %v92
  %v759 = vunpack.c.h.b16 %v92
  %v760 = vunpack.c.l.b16 %v93
  %v761 = vunpack.c.h.b16 %v93
  %v762 = vunpack.c.l.b16 %v94
  %v763 = vunpack.c.h.b16 %v94
  %v764 = vunpack.c.l.b16 %v95
  %v765 = vunpack.c.h.b16 %v95
  %v766 = vunpack.c.l.b16 %v96
  %v767 = vunpack.c.h.b16 %v96
  %v768 = vunpack.c.l.b16 %v97
  %v769 = vunpack.c.h.b16 %v97
  %v770 = vunpack.c.l.b16 %v98
  %v771 = vunpack.c.h.b16 %v98
  %v772 = vunpack.c.l.b16 %v99
  %v773 = vunpack.c.h.b16 %v99
  %v774 = vunpack.c.l.b16 %v100
  %v775 = vunpack.c.h.b16 %v100
  %v776 = vunpack.c.l.b16 %v101
  %v777 = vunpack.c.h.b16 %v101
  %v778 = vunpack.c.l.b16 %v102
  %v779 = vunpack.c.h.b16 %v102
  %v780 = vunpack.c.l.b16 %v103
  %v781 = vunpack.c.h.b16 %v103
  %v782 = vunpack.c.l.b16 %v104
  %v783 = vunpack.c.h.b16 %v104
  %v784 = vunpack.c.l.b16 %v105
  %v785 = vunpack.c.h.b16 %v105
  %v786 = vunpack.c.l.b16 %v106
  %v787 = vunpack.c.h.b16 %v106
  %v788 = vunpack.c.l.b16 %v107
  %v789 = vunpack.c.h.b16 %v107
  %v790 = vunpack.c.l.b16 %v108
  %v791 = vunpack.c.h.b16 %v108
  %v792 = vunpack.c.l.b16 %v109
  %v793 = vunpack.c.h.b16 %v109
  %v794 = vunpack.c.l.b16 %v110
  %v795 = vunpack.c.h.b16 %v110
  %v796 = vunpack.c.l.b16 %v111
  %v797 = vunpack.c.h.b16 %v111
  %v798 = vunpack.c.l.b16 %v112
  %v799 = vunpack.c.h.b16 %v112
  %v800 = vunpack.c.l.b16 %v113
  %v801 = vunpack.c.h.b16 %v113
  %v802 = vunpack.c.l.b16 %v114
  %v803 = vunpack.c.h.b16 %v114
  %v804 = vunpack.c.l.b16 %v115
  %v805 = vunpack.c.h.b16 %v115
  %v806 = vunpack.c.l.b16 %v116
  %v807 = vunpack.c.h.b16 %v116
  %v808 = vunpack.c.l.b16 %v117
  %v809 = vunpack.c.h.b16 %v117
  %v810 = vunpack.c.l.b16 %v118
  %v811 = vunpack.c.h.b16 %v118
  %v812 = vunpack.c.l.b16 %v119
  %v813 = vunpack.c.h.b16 %v119
  %v814 = vunpack.c.l.b16 %v120
  %v815 = vunpack.c.h.b16 %v120
  %v816 = vunpack.c.l.b16 %v121
  %v817 = vunpack.c.h.b16 %v121
  %v818 = vunpack.c.l.b16 %v122
  %v819 = vunpack.c.h.b16 %v122
  %v820 = vunpack.c.l.b16 %v123
  %v821 = vunpack.c.h.b16 %v123
  %v822 = vunpack.c.l.b16 %v124
  %v823 = vunpack.c.h.b16 %v124
  %v824 = vunpack.c.l.b16 %v125
  %v825 = vunpack.c.h.b16 %v125
  %v826 = vunpack.c.l.b16 %v126
  %v827 = vunpack.c.h.b16 %v126
  %v828 = vunpack.c.l.b16 %v127
  %v829 = vunpack.c.h.b16 %v127
  %v830 = vunpack.c.l.b16 %v128
  %v831 = vunpack.c.h.b16 %v128
  %v832 = vunpack.c.l.b16 %v129
  %v833 = vunpack.c.h.b16 %v129
  %v834 = vunpack.c.l.b16 %v130
  %v835 = vunpack.c.h.b16 %v130
  %v836 = vunpack.c.l.b16 %v131
  %v837 = vunpack.c.h.b16 %v131
  %v838 = vunpack.c.l.b16 %v132
  %v839 = vunpack.c.h.b16 %v132
  %v840 = vunpack.c.l.b16 %v133
  %v841 = vunpack.c.h.b16 %v133
  %v842 = vunpack.c.l.b16 %v134
  %v843 = vunpack.c.h.b16 %v134
  %v844 = vunpack.c.l.b16 %v135
  %v845 = vunpack.c.h.b16 %v135
  %v846 = vunpack.c.l.b16 %v136
  %v847 = vunpack.c.h.b16 %v136
  %v848 = vunpack.c.l.b16 %v137
  %v849 = vunpack.c.h.b16 %v137
  %v850 = vunpack.c.l.b16 %v138
  %v851 = vunpack.c.h.b16 %v138
  %v852 = vunpack.c.l.b16 %v139
  %v853 = vunpack.c.h.b16 %v139
  %v854 = vunpack.c.l.b16 %v140
  %v855 = vunpack.c.h.b16 %v140
  %v856 = vunpack.c.l.b16 %v141
  %v857 = vunpack.c.h.b16 %v141
  %v858 = vunpack.c.l.b16 %v142
  %v859 = vunpack.c.h.b16 %v142
  %v860 = vunpack.c.l.b16 %v143
  %v861 = vunpack.c.h.b16 %v143
  %v862 = vunpack.c.l.b16 %v144
  %v863 = vunpack.c.h.b16 %v144
  %v864 = vunpack.c.l.b16 %v145
  %v865 = vunpack.c.h.b16 %v145
  %v866 = vunpack.c.l.b16 %v146
  %v867 = vunpack.c.h.b16 %v146
  %v868 = vunpack.c.l.b16 %v147
  %v869 = vunpack.c.h.b16 %v147
  %v870 = vunpack.c.l.b16 %v148
  %v871 = vunpack.c.h.b16 %v148
  %v872 = vunpack.c.l.b16 %v149
  %v873 = vunpack.c.h.b16 %v149
  %v874 = vunpack.c.l.b16 %v150
  %v875 = vunpack.c.h.b16 %v150
  %v876 = vunpack.c.l.b16 %v151
  %v877 = vunpack.c.h.b16 %v151
  %v878 = vunpack.c.l.b16 %v152
  %v879 = vunpack.c.h.b16 %v152
  %v880 = vunpack.c.l.b16 %v153
  %v881 = vunpack.c.h.b16 %v153
  %v882 = vunpack.c.l.b16 %v154
  %v883 = vunpack.c.h.b16 %v154
  %v884 = vpack.c.b16 %v636, %v628
  %v885 = vpack.c.b16 %v637, %v629
  %v886 = vpack.c.b16 %v638, %v630
  %v887 = vpack.c.b16 %v639, %v631
  %v888 = vpack.c.b16 %v640, %v632
  %v889 = vpack.c.b16 %v641, %v633
  %v890 = vpack.c.b16 %v642, %v634
  %v891 = vpack.c.b16 %v643, %v635
  %v892 = vpack.c.b16 %v652, %v644
  %v893 = vpack.c.b16 %v653, %v645
  %v894 = vpack.c.b16 %v654, %v646
  %v895 = vpack.c.b16 %v655, %v647
  %v896 = vpack.c.b16 %v656, %v648
  %v897 = vpack.c.b16 %v657, %v649
  %v898 = vpack.c.b16 %v658, %v650
  %v899 = vpack.c.b16 %v659, %v651
  %v900 = vpack.c.b16 %v668, %v660
  %v901 = vpack.c.b16 %v669, %v661
  %v902 = vpack.c.b16 %v670, %v662
  %v903 = vpack.c.b16 %v671, %v663
  %v904 = vpack.c.b16 %v672, %v664
  %v905 = vpack.c.b16 %v673, %v665
  %v906 = vpack.c.b16 %v674, %v666
  %v907 = vpack.c.b16 %v675, %v667
  %v908 = vpack.c.b16 %v684, %v676
  %v909 = vpack.c.b16 %v685, %v677
  %v910 = vpack.c.b16 %v686, %v678
  %v911 = vpack.c.b16 %v687, %v679
  %v912 = vpack.c.b16 %v688, %v680
  %v913 = vpack.c.b16 %v689, %v681
  %v914 = vpack.c.b16 %v690, %v682
  %v915 = vpack.c.b16 %v691, %v683
  %v916 = vpack.c.b16 %v700, %v692
  %v917 = vpack.c.b16 %v701, %v693
  %v918 = vpack.c.b16 %v702, %v694
  %v919 = vpack.c.b16 %v703, %v695
  %v920 = vpack.c.b16 %v704, %v696
  %v921 = vpack.c.b16 %v705, %v697
  %v922 = vpack.c.b16 %v706, %v698
  %v923 = vpack.c.b16 %v707, %v699
  %v924 = vpack.c.b16 %v716, %v708
  %v925 = vpack.c.b16 %v717, %v709
  %v926 = vpack.c.b16 %v718, %v710
  %v927 = vpack.c.b16 %v719, %v711
  %v928 = vpack.c.b16 %v720, %v712
  %v929 = vpack.c.b16 %v721, %v713
  %v930 = vpack.c.b16 %v722, %v714
  %v931 = vpack.c.b16 %v723, %v715
  %v932 = vpack.c.b16 %v732, %v724
  %v933 = vpack.c.b16 %v733, %v725
  %v934 = vpack.c.b16 %v734, %v726
  %v935 = vpack.c.b16 %v735, %v727
  %v936 = vpack.c.b16 %v736, %v728
  %v937 = vpack.c.b16 %v737, %v729
  %v938 = vpack.c.b16 %v738, %v730
  %v939 = vpack.c.b16 %v739, %v731
  %v940 = vpack.c.b16 %v748, %v740
  %v941 = vpack.c.b16 %v749, %v741
  %v942 = vpack.c.b16 %v750, %v742
  %v943 = vpack.c.b16 %v751, %v743
  %v944 = vpack.c.b16 %v752, %v744
  %v945 = vpack.c.b16 %v753, %v745
  %v946 = vpack.c.b16 %v754, %v746
  %v947 = vpack.c.b16 %v755, %v747
  %v948 = vpack.c.b16 %v764, %v756
  %v949 = vpack.c.b16 %v765, %v757
  %v950 = vpack.c.b16 %v766, %v758
  %v951 = vpack.c.b16 %v767, %v759
  %v952 = vpack.c.b16 %v768, %v760
  %v953 = vpack.c.b16 %v769, %v761
  %v954 = vpack.c.b16 %v770, %v762
  %v955 = vpack.c.b16 %v771, %v763
  %v956 = vpack.c.b16 %v780, %v772
  %v957 = vpack.c.b16 %v781, %v773
  %v958 = vpack.c.b16 %v782, %v774
  %v959 = vpack.c.b16 %v783, %v775
  %v960 = vpack.c.b16 %v784, %v776
  %v961 = vpack.c.b16 %v785, %v777
  %v962 = vpack.c.b16 %v786, %v778
  %v963 = vpack.c.b16 %v787, %v779
  %v964 = vpack.c.b16 %v796, %v788
  %v965 = vpack.c.b16 %v797, %v789
  %v966 = vpack.c.b16 %v798, %v790
  %v967 = vpack.c.b16 %v799, %v791
  %v968 = vpack.c.b16 %v800, %v792
  %v969 = vpack.c.b16 %v801, %v793
  %v970 = vpack.c.b16 %v802, %v794
  %v971 = vpack.c.b16 %v803, %v795
  %v972 = vpack.c.b16 %v812, %v804
  %v973 = vpack.c.b16 %v813, %v805
  %v974 = vpack.c.b16 %v814, %v806
  %v975 = vpack.c.b16 %v815, %v807
  %v976 = vpack.c.b16 %v816, %v808
  %v977 = vpack.c.b16 %v817, %v809
  %v978 = vpack.c.b16 %v818, %v810
  %v979 = vpack.c.b16 %v819, %v811
  %v980 = vpack.c.b16 %v828, %v820
  %v981 = vpack.c.b16 %v829, %v821
  %v982 = vpack.c.b16 %v830, %v822
  %v983 = vpack.c.b16 %v831, %v823
  %v984 = vpack.c.b16 %v832, %v824
  %v985 = vpack.c.b16 %v833, %v825
  %v986 = vpack.c.b16 %v834, %v826
  %v987 = vpack.c.b16 %v835, %v827
  %v988 = vpack.c.b16 %v844, %v836
  %v989 = vpack.c.b16 %v845, %v837
  %v990 = vpack.c.b16 %v846, %v838
  %v991 = vpack.c.b16 %v847, %v839
  %v992 = vpack.c.b16 %v848, %v840
  %v993 = vpack.c.b16 %v849, %v841
  %v994 = vpack.c.b16 %v850, %v842
  %v995 = vpack.c.b16 %v851, %v843
  %v996 = vpack.c.b16 %v860, %v852
  %v997 = vpack.c.b16 %v861, %v853
  %v998 = vpack.c.b16 %v862, %v854
  %v999 = vpack.c.b16 %v863, %v855
  %v1000 = vpack.c.b16 %v864, %v856
  %v1001 = vpack.c.b16 %v865, %v857
  %v1002 = vpack.c.b16 %v866, %v858
  %v1003 = vpack.c.b16 %v867, %v859
  %v1004 = vpack.c.b16 %v876, %v868
  %v1005 = vpack.c.b16 %v877, %v869
  %v1006 = vpack.c.b16 %v878, %v870
  %v1007 = vpack.c.b16 %v879, %v871
  %v1008 = vpack.c.b16 %v880, %v872
  %v1009 = vpack.c.b16 %v881, %v873
  %v1010 = vpack.c.b16 %v882, %v874
  %v1011 = vpack.c.b16 %v883, %v875
  %1140 = vmatprep.subr.bf16.mxu0 %v885
  %1141 = vmatpush1.bf16.msra.mxu0 %v884
  %1142 = vmatprep.subr.bf16.mxu0 %v893
  %1143 = vmatpush1.bf16.msra.mxu0 %v892
  %1144 = vmatprep.subr.bf16.mxu0 %v901
  %1145 = vmatpush1.bf16.msra.mxu0 %v900
  %1146 = vmatprep.subr.bf16.mxu0 %v909
  %1147 = vmatpush1.bf16.msra.mxu0 %v908
  %1148 = vmatprep.subr.bf16.mxu0 %v917
  %1149 = vmatpush1.bf16.msra.mxu0 %v916
  %1150 = vmatprep.subr.bf16.mxu0 %v925
  %1151 = vmatpush1.bf16.msra.mxu0 %v924
  %1152 = vmatprep.subr.bf16.mxu0 %v933
  %1153 = vmatpush1.bf16.msra.mxu0 %v932
  %1154 = vmatprep.subr.bf16.mxu0 %v941
  %1155 = vmatpush1.bf16.msra.mxu0 %v940
  %1156 = vmatprep.subr.bf16.mxu0 %v949
  %1157 = vmatpush1.bf16.msra.mxu0 %v948
  %1158 = vmatprep.subr.bf16.mxu0 %v957
  %1159 = vmatpush1.bf16.msra.mxu0 %v956
  %1160 = vmatprep.subr.bf16.mxu0 %v965
  %1161 = vmatpush1.bf16.msra.mxu0 %v964
  %1162 = vmatprep.subr.bf16.mxu0 %v973
  %1163 = vmatpush1.bf16.msra.mxu0 %v972
  %1164 = vmatprep.subr.bf16.mxu0 %v981
  %1165 = vmatpush1.bf16.msra.mxu0 %v980
  %1166 = vmatprep.subr.bf16.mxu0 %v989
  %1167 = vmatpush1.bf16.msra.mxu0 %v988
  %1168 = vmatprep.subr.bf16.mxu0 %v997
  %1169 = vmatpush1.bf16.msra.mxu0 %v996
  %1170 = vmatprep.subr.bf16.mxu0 %v1005
  %1171 = vmatpush1.bf16.msra.mxu0 %v1004
  %1172 = vmatprep.mubr.bf16.mxu0 0
  %1173 = vmatmul.mubr.bf16.gmra.mrb[0].mxu0 %v499
  %v1174 = vpop.f32.mrb[0].mxu0
  %v1175 = vadd.f32 0.0, %v1174
  %v1176 = vpop.f32.mrb[0].mxu0
  %v1177 = vadd.f32 0.0, %v1176
  %v1178 = vpop.f32.mrb[0].mxu0
  %v1179 = vpop.f32.mrb[0].mxu0
  %1180 = vdwg.mxu0
  %1181 = vmatprep.subr.bf16.mxu0 %v887
  %1182 = vmatpush1.bf16.msra.mxu0 %v886
  %1183 = vmatprep.subr.bf16.mxu0 %v895
  %1184 = vmatpush1.bf16.msra.mxu0 %v894
  %1185 = vmatprep.subr.bf16.mxu0 %v903
  %1186 = vmatpush1.bf16.msra.mxu0 %v902
  %1187 = vmatprep.subr.bf16.mxu0 %v911
  %1188 = vmatpush1.bf16.msra.mxu0 %v910
  %1189 = vmatprep.subr.bf16.mxu0 %v919
  %1190 = vmatpush1.bf16.msra.mxu0 %v918
  %1191 = vmatprep.subr.bf16.mxu0 %v927
  %1192 = vmatpush1.bf16.msra.mxu0 %v926
  %1193 = vmatprep.subr.bf16.mxu0 %v935
  %1194 = vmatpush1.bf16.msra.mxu0 %v934
  %1195 = vmatprep.subr.bf16.mxu0 %v943
  %1196 = vmatpush1.bf16.msra.mxu0 %v942
  %1197 = vmatprep.subr.bf16.mxu0 %v951
  %1198 = vmatpush1.bf16.msra.mxu0 %v950
  %1199 = vmatprep.subr.bf16.mxu0 %v959
  %1200 = vmatpush1.bf16.msra.mxu0 %v958
  %1201 = vmatprep.subr.bf16.mxu0 %v967
  %1202 = vmatpush1.bf16.msra.mxu0 %v966
  %1203 = vmatprep.subr.bf16.mxu0 %v975
  %1204 = vmatpush1.bf16.msra.mxu0 %v974
  %1205 = vmatprep.subr.bf16.mxu0 %v983
  %1206 = vmatpush1.bf16.msra.mxu0 %v982
  %1207 = vmatprep.subr.bf16.mxu0 %v991
  %1208 = vmatpush1.bf16.msra.mxu0 %v990
  %1209 = vmatprep.subr.bf16.mxu0 %v999
  %1210 = vmatpush1.bf16.msra.mxu0 %v998
  %1211 = vmatprep.subr.bf16.mxu0 %v1007
  %1212 = vmatpush1.bf16.msra.mxu0 %v1006
  %1213 = vmatprep.mubr.bf16.mxu0 0
  %1214 = vmatmul.mubr.bf16.gmra.mrb[0].mxu0 %v499
  %v1215 = vpop.f32.mrb[0].mxu0
  %v1216 = vadd.f32 0.0, %v1215
  %v1217 = vpop.f32.mrb[0].mxu0
  %v1218 = vadd.f32 0.0, %v1217
  %v1219 = vpop.f32.mrb[0].mxu0
  %v1220 = vpop.f32.mrb[0].mxu0
  %1221 = vdwg.mxu0
  %1222 = vmatprep.subr.bf16.mxu0 %v889
  %1223 = vmatpush1.bf16.msra.mxu0 %v888
  %1224 = vmatprep.subr.bf16.mxu0 %v897
  %1225 = vmatpush1.bf16.msra.mxu0 %v896
  %1226 = vmatprep.subr.bf16.mxu0 %v905
  %1227 = vmatpush1.bf16.msra.mxu0 %v904
  %1228 = vmatprep.subr.bf16.mxu0 %v913
  %1229 = vmatpush1.bf16.msra.mxu0 %v912
  %1230 = vmatprep.subr.bf16.mxu0 %v921
  %1231 = vmatpush1.bf16.msra.mxu0 %v920
  %1232 = vmatprep.subr.bf16.mxu0 %v929
  %1233 = vmatpush1.bf16.msra.mxu0 %v928
  %1234 = vmatprep.subr.bf16.mxu0 %v937
  %1235 = vmatpush1.bf16.msra.mxu0 %v936
  %1236 = vmatprep.subr.bf16.mxu0 %v945
  %1237 = vmatpush1.bf16.msra.mxu0 %v944
  %1238 = vmatprep.subr.bf16.mxu0 %v953
  %1239 = vmatpush1.bf16.msra.mxu0 %v952
  %1240 = vmatprep.subr.bf16.mxu0 %v961
  %1241 = vmatpush1.bf16.msra.mxu0 %v960
  %1242 = vmatprep.subr.bf16.mxu0 %v969
  %1243 = vmatpush1.bf16.msra.mxu0 %v968
  %1244 = vmatprep.subr.bf16.mxu0 %v977
  %1245 = vmatpush1.bf16.msra.mxu0 %v976
  %1246 = vmatprep.subr.bf16.mxu0 %v985
  %1247 = vmatpush1.bf16.msra.mxu0 %v984
  %1248 = vmatprep.subr.bf16.mxu0 %v993
  %1249 = vmatpush1.bf16.msra.mxu0 %v992
  %1250 = vmatprep.subr.bf16.mxu0 %v1001
  %1251 = vmatpush1.bf16.msra.mxu0 %v1000
  %1252 = vmatprep.subr.bf16.mxu0 %v1009
  %1253 = vmatpush1.bf16.msra.mxu0 %v1008
  %1254 = vmatprep.mubr.bf16.mxu0 0
  %1255 = vmatmul.mubr.bf16.gmra.mrb[0].mxu0 %v499
  %v1256 = vpop.f32.mrb[0].mxu0
  %v1257 = vadd.f32 0.0, %v1256
  %v1258 = vpop.f32.mrb[0].mxu0
  %v1259 = vadd.f32 0.0, %v1258
  %v1260 = vpop.f32.mrb[0].mxu0
  %v1261 = vpop.f32.mrb[0].mxu0
  %1262 = vdwg.mxu0
  %1263 = vmatprep.subr.bf16.mxu0 %v891
  %1264 = vmatpush1.bf16.msra.mxu0 %v890
  %1265 = vmatprep.subr.bf16.mxu0 %v899
  %1266 = vmatpush1.bf16.msra.mxu0 %v898
  %1267 = vmatprep.subr.bf16.mxu0 %v907
  %1268 = vmatpush1.bf16.msra.mxu0 %v906
  %1269 = vmatprep.subr.bf16.mxu0 %v915
  %1270 = vmatpush1.bf16.msra.mxu0 %v914
  %1271 = vmatprep.subr.bf16.mxu0 %v923
  %1272 = vmatpush1.bf16.msra.mxu0 %v922
  %1273 = vmatprep.subr.bf16.mxu0 %v931
  %1274 = vmatpush1.bf16.msra.mxu0 %v930
  %1275 = vmatprep.subr.bf16.mxu0 %v939
  %1276 = vmatpush1.bf16.msra.mxu0 %v938
  %1277 = vmatprep.subr.bf16.mxu0 %v947
  %1278 = vmatpush1.bf16.msra.mxu0 %v946
  %1279 = vmatprep.subr.bf16.mxu0 %v955
  %1280 = vmatpush1.bf16.msra.mxu0 %v954
  %1281 = vmatprep.subr.bf16.mxu0 %v963
  %1282 = vmatpush1.bf16.msra.mxu0 %v962
  %1283 = vmatprep.subr.bf16.mxu0 %v971
  %1284 = vmatpush1.bf16.msra.mxu0 %v970
  %1285 = vmatprep.subr.bf16.mxu0 %v979
  %1286 = vmatpush1.bf16.msra.mxu0 %v978
  %1287 = vmatprep.subr.bf16.mxu0 %v987
  %1288 = vmatpush1.bf16.msra.mxu0 %v986
  %1289 = vmatprep.subr.bf16.mxu0 %v995
  %1290 = vmatpush1.bf16.msra.mxu0 %v994
  %1291 = vmatprep.subr.bf16.mxu0 %v1003
  %1292 = vmatpush1.bf16.msra.mxu0 %v1002
  %1293 = vmatprep.subr.bf16.mxu0 %v1011
  %1294 = vmatpush1.bf16.msra.mxu0 %v1010
  %1295 = vmatprep.mubr.bf16.mxu0 0
  %1296 = vmatmul.mubr.bf16.gmra.mrb[0].mxu0 %v499
  %v1297 = vpop.f32.mrb[0].mxu0
  %v1298 = vadd.f32 0.0, %v1297
  %v1299 = vpop.f32.mrb[0].mxu0
  %v1300 = vadd.f32 0.0, %v1299
  %v1301 = vpop.f32.mrb[0].mxu0
  %v1302 = vpop.f32.mrb[0].mxu0
  %1303 = vdwg.mxu0
  %v1304 = vadd.f32 %v1175, %v464
  %v1305 = vadd.f32 %v1177, %v468
  %v1306 = vadd.f32 %v1216, %v472
  %v1307 = vadd.f32 %v1218, %v476
  %v1308 = vmul.f32 %v1304, 0.5
  %v1309 = vtanh.pop %v1308
  %v1310 = vmul.f32 %v1309, 0.5
  %v1311 = vadd.f32 %v1310, 0.5
  %v1312 = vmul.f32 %v1305, 0.5
  %v1313 = vtanh.pop %v1312
  %v1314 = vmul.f32 %v1313, 0.5
  %v1315 = vadd.f32 %v1314, 0.5
  %v1316 = vtanh.pop %v1306
  %v1317 = vmul.f32 %v1307, 0.5
  %v1318 = vtanh.pop %v1317
  %v1319 = vmul.f32 %v1318, 0.5
  %v1320 = vadd.f32 %v1319, 0.5
  %v1321 = vmul.f32 %v1315, 0.0
  %v1322 = vmul.f32 %v1311, %v1316
  %v1323 = vadd.f32 %v1321, %v1322
  %v1324 = vtanh.pop %v1323
  %v1325 = vmul.f32 %v1320, %v1324
  %v1326 = vadd.f32 %v431, %v1257
  %v1327 = vadd.f32 %v432, %v1259
  %v1328 = vadd.f32 %v433, %v1298
  %v1329 = vadd.f32 %v434, %v1300
  %v1330 = vmul.f32 %v1326, 0.5
  %v1331 = vtanh.pop %v1330
  %v1332 = vmul.f32 %v1331, 0.5
  %v1333 = vadd.f32 %v1332, 0.5
  %v1334 = vmul.f32 %v1327, 0.5
  %v1335 = vtanh.pop %v1334
  %v1336 = vmul.f32 %v1335, 0.5
  %v1337 = vadd.f32 %v1336, 0.5
  %v1338 = vtanh.pop %v1328
  %v1339 = vmul.f32 %v1329, 0.5
  %v1340 = vtanh.pop %v1339
  %v1341 = vmul.f32 %v1340, 0.5
  %v1342 = vadd.f32 %v1341, 0.5
  %v1343 = vmul.f32 %v1337, %v496
  %v1344 = vmul.f32 %v1333, %v1338
  %v1345 = vadd.f32 %v1343, %v1344
  %v1346 = vtanh.pop %v1345
  %v1347 = vmul.f32 %v1342, %v1346
  %v1348 = vpack.c.bf16 %v1347, %v1347
  %v1349 = vpack.c.bf16 %v1325, %v1325
  %1350 = vmatprep.subr.bf16.mxu0 %v885
  %1351 = vmatpush1.bf16.msra.mxu0 %v884
  %1352 = vmatprep.subr.bf16.mxu0 %v893
  %1353 = vmatpush1.bf16.msra.mxu0 %v892
  %1354 = vmatprep.subr.bf16.mxu0 %v901
  %1355 = vmatpush1.bf16.msra.mxu0 %v900
  %1356 = vmatprep.subr.bf16.mxu0 %v909
  %1357 = vmatpush1.bf16.msra.mxu0 %v908
  %1358 = vmatprep.subr.bf16.mxu0 %v917
  %1359 = vmatpush1.bf16.msra.mxu0 %v916
  %1360 = vmatprep.subr.bf16.mxu0 %v925
  %1361 = vmatpush1.bf16.msra.mxu0 %v924
  %1362 = vmatprep.subr.bf16.mxu0 %v933
  %1363 = vmatpush1.bf16.msra.mxu0 %v932
  %1364 = vmatprep.subr.bf16.mxu0 %v941
  %1365 = vmatpush1.bf16.msra.mxu0 %v940
  %1366 = vmatprep.subr.bf16.mxu0 %v949
  %1367 = vmatpush1.bf16.msra.mxu0 %v948
  %1368 = vmatprep.subr.bf16.mxu0 %v957
  %1369 = vmatpush1.bf16.msra.mxu0 %v956
  %1370 = vmatprep.subr.bf16.mxu0 %v965
  %1371 = vmatpush1.bf16.msra.mxu0 %v964
  %1372 = vmatprep.subr.bf16.mxu0 %v973
  %1373 = vmatpush1.bf16.msra.mxu0 %v972
  %1374 = vmatprep.subr.bf16.mxu0 %v981
  %1375 = vmatpush1.bf16.msra.mxu0 %v980
  %1376 = vmatprep.subr.bf16.mxu0 %v989
  %1377 = vmatpush1.bf16.msra.mxu0 %v988
  %1378 = vmatprep.subr.bf16.mxu0 %v997
  %1379 = vmatpush1.bf16.msra.mxu0 %v996
  %1380 = vmatprep.subr.bf16.mxu0 %v1005
  %1381 = vmatpush1.bf16.msra.mxu0 %v1004
  %1382 = vmatprep.mubr.bf16.mxu0 %v1349
  %1383 = vmatmul.mubr.bf16.gmra.mrb[0].mxu0 %v1348
  %v1384 = vpop.f32.mrb[0].mxu0
  %v1385 = vadd.f32 0.0, %v1384
  %v1386 = vpop.f32.mrb[0].mxu0
  %v1387 = vadd.f32 0.0, %v1386
  %v1388 = vpop.f32.mrb[0].mxu0
  %v1389 = vpop.f32.mrb[0].mxu0
  %1390 = vdwg.mxu0
  %1391 = vmatprep.subr.bf16.mxu0 %v887
  %1392 = vmatpush1.bf16.msra.mxu0 %v886
  %1393 = vmatprep.subr.bf16.mxu0 %v895
  %1394 = vmatpush1.bf16.msra.mxu0 %v894
  %1395 = vmatprep.subr.bf16.mxu0 %v903
  %1396 = vmatpush1.bf16.msra.mxu0 %v902
  %1397 = vmatprep.subr.bf16.mxu0 %v911
  %1398 = vmatpush1.bf16.msra.mxu0 %v910
  %1399 = vmatprep.subr.bf16.mxu0 %v919
  %1400 = vmatpush1.bf16.msra.mxu0 %v918
  %1401 = vmatprep.subr.bf16.mxu0 %v927
  %1402 = vmatpush1.bf16.msra.mxu0 %v926
  %1403 = vmatprep.subr.bf16.mxu0 %v935
  %1404 = vmatpush1.bf16.msra.mxu0 %v934
  %1405 = vmatprep.subr.bf16.mxu0 %v943
  %1406 = vmatpush1.bf16.msra.mxu0 %v942
  %1407 = vmatprep.subr.bf16.mxu0 %v951
  %1408 = vmatpush1.bf16.msra.mxu0 %v950
  %1409 = vmatprep.subr.bf16.mxu0 %v959
  %1410 = vmatpush1.bf16.msra.mxu0 %v958
  %1411 = vmatprep.subr.bf16.mxu0 %v967
  %1412 = vmatpush1.bf16.msra.mxu0 %v966
  %1413 = vmatprep.subr.bf16.mxu0 %v975
  %1414 = vmatpush1.bf16.msra.mxu0 %v974
  %1415 = vmatprep.subr.bf16.mxu0 %v983
  %1416 = vmatpush1.bf16.msra.mxu0 %v982
  %1417 = vmatprep.subr.bf16.mxu0 %v991
  %1418 = vmatpush1.bf16.msra.mxu0 %v990
  %1419 = vmatprep.subr.bf16.mxu0 %v999
  %1420 = vmatpush1.bf16.msra.mxu0 %v998
  %1421 = vmatprep.subr.bf16.mxu0 %v1007
  %1422 = vmatpush1.bf16.msra.mxu0 %v1006
  %1423 = vmatprep.mubr.bf16.mxu0 %v1349
  %1424 = vmatmul.mubr.bf16.gmra.mrb[0].mxu0 %v1348
  %v1425 = vpop.f32.mrb[0].mxu0
  %v1426 = vadd.f32 0.0, %v1425
  %v1427 = vpop.f32.mrb[0].mxu0
  %v1428 = vadd.f32 0.0, %v1427
  %v1429 = vpop.f32.mrb[0].mxu0
  %v1430 = vpop.f32.mrb[0].mxu0
  %1431 = vdwg.mxu0
  %1432 = vmatprep.subr.bf16.mxu0 %v889
  %1433 = vmatpush1.bf16.msra.mxu0 %v888
  %1434 = vmatprep.subr.bf16.mxu0 %v897
  %1435 = vmatpush1.bf16.msra.mxu0 %v896
  %1436 = vmatprep.subr.bf16.mxu0 %v905
  %1437 = vmatpush1.bf16.msra.mxu0 %v904
  %1438 = vmatprep.subr.bf16.mxu0 %v913
  %1439 = vmatpush1.bf16.msra.mxu0 %v912
  %1440 = vmatprep.subr.bf16.mxu0 %v921
  %1441 = vmatpush1.bf16.msra.mxu0 %v920
  %1442 = vmatprep.subr.bf16.mxu0 %v929
  %1443 = vmatpush1.bf16.msra.mxu0 %v928
  %1444 = vmatprep.subr.bf16.mxu0 %v937
  %1445 = vmatpush1.bf16.msra.mxu0 %v936
  %1446 = vmatprep.subr.bf16.mxu0 %v945
  %1447 = vmatpush1.bf16.msra.mxu0 %v944
  %1448 = vmatprep.subr.bf16.mxu0 %v953
  %1449 = vmatpush1.bf16.msra.mxu0 %v952
  %1450 = vmatprep.subr.bf16.mxu0 %v961
  %1451 = vmatpush1.bf16.msra.mxu0 %v960
  %1452 = vmatprep.subr.bf16.mxu0 %v969
  %1453 = vmatpush1.bf16.msra.mxu0 %v968
  %1454 = vmatprep.subr.bf16.mxu0 %v977
  %1455 = vmatpush1.bf16.msra.mxu0 %v976
  %1456 = vmatprep.subr.bf16.mxu0 %v985
  %1457 = vmatpush1.bf16.msra.mxu0 %v984
  %1458 = vmatprep.subr.bf16.mxu0 %v993
  %1459 = vmatpush1.bf16.msra.mxu0 %v992
  %1460 = vmatprep.subr.bf16.mxu0 %v1001
  %1461 = vmatpush1.bf16.msra.mxu0 %v1000
  %1462 = vmatprep.subr.bf16.mxu0 %v1009
  %1463 = vmatpush1.bf16.msra.mxu0 %v1008
  %1464 = vmatprep.mubr.bf16.mxu0 %v1349
  %1465 = vmatmul.mubr.bf16.gmra.mrb[0].mxu0 %v1348
  %v1466 = vpop.f32.mrb[0].mxu0
  %v1467 = vadd.f32 0.0, %v1466
  %v1468 = vpop.f32.mrb[0].mxu0
  %v1469 = vadd.f32 0.0, %v1468
  %v1470 = vpop.f32.mrb[0].mxu0
  %v1471 = vpop.f32.mrb[0].mxu0
  %1472 = vdwg.mxu0
  %1473 = vmatprep.subr.bf16.mxu0 %v891
  %1474 = vmatpush1.bf16.msra.mxu0 %v890
  %1475 = vmatprep.subr.bf16.mxu0 %v899
  %1476 = vmatpush1.bf16.msra.mxu0 %v898
  %1477 = vmatprep.subr.bf16.mxu0 %v907
  %1478 = vmatpush1.bf16.msra.mxu0 %v906
  %1479 = vmatprep.subr.bf16.mxu0 %v915
  %1480 = vmatpush1.bf16.msra.mxu0 %v914
  %1481 = vmatprep.subr.bf16.mxu0 %v923
  %1482 = vmatpush1.bf16.msra.mxu0 %v922
  %1483 = vmatprep.subr.bf16.mxu0 %v931
  %1484 = vmatpush1.bf16.msra.mxu0 %v930
  %1485 = vmatprep.subr.bf16.mxu0 %v939
  %1486 = vmatpush1.bf16.msra.mxu0 %v938
  %1487 = vmatprep.subr.bf16.mxu0 %v947
  %1488 = vmatpush1.bf16.msra.mxu0 %v946
  %1489 = vmatprep.subr.bf16.mxu0 %v955
  %1490 = vmatpush1.bf16.msra.mxu0 %v954
  %1491 = vmatprep.subr.bf16.mxu0 %v963
  %1492 = vmatpush1.bf16.msra.mxu0 %v962
  %1493 = vmatprep.subr.bf16.mxu0 %v971
  %1494 = vmatpush1.bf16.msra.mxu0 %v970
  %1495 = vmatprep.subr.bf16.mxu0 %v979
  %1496 = vmatpush1.bf16.msra.mxu0 %v978
  %1497 = vmatprep.subr.bf16.mxu0 %v987
  %1498 = vmatpush1.bf16.msra.mxu0 %v986
  %1499 = vmatprep.subr.bf16.mxu0 %v995
  %1500 = vmatpush1.bf16.msra.mxu0 %v994
  %1501 = vmatprep.subr.bf16.mxu0 %v1003
  %1502 = vmatpush1.bf16.msra.mxu0 %v1002
  %1503 = vmatprep.subr.bf16.mxu0 %v1011
  %1504 = vmatpush1.bf16.msra.mxu0 %v1010
  %1505 = vmatprep.mubr.bf16.mxu0 %v1349
  %1506 = vmatmul.mubr.bf16.gmra.mrb[0].mxu0 %v1348
  %v1507 = vpop.f32.mrb[0].mxu0
  %v1508 = vadd.f32 0.0, %v1507
  %v1509 = vpop.f32.mrb[0].mxu0
  %v1510 = vadd.f32 0.0, %v1509
  %v1511 = vpop.f32.mrb[0].mxu0
  %v1512 = vpop.f32.mrb[0].mxu0
  %1513 = vdwg.mxu0
  %v1514 = vadd.f32 %v1385, %v464
  %v1515 = vadd.f32 %v1387, %v468
  %v1516 = vadd.f32 %v1426, %v472
  %v1517 = vadd.f32 %v1428, %v476
  %v1518 = vmul.f32 %v1514, 0.5
  %v1519 = vtanh.pop %v1518
  %v1520 = vmul.f32 %v1519, 0.5
  %v1521 = vadd.f32 %v1520, 0.5
  %v1522 = vmul.f32 %v1515, 0.5
  %v1523 = vtanh.pop %v1522
  %v1524 = vmul.f32 %v1523, 0.5
  %v1525 = vadd.f32 %v1524, 0.5
  %v1526 = vtanh.pop %v1516
  %v1527 = vmul.f32 %v1517, 0.5
  %v1528 = vtanh.pop %v1527
  %v1529 = vmul.f32 %v1528, 0.5
  %v1530 = vadd.f32 %v1529, 0.5
  %v1531 = vmul.f32 %v1525, %v1323
  %v1532 = vmul.f32 %v1521, %v1526
  %v1533 = vadd.f32 %v1531, %v1532
  %v1534 = vtanh.pop %v1533
  %v1535 = vmul.f32 %v1530, %v1534
  %v1536 = vadd.f32 %v435, %v1467
  %v1537 = vadd.f32 %v436, %v1469
  %v1538 = vadd.f32 %v437, %v1508
  %v1539 = vadd.f32 %v438, %v1510
  %v1540 = vmul.f32 %v1536, 0.5
  %v1541 = vtanh.pop %v1540
  %v1542 = vmul.f32 %v1541, 0.5
  %v1543 = vadd.f32 %v1542, 0.5
  %v1544 = vmul.f32 %v1537, 0.5
  %v1545 = vtanh.pop %v1544
  %v1546 = vmul.f32 %v1545, 0.5
  %v1547 = vadd.f32 %v1546, 0.5
  %v1548 = vtanh.pop %v1538
  %v1549 = vmul.f32 %v1539, 0.5
  %v1550 = vtanh.pop %v1549
  %v1551 = vmul.f32 %v1550, 0.5
  %v1552 = vadd.f32 %v1551, 0.5
  %v1553 = vmul.f32 %v1547, %v1345
  %v1554 = vmul.f32 %v1543, %v1548
  %v1555 = vadd.f32 %v1553, %v1554
  %v1556 = vtanh.pop %v1555
  %v1557 = vmul.f32 %v1552, %v1556
  %v1558 = vpack.c.bf16 %v1557, %v1557
  %v1559 = vpack.c.bf16 %v1535, %v1535
  %1560 = vmatprep.subr.bf16.mxu0 %v885
  %1561 = vmatpush1.bf16.msra.mxu0 %v884
  %1562 = vmatprep.subr.bf16.mxu0 %v893
  %1563 = vmatpush1.bf16.msra.mxu0 %v892
  %1564 = vmatprep.subr.bf16.mxu0 %v901
  %1565 = vmatpush1.bf16.msra.mxu0 %v900
  %1566 = vmatprep.subr.bf16.mxu0 %v909
  %1567 = vmatpush1.bf16.msra.mxu0 %v908
  %1568 = vmatprep.subr.bf16.mxu0 %v917
  %1569 = vmatpush1.bf16.msra.mxu0 %v916
  %1570 = vmatprep.subr.bf16.mxu0 %v925
  %1571 = vmatpush1.bf16.msra.mxu0 %v924
  %1572 = vmatprep.subr.bf16.mxu0 %v933
  %1573 = vmatpush1.bf16.msra.mxu0 %v932
  %1574 = vmatprep.subr.bf16.mxu0 %v941
  %1575 = vmatpush1.bf16.msra.mxu0 %v940
  %1576 = vmatprep.subr.bf16.mxu0 %v949
  %1577 = vmatpush1.bf16.msra.mxu0 %v948
  %1578 = vmatprep.subr.bf16.mxu0 %v957
  %1579 = vmatpush1.bf16.msra.mxu0 %v956
  %1580 = vmatprep.subr.bf16.mxu0 %v965
  %1581 = vmatpush1.bf16.msra.mxu0 %v964
  %1582 = vmatprep.subr.bf16.mxu0 %v973
  %1583 = vmatpush1.bf16.msra.mxu0 %v972
  %1584 = vmatprep.subr.bf16.mxu0 %v981
  %1585 = vmatpush1.bf16.msra.mxu0 %v980
  %1586 = vmatprep.subr.bf16.mxu0 %v989
  %1587 = vmatpush1.bf16.msra.mxu0 %v988
  %1588 = vmatprep.subr.bf16.mxu0 %v997
  %1589 = vmatpush1.bf16.msra.mxu0 %v996
  %1590 = vmatprep.subr.bf16.mxu0 %v1005
  %1591 = vmatpush1.bf16.msra.mxu0 %v1004
  %1592 = vmatprep.mubr.bf16.mxu0 %v1559
  %1593 = vmatmul.mubr.bf16.gmra.mrb[0].mxu0 %v1558
  %v1594 = vpop.f32.mrb[0].mxu0
  %v1595 = vadd.f32 0.0, %v1594
  %v1596 = vpop.f32.mrb[0].mxu0
  %v1597 = vadd.f32 0.0, %v1596
  %v1598 = vpop.f32.mrb[0].mxu0
  %v1599 = vpop.f32.mrb[0].mxu0
  %1600 = vdwg.mxu0
  %1601 = vmatprep.subr.bf16.mxu0 %v887
  %1602 = vmatpush1.bf16.msra.mxu0 %v886
  %1603 = vmatprep.subr.bf16.mxu0 %v895
  %1604 = vmatpush1.bf16.msra.mxu0 %v894
  %1605 = vmatprep.subr.bf16.mxu0 %v903
  %1606 = vmatpush1.bf16.msra.mxu0 %v902
  %1607 = vmatprep.subr.bf16.mxu0 %v911
  %1608 = vmatpush1.bf16.msra.mxu0 %v910
  %1609 = vmatprep.subr.bf16.mxu0 %v919
  %1610 = vmatpush1.bf16.msra.mxu0 %v918
  %1611 = vmatprep.subr.bf16.mxu0 %v927
  %1612 = vmatpush1.bf16.msra.mxu0 %v926
  %1613 = vmatprep.subr.bf16.mxu0 %v935
  %1614 = vmatpush1.bf16.msra.mxu0 %v934
  %1615 = vmatprep.subr.bf16.mxu0 %v943
  %1616 = vmatpush1.bf16.msra.mxu0 %v942
  %1617 = vmatprep.subr.bf16.mxu0 %v951
  %1618 = vmatpush1.bf16.msra.mxu0 %v950
  %1619 = vmatprep.subr.bf16.mxu0 %v959
  %1620 = vmatpush1.bf16.msra.mxu0 %v958
  %1621 = vmatprep.subr.bf16.mxu0 %v967
  %1622 = vmatpush1.bf16.msra.mxu0 %v966
  %1623 = vmatprep.subr.bf16.mxu0 %v975
  %1624 = vmatpush1.bf16.msra.mxu0 %v974
  %1625 = vmatprep.subr.bf16.mxu0 %v983
  %1626 = vmatpush1.bf16.msra.mxu0 %v982
  %1627 = vmatprep.subr.bf16.mxu0 %v991
  %1628 = vmatpush1.bf16.msra.mxu0 %v990
  %1629 = vmatprep.subr.bf16.mxu0 %v999
  %1630 = vmatpush1.bf16.msra.mxu0 %v998
  %1631 = vmatprep.subr.bf16.mxu0 %v1007
  %1632 = vmatpush1.bf16.msra.mxu0 %v1006
  %1633 = vmatprep.mubr.bf16.mxu0 %v1559
  %1634 = vmatmul.mubr.bf16.gmra.mrb[0].mxu0 %v1558
  %v1635 = vpop.f32.mrb[0].mxu0
  %v1636 = vadd.f32 0.0, %v1635
  %v1637 = vpop.f32.mrb[0].mxu0
  %v1638 = vadd.f32 0.0, %v1637
  %v1639 = vpop.f32.mrb[0].mxu0
  %v1640 = vpop.f32.mrb[0].mxu0
  %1641 = vdwg.mxu0
  %1642 = vmatprep.subr.bf16.mxu0 %v889
  %1643 = vmatpush1.bf16.msra.mxu0 %v888
  %1644 = vmatprep.subr.bf16.mxu0 %v897
  %1645 = vmatpush1.bf16.msra.mxu0 %v896
  %1646 = vmatprep.subr.bf16.mxu0 %v905
  %1647 = vmatpush1.bf16.msra.mxu0 %v904
  %1648 = vmatprep.subr.bf16.mxu0 %v913
  %1649 = vmatpush1.bf16.msra.mxu0 %v912
  %1650 = vmatprep.subr.bf16.mxu0 %v921
  %1651 = vmatpush1.bf16.msra.mxu0 %v920
  %1652 = vmatprep.subr.bf16.mxu0 %v929
  %1653 = vmatpush1.bf16.msra.mxu0 %v928
  %1654 = vmatprep.subr.bf16.mxu0 %v937
  %1655 = vmatpush1.bf16.msra.mxu0 %v936
  %1656 = vmatprep.subr.bf16.mxu0 %v945
  %1657 = vmatpush1.bf16.msra.mxu0 %v944
  %1658 = vmatprep.subr.bf16.mxu0 %v953
  %1659 = vmatpush1.bf16.msra.mxu0 %v952
  %1660 = vmatprep.subr.bf16.mxu0 %v961
  %1661 = vmatpush1.bf16.msra.mxu0 %v960
  %1662 = vmatprep.subr.bf16.mxu0 %v969
  %1663 = vmatpush1.bf16.msra.mxu0 %v968
  %1664 = vmatprep.subr.bf16.mxu0 %v977
  %1665 = vmatpush1.bf16.msra.mxu0 %v976
  %1666 = vmatprep.subr.bf16.mxu0 %v985
  %1667 = vmatpush1.bf16.msra.mxu0 %v984
  %1668 = vmatprep.subr.bf16.mxu0 %v993
  %1669 = vmatpush1.bf16.msra.mxu0 %v992
  %1670 = vmatprep.subr.bf16.mxu0 %v1001
  %1671 = vmatpush1.bf16.msra.mxu0 %v1000
  %1672 = vmatprep.subr.bf16.mxu0 %v1009
  %1673 = vmatpush1.bf16.msra.mxu0 %v1008
  %1674 = vmatprep.mubr.bf16.mxu0 %v1559
  %1675 = vmatmul.mubr.bf16.gmra.mrb[0].mxu0 %v1558
  %v1676 = vpop.f32.mrb[0].mxu0
  %v1677 = vadd.f32 0.0, %v1676
  %v1678 = vpop.f32.mrb[0].mxu0
  %v1679 = vadd.f32 0.0, %v1678
  %v1680 = vpop.f32.mrb[0].mxu0
  %v1681 = vpop.f32.mrb[0].mxu0
  %1682 = vdwg.mxu0
  %1683 = vmatprep.subr.bf16.mxu0 %v891
  %1684 = vmatpush1.bf16.msra.mxu0 %v890
  %1685 = vmatprep.subr.bf16.mxu0 %v899
  %1686 = vmatpush1.bf16.msra.mxu0 %v898
  %1687 = vmatprep.subr.bf16.mxu0 %v907
  %1688 = vmatpush1.bf16.msra.mxu0 %v906
  %1689 = vmatprep.subr.bf16.mxu0 %v915
  %1690 = vmatpush1.bf16.msra.mxu0 %v914
  %1691 = vmatprep.subr.bf16.mxu0 %v923
  %1692 = vmatpush1.bf16.msra.mxu0 %v922
  %1693 = vmatprep.subr.bf16.mxu0 %v931
  %1694 = vmatpush1.bf16.msra.mxu0 %v930
  %1695 = vmatprep.subr.bf16.mxu0 %v939
  %1696 = vmatpush1.bf16.msra.mxu0 %v938
  %1697 = vmatprep.subr.bf16.mxu0 %v947
  %1698 = vmatpush1.bf16.msra.mxu0 %v946
  %1699 = vmatprep.subr.bf16.mxu0 %v955
  %1700 = vmatpush1.bf16.msra.mxu0 %v954
  %1701 = vmatprep.subr.bf16.mxu0 %v963
  %1702 = vmatpush1.bf16.msra.mxu0 %v962
  %1703 = vmatprep.subr.bf16.mxu0 %v971
  %1704 = vmatpush1.bf16.msra.mxu0 %v970
  %1705 = vmatprep.subr.bf16.mxu0 %v979
  %1706 = vmatpush1.bf16.msra.mxu0 %v978
  %1707 = vmatprep.subr.bf16.mxu0 %v987
  %1708 = vmatpush1.bf16.msra.mxu0 %v986
  %1709 = vmatprep.subr.bf16.mxu0 %v995
  %1710 = vmatpush1.bf16.msra.mxu0 %v994
  %1711 = vmatprep.subr.bf16.mxu0 %v1003
  %1712 = vmatpush1.bf16.msra.mxu0 %v1002
  %1713 = vmatprep.subr.bf16.mxu0 %v1011
  %1714 = vmatpush1.bf16.msra.mxu0 %v1010
  %1715 = vmatprep.mubr.bf16.mxu0 %v1559
  %1716 = vmatmul.mubr.bf16.gmra.mrb[0].mxu0 %v1558
  %v1717 = vpop.f32.mrb[0].mxu0
  %v1718 = vadd.f32 0.0, %v1717
  %v1719 = vpop.f32.mrb[0].mxu0
  %v1720 = vadd.f32 0.0, %v1719
  %v1721 = vpop.f32.mrb[0].mxu0
  %v1722 = vpop.f32.mrb[0].mxu0
  %1723 = vdwg.mxu0
  %v1724 = vadd.f32 %v1595, %v464
  %v1725 = vadd.f32 %v1597, %v468
  %v1726 = vadd.f32 %v1636, %v472
  %v1727 = vadd.f32 %v1638, %v476
  %v1728 = vmul.f32 %v1724, 0.5
  %v1729 = vtanh.pop %v1728
  %v1730 = vmul.f32 %v1729, 0.5
  %v1731 = vadd.f32 %v1730, 0.5
  %v1732 = vmul.f32 %v1725, 0.5
  %v1733 = vtanh.pop %v1732
  %v1734 = vmul.f32 %v1733, 0.5
  %v1735 = vadd.f32 %v1734, 0.5
  %v1736 = vtanh.pop %v1726
  %v1737 = vmul.f32 %v1727, 0.5
  %v1738 = vtanh.pop %v1737
  %v1739 = vmul.f32 %v1738, 0.5
  %v1740 = vadd.f32 %v1739, 0.5
  %v1741 = vmul.f32 %v1735, %v1533
  %v1742 = vmul.f32 %v1731, %v1736
  %v1743 = vadd.f32 %v1741, %v1742
  %v1744 = vtanh.pop %v1743
  %v1745 = vmul.f32 %v1740, %v1744
  %v1746 = vadd.f32 %v439, %v1677
  %v1747 = vadd.f32 %v440, %v1679
  %v1748 = vadd.f32 %v441, %v1718
  %v1749 = vadd.f32 %v442, %v1720
  %v1750 = vmul.f32 %v1746, 0.5
  %v1751 = vtanh.pop %v1750
  %v1752 = vmul.f32 %v1751, 0.5
  %v1753 = vadd.f32 %v1752, 0.5
  %v1754 = vmul.f32 %v1747, 0.5
  %v1755 = vtanh.pop %v1754
  %v1756 = vmul.f32 %v1755, 0.5
  %v1757 = vadd.f32 %v1756, 0.5
  %v1758 = vtanh.pop %v1748
  %v1759 = vmul.f32 %v1749, 0.5
  %v1760 = vtanh.pop %v1759
  %v1761 = vmul.f32 %v1760, 0.5
  %v1762 = vadd.f32 %v1761, 0.5
  %v1763 = vmul.f32 %v1757, %v1555
  %v1764 = vmul.f32 %v1753, %v1758
  %v1765 = vadd.f32 %v1763, %v1764
  %v1766 = vtanh.pop %v1765
  %v1767 = vmul.f32 %v1762, %v1766
  %v1768 = vpack.c.bf16 %v1767, %v1767
  %v1769 = vpack.c.bf16 %v1745, %v1745
  %1770 = vmatprep.subr.bf16.mxu0 %v885
  %1771 = vmatpush1.bf16.msra.mxu0 %v884
  %1772 = vmatprep.subr.bf16.mxu0 %v893
  %1773 = vmatpush1.bf16.msra.mxu0 %v892
  %1774 = vmatprep.subr.bf16.mxu0 %v901
  %1775 = vmatpush1.bf16.msra.mxu0 %v900
  %1776 = vmatprep.subr.bf16.mxu0 %v909
  %1777 = vmatpush1.bf16.msra.mxu0 %v908
  %1778 = vmatprep.subr.bf16.mxu0 %v917
  %1779 = vmatpush1.bf16.msra.mxu0 %v916
  %1780 = vmatprep.subr.bf16.mxu0 %v925
  %1781 = vmatpush1.bf16.msra.mxu0 %v924
  %1782 = vmatprep.subr.bf16.mxu0 %v933
  %1783 = vmatpush1.bf16.msra.mxu0 %v932
  %1784 = vmatprep.subr.bf16.mxu0 %v941
  %1785 = vmatpush1.bf16.msra.mxu0 %v940
  %1786 = vmatprep.subr.bf16.mxu0 %v949
  %1787 = vmatpush1.bf16.msra.mxu0 %v948
  %1788 = vmatprep.subr.bf16.mxu0 %v957
  %1789 = vmatpush1.bf16.msra.mxu0 %v956
  %1790 = vmatprep.subr.bf16.mxu0 %v965
  %1791 = vmatpush1.bf16.msra.mxu0 %v964
  %1792 = vmatprep.subr.bf16.mxu0 %v973
  %1793 = vmatpush1.bf16.msra.mxu0 %v972
  %1794 = vmatprep.subr.bf16.mxu0 %v981
  %1795 = vmatpush1.bf16.msra.mxu0 %v980
  %1796 = vmatprep.subr.bf16.mxu0 %v989
  %1797 = vmatpush1.bf16.msra.mxu0 %v988
  %1798 = vmatprep.subr.bf16.mxu0 %v997
  %1799 = vmatpush1.bf16.msra.mxu0 %v996
  %1800 = vmatprep.subr.bf16.mxu0 %v1005
  %1801 = vmatpush1.bf16.msra.mxu0 %v1004
  %1802 = vmatprep.mubr.bf16.mxu0 %v1769
  %1803 = vmatmul.mubr.bf16.gmra.mrb[0].mxu0 %v1768
  %v1804 = vpop.f32.mrb[0].mxu0
  %v1805 = vadd.f32 0.0, %v1804
  %v1806 = vpop.f32.mrb[0].mxu0
  %v1807 = vadd.f32 0.0, %v1806
  %v1808 = vpop.f32.mrb[0].mxu0
  %v1809 = vpop.f32.mrb[0].mxu0
  %1810 = vdwg.mxu0
  %1811 = vmatprep.subr.bf16.mxu0 %v887
  %1812 = vmatpush1.bf16.msra.mxu0 %v886
  %1813 = vmatprep.subr.bf16.mxu0 %v895
  %1814 = vmatpush1.bf16.msra.mxu0 %v894
  %1815 = vmatprep.subr.bf16.mxu0 %v903
  %1816 = vmatpush1.bf16.msra.mxu0 %v902
  %1817 = vmatprep.subr.bf16.mxu0 %v911
  %1818 = vmatpush1.bf16.msra.mxu0 %v910
  %1819 = vmatprep.subr.bf16.mxu0 %v919
  %1820 = vmatpush1.bf16.msra.mxu0 %v918
  %1821 = vmatprep.subr.bf16.mxu0 %v927
  %1822 = vmatpush1.bf16.msra.mxu0 %v926
  %1823 = vmatprep.subr.bf16.mxu0 %v935
  %1824 = vmatpush1.bf16.msra.mxu0 %v934
  %1825 = vmatprep.subr.bf16.mxu0 %v943
  %1826 = vmatpush1.bf16.msra.mxu0 %v942
  %1827 = vmatprep.subr.bf16.mxu0 %v951
  %1828 = vmatpush1.bf16.msra.mxu0 %v950
  %1829 = vmatprep.subr.bf16.mxu0 %v959
  %1830 = vmatpush1.bf16.msra.mxu0 %v958
  %1831 = vmatprep.subr.bf16.mxu0 %v967
  %1832 = vmatpush1.bf16.msra.mxu0 %v966
  %1833 = vmatprep.subr.bf16.mxu0 %v975
  %1834 = vmatpush1.bf16.msra.mxu0 %v974
  %1835 = vmatprep.subr.bf16.mxu0 %v983
  %1836 = vmatpush1.bf16.msra.mxu0 %v982
  %1837 = vmatprep.subr.bf16.mxu0 %v991
  %1838 = vmatpush1.bf16.msra.mxu0 %v990
  %1839 = vmatprep.subr.bf16.mxu0 %v999
  %1840 = vmatpush1.bf16.msra.mxu0 %v998
  %1841 = vmatprep.subr.bf16.mxu0 %v1007
  %1842 = vmatpush1.bf16.msra.mxu0 %v1006
  %1843 = vmatprep.mubr.bf16.mxu0 %v1769
  %1844 = vmatmul.mubr.bf16.gmra.mrb[0].mxu0 %v1768
  %v1845 = vpop.f32.mrb[0].mxu0
  %v1846 = vadd.f32 0.0, %v1845
  %v1847 = vpop.f32.mrb[0].mxu0
  %v1848 = vadd.f32 0.0, %v1847
  %v1849 = vpop.f32.mrb[0].mxu0
  %v1850 = vpop.f32.mrb[0].mxu0
  %1851 = vdwg.mxu0
  %1852 = vmatprep.subr.bf16.mxu0 %v889
  %1853 = vmatpush1.bf16.msra.mxu0 %v888
  %1854 = vmatprep.subr.bf16.mxu0 %v897
  %1855 = vmatpush1.bf16.msra.mxu0 %v896
  %1856 = vmatprep.subr.bf16.mxu0 %v905
  %1857 = vmatpush1.bf16.msra.mxu0 %v904
  %1858 = vmatprep.subr.bf16.mxu0 %v913
  %1859 = vmatpush1.bf16.msra.mxu0 %v912
  %1860 = vmatprep.subr.bf16.mxu0 %v921
  %1861 = vmatpush1.bf16.msra.mxu0 %v920
  %1862 = vmatprep.subr.bf16.mxu0 %v929
  %1863 = vmatpush1.bf16.msra.mxu0 %v928
  %1864 = vmatprep.subr.bf16.mxu0 %v937
  %1865 = vmatpush1.bf16.msra.mxu0 %v936
  %1866 = vmatprep.subr.bf16.mxu0 %v945
  %1867 = vmatpush1.bf16.msra.mxu0 %v944
  %1868 = vmatprep.subr.bf16.mxu0 %v953
  %1869 = vmatpush1.bf16.msra.mxu0 %v952
  %1870 = vmatprep.subr.bf16.mxu0 %v961
  %1871 = vmatpush1.bf16.msra.mxu0 %v960
  %1872 = vmatprep.subr.bf16.mxu0 %v969
  %1873 = vmatpush1.bf16.msra.mxu0 %v968
  %1874 = vmatprep.subr.bf16.mxu0 %v977
  %1875 = vmatpush1.bf16.msra.mxu0 %v976
  %1876 = vmatprep.subr.bf16.mxu0 %v985
  %1877 = vmatpush1.bf16.msra.mxu0 %v984
  %1878 = vmatprep.subr.bf16.mxu0 %v993
  %1879 = vmatpush1.bf16.msra.mxu0 %v992
  %1880 = vmatprep.subr.bf16.mxu0 %v1001
  %1881 = vmatpush1.bf16.msra.mxu0 %v1000
  %1882 = vmatprep.subr.bf16.mxu0 %v1009
  %1883 = vmatpush1.bf16.msra.mxu0 %v1008
  %1884 = vmatprep.mubr.bf16.mxu0 %v1769
  %1885 = vmatmul.mubr.bf16.gmra.mrb[0].mxu0 %v1768
  %v1886 = vpop.f32.mrb[0].mxu0
  %v1887 = vadd.f32 0.0, %v1886
  %v1888 = vpop.f32.mrb[0].mxu0
  %v1889 = vadd.f32 0.0, %v1888
  %v1890 = vpop.f32.mrb[0].mxu0
  %v1891 = vpop.f32.mrb[0].mxu0
  %1892 = vdwg.mxu0
  %1893 = vmatprep.subr.bf16.mxu0 %v891
  %1894 = vmatpush1.bf16.msra.mxu0 %v890
  %1895 = vmatprep.subr.bf16.mxu0 %v899
  %1896 = vmatpush1.bf16.msra.mxu0 %v898
  %1897 = vmatprep.subr.bf16.mxu0 %v907
  %1898 = vmatpush1.bf16.msra.mxu0 %v906
  %1899 = vmatprep.subr.bf16.mxu0 %v915
  %1900 = vmatpush1.bf16.msra.mxu0 %v914
  %1901 = vmatprep.subr.bf16.mxu0 %v923
  %1902 = vmatpush1.bf16.msra.mxu0 %v922
  %1903 = vmatprep.subr.bf16.mxu0 %v931
  %1904 = vmatpush1.bf16.msra.mxu0 %v930
  %1905 = vmatprep.subr.bf16.mxu0 %v939
  %1906 = vmatpush1.bf16.msra.mxu0 %v938
  %1907 = vmatprep.subr.bf16.mxu0 %v947
  %1908 = vmatpush1.bf16.msra.mxu0 %v946
  %1909 = vmatprep.subr.bf16.mxu0 %v955
  %1910 = vmatpush1.bf16.msra.mxu0 %v954
  %1911 = vmatprep.subr.bf16.mxu0 %v963
  %1912 = vmatpush1.bf16.msra.mxu0 %v962
  %1913 = vmatprep.subr.bf16.mxu0 %v971
  %1914 = vmatpush1.bf16.msra.mxu0 %v970
  %1915 = vmatprep.subr.bf16.mxu0 %v979
  %1916 = vmatpush1.bf16.msra.mxu0 %v978
  %1917 = vmatprep.subr.bf16.mxu0 %v987
  %1918 = vmatpush1.bf16.msra.mxu0 %v986
  %1919 = vmatprep.subr.bf16.mxu0 %v995
  %1920 = vmatpush1.bf16.msra.mxu0 %v994
  %1921 = vmatprep.subr.bf16.mxu0 %v1003
  %1922 = vmatpush1.bf16.msra.mxu0 %v1002
  %1923 = vmatprep.subr.bf16.mxu0 %v1011
  %1924 = vmatpush1.bf16.msra.mxu0 %v1010
  %1925 = vmatprep.mubr.bf16.mxu0 %v1769
  %1926 = vmatmul.mubr.bf16.gmra.mrb[0].mxu0 %v1768
  %v1927 = vpop.f32.mrb[0].mxu0
  %v1928 = vadd.f32 0.0, %v1927
  %v1929 = vpop.f32.mrb[0].mxu0
  %v1930 = vadd.f32 0.0, %v1929
  %v1931 = vpop.f32.mrb[0].mxu0
  %v1932 = vpop.f32.mrb[0].mxu0
  %1933 = vdwg.mxu0
  %v1934 = vadd.f32 %v1805, %v464
  %v1935 = vadd.f32 %v1807, %v468
  %v1936 = vadd.f32 %v1846, %v472
  %v1937 = vadd.f32 %v1848, %v476
  %v1938 = vmul.f32 %v1934, 0.5
  %v1939 = vtanh.pop %v1938
  %v1940 = vmul.f32 %v1939, 0.5
  %v1941 = vadd.f32 %v1940, 0.5
  %v1942 = vmul.f32 %v1935, 0.5
  %v1943 = vtanh.pop %v1942
  %v1944 = vmul.f32 %v1943, 0.5
  %v1945 = vadd.f32 %v1944, 0.5
  %v1946 = vtanh.pop %v1936
  %v1947 = vmul.f32 %v1937, 0.5
  %v1948 = vtanh.pop %v1947
  %v1949 = vmul.f32 %v1948, 0.5
  %v1950 = vadd.f32 %v1949, 0.5
  %v1951 = vmul.f32 %v1945, %v1743
  %v1952 = vmul.f32 %v1941, %v1946
  %v1953 = vadd.f32 %v1951, %v1952
  %v1954 = vtanh.pop %v1953
  %v1955 = vmul.f32 %v1950, %v1954
  %v1956 = vadd.f32 %v443, %v1887
  %v1957 = vadd.f32 %v444, %v1889
  %v1958 = vadd.f32 %v445, %v1928
  %v1959 = vadd.f32 %v446, %v1930
  %v1960 = vmul.f32 %v1956, 0.5
  %v1961 = vtanh.pop %v1960
  %v1962 = vmul.f32 %v1961, 0.5
  %v1963 = vadd.f32 %v1962, 0.5
  %v1964 = vmul.f32 %v1957, 0.5
  %v1965 = vtanh.pop %v1964
  %v1966 = vmul.f32 %v1965, 0.5
  %v1967 = vadd.f32 %v1966, 0.5
  %v1968 = vtanh.pop %v1958
  %v1969 = vmul.f32 %v1959, 0.5
  %v1970 = vtanh.pop %v1969
  %v1971 = vmul.f32 %v1970, 0.5
  %v1972 = vadd.f32 %v1971, 0.5
  %v1973 = vmul.f32 %v1967, %v1765
  %v1974 = vmul.f32 %v1963, %v1968
  %v1975 = vadd.f32 %v1973, %v1974
  %v1976 = vtanh.pop %v1975
  %v1977 = vmul.f32 %v1972, %v1976
  %v1978 = vpack.c.bf16 %v1977, %v1977
  %v1979 = vpack.c.bf16 %v1955, %v1955
  %1980 = vmatprep.subr.bf16.mxu0 %v885
  %1981 = vmatpush1.bf16.msra.mxu0 %v884
  %1982 = vmatprep.subr.bf16.mxu0 %v893
  %1983 = vmatpush1.bf16.msra.mxu0 %v892
  %1984 = vmatprep.subr.bf16.mxu0 %v901
  %1985 = vmatpush1.bf16.msra.mxu0 %v900
  %1986 = vmatprep.subr.bf16.mxu0 %v909
  %1987 = vmatpush1.bf16.msra.mxu0 %v908
  %1988 = vmatprep.subr.bf16.mxu0 %v917
  %1989 = vmatpush1.bf16.msra.mxu0 %v916
  %1990 = vmatprep.subr.bf16.mxu0 %v925
  %1991 = vmatpush1.bf16.msra.mxu0 %v924
  %1992 = vmatprep.subr.bf16.mxu0 %v933
  %1993 = vmatpush1.bf16.msra.mxu0 %v932
  %1994 = vmatprep.subr.bf16.mxu0 %v941
  %1995 = vmatpush1.bf16.msra.mxu0 %v940
  %1996 = vmatprep.subr.bf16.mxu0 %v949
  %1997 = vmatpush1.bf16.msra.mxu0 %v948
  %1998 = vmatprep.subr.bf16.mxu0 %v957
  %1999 = vmatpush1.bf16.msra.mxu0 %v956
  %2000 = vmatprep.subr.bf16.mxu0 %v965
  %2001 = vmatpush1.bf16.msra.mxu0 %v964
  %2002 = vmatprep.subr.bf16.mxu0 %v973
  %2003 = vmatpush1.bf16.msra.mxu0 %v972
  %2004 = vmatprep.subr.bf16.mxu0 %v981
  %2005 = vmatpush1.bf16.msra.mxu0 %v980
  %2006 = vmatprep.subr.bf16.mxu0 %v989
  %2007 = vmatpush1.bf16.msra.mxu0 %v988
  %2008 = vmatprep.subr.bf16.mxu0 %v997
  %2009 = vmatpush1.bf16.msra.mxu0 %v996
  %2010 = vmatprep.subr.bf16.mxu0 %v1005
  %2011 = vmatpush1.bf16.msra.mxu0 %v1004
  %2012 = vmatprep.mubr.bf16.mxu0 %v1979
  %2013 = vmatmul.mubr.bf16.gmra.mrb[0].mxu0 %v1978
  %v2014 = vpop.f32.mrb[0].mxu0
  %v2015 = vadd.f32 0.0, %v2014
  %v2016 = vpop.f32.mrb[0].mxu0
  %v2017 = vadd.f32 0.0, %v2016
  %v2018 = vpop.f32.mrb[0].mxu0
  %v2019 = vpop.f32.mrb[0].mxu0
  %2020 = vdwg.mxu0
  %2021 = vmatprep.subr.bf16.mxu0 %v887
  %2022 = vmatpush1.bf16.msra.mxu0 %v886
  %2023 = vmatprep.subr.bf16.mxu0 %v895
  %2024 = vmatpush1.bf16.msra.mxu0 %v894
  %2025 = vmatprep.subr.bf16.mxu0 %v903
  %2026 = vmatpush1.bf16.msra.mxu0 %v902
  %2027 = vmatprep.subr.bf16.mxu0 %v911
  %2028 = vmatpush1.bf16.msra.mxu0 %v910
  %2029 = vmatprep.subr.bf16.mxu0 %v919
  %2030 = vmatpush1.bf16.msra.mxu0 %v918
  %2031 = vmatprep.subr.bf16.mxu0 %v927
  %2032 = vmatpush1.bf16.msra.mxu0 %v926
  %2033 = vmatprep.subr.bf16.mxu0 %v935
  %2034 = vmatpush1.bf16.msra.mxu0 %v934
  %2035 = vmatprep.subr.bf16.mxu0 %v943
  %2036 = vmatpush1.bf16.msra.mxu0 %v942
  %2037 = vmatprep.subr.bf16.mxu0 %v951
  %2038 = vmatpush1.bf16.msra.mxu0 %v950
  %2039 = vmatprep.subr.bf16.mxu0 %v959
  %2040 = vmatpush1.bf16.msra.mxu0 %v958
  %2041 = vmatprep.subr.bf16.mxu0 %v967
  %2042 = vmatpush1.bf16.msra.mxu0 %v966
  %2043 = vmatprep.subr.bf16.mxu0 %v975
  %2044 = vmatpush1.bf16.msra.mxu0 %v974
  %2045 = vmatprep.subr.bf16.mxu0 %v983
  %2046 = vmatpush1.bf16.msra.mxu0 %v982
  %2047 = vmatprep.subr.bf16.mxu0 %v991
  %2048 = vmatpush1.bf16.msra.mxu0 %v990
  %2049 = vmatprep.subr.bf16.mxu0 %v999
  %2050 = vmatpush1.bf16.msra.mxu0 %v998
  %2051 = vmatprep.subr.bf16.mxu0 %v1007
  %2052 = vmatpush1.bf16.msra.mxu0 %v1006
  %2053 = vmatprep.mubr.bf16.mxu0 %v1979
  %2054 = vmatmul.mubr.bf16.gmra.mrb[0].mxu0 %v1978
  %v2055 = vpop.f32.mrb[0].mxu0
  %v2056 = vadd.f32 0.0, %v2055
  %v2057 = vpop.f32.mrb[0].mxu0
  %v2058 = vadd.f32 0.0, %v2057
  %v2059 = vpop.f32.mrb[0].mxu0
  %v2060 = vpop.f32.mrb[0].mxu0
  %2061 = vdwg.mxu0
  %2062 = vmatprep.subr.bf16.mxu0 %v889
  %2063 = vmatpush1.bf16.msra.mxu0 %v888
  %2064 = vmatprep.subr.bf16.mxu0 %v897
  %2065 = vmatpush1.bf16.msra.mxu0 %v896
  %2066 = vmatprep.subr.bf16.mxu0 %v905
  %2067 = vmatpush1.bf16.msra.mxu0 %v904
  %2068 = vmatprep.subr.bf16.mxu0 %v913
  %2069 = vmatpush1.bf16.msra.mxu0 %v912
  %2070 = vmatprep.subr.bf16.mxu0 %v921
  %2071 = vmatpush1.bf16.msra.mxu0 %v920
  %2072 = vmatprep.subr.bf16.mxu0 %v929
  %2073 = vmatpush1.bf16.msra.mxu0 %v928
  %2074 = vmatprep.subr.bf16.mxu0 %v937
  %2075 = vmatpush1.bf16.msra.mxu0 %v936
  %2076 = vmatprep.subr.bf16.mxu0 %v945
  %2077 = vmatpush1.bf16.msra.mxu0 %v944
  %2078 = vmatprep.subr.bf16.mxu0 %v953
  %2079 = vmatpush1.bf16.msra.mxu0 %v952
  %2080 = vmatprep.subr.bf16.mxu0 %v961
  %2081 = vmatpush1.bf16.msra.mxu0 %v960
  %2082 = vmatprep.subr.bf16.mxu0 %v969
  %2083 = vmatpush1.bf16.msra.mxu0 %v968
  %2084 = vmatprep.subr.bf16.mxu0 %v977
  %2085 = vmatpush1.bf16.msra.mxu0 %v976
  %2086 = vmatprep.subr.bf16.mxu0 %v985
  %2087 = vmatpush1.bf16.msra.mxu0 %v984
  %2088 = vmatprep.subr.bf16.mxu0 %v993
  %2089 = vmatpush1.bf16.msra.mxu0 %v992
  %2090 = vmatprep.subr.bf16.mxu0 %v1001
  %2091 = vmatpush1.bf16.msra.mxu0 %v1000
  %2092 = vmatprep.subr.bf16.mxu0 %v1009
  %2093 = vmatpush1.bf16.msra.mxu0 %v1008
  %2094 = vmatprep.mubr.bf16.mxu0 %v1979
  %2095 = vmatmul.mubr.bf16.gmra.mrb[0].mxu0 %v1978
  %v2096 = vpop.f32.mrb[0].mxu0
  %v2097 = vadd.f32 0.0, %v2096
  %v2098 = vpop.f32.mrb[0].mxu0
  %v2099 = vadd.f32 0.0, %v2098
  %v2100 = vpop.f32.mrb[0].mxu0
  %v2101 = vpop.f32.mrb[0].mxu0
  %2102 = vdwg.mxu0
  %2103 = vmatprep.subr.bf16.mxu0 %v891
  %2104 = vmatpush1.bf16.msra.mxu0 %v890
  %2105 = vmatprep.subr.bf16.mxu0 %v899
  %2106 = vmatpush1.bf16.msra.mxu0 %v898
  %2107 = vmatprep.subr.bf16.mxu0 %v907
  %2108 = vmatpush1.bf16.msra.mxu0 %v906
  %2109 = vmatprep.subr.bf16.mxu0 %v915
  %2110 = vmatpush1.bf16.msra.mxu0 %v914
  %2111 = vmatprep.subr.bf16.mxu0 %v923
  %2112 = vmatpush1.bf16.msra.mxu0 %v922
  %2113 = vmatprep.subr.bf16.mxu0 %v931
  %2114 = vmatpush1.bf16.msra.mxu0 %v930
  %2115 = vmatprep.subr.bf16.mxu0 %v939
  %2116 = vmatpush1.bf16.msra.mxu0 %v938
  %2117 = vmatprep.subr.bf16.mxu0 %v947
  %2118 = vmatpush1.bf16.msra.mxu0 %v946
  %2119 = vmatprep.subr.bf16.mxu0 %v955
  %2120 = vmatpush1.bf16.msra.mxu0 %v954
  %2121 = vmatprep.subr.bf16.mxu0 %v963
  %2122 = vmatpush1.bf16.msra.mxu0 %v962
  %2123 = vmatprep.subr.bf16.mxu0 %v971
  %2124 = vmatpush1.bf16.msra.mxu0 %v970
  %2125 = vmatprep.subr.bf16.mxu0 %v979
  %2126 = vmatpush1.bf16.msra.mxu0 %v978
  %2127 = vmatprep.subr.bf16.mxu0 %v987
  %2128 = vmatpush1.bf16.msra.mxu0 %v986
  %2129 = vmatprep.subr.bf16.mxu0 %v995
  %2130 = vmatpush1.bf16.msra.mxu0 %v994
  %2131 = vmatprep.subr.bf16.mxu0 %v1003
  %2132 = vmatpush1.bf16.msra.mxu0 %v1002
  %2133 = vmatprep.subr.bf16.mxu0 %v1011
  %2134 = vmatpush1.bf16.msra.mxu0 %v1010
  %2135 = vmatprep.mubr.bf16.mxu0 %v1979
  %2136 = vmatmul.mubr.bf16.gmra.mrb[0].mxu0 %v1978
  %v2137 = vpop.f32.mrb[0].mxu0
  %v2138 = vadd.f32 0.0, %v2137
  %v2139 = vpop.f32.mrb[0].mxu0
  %v2140 = vadd.f32 0.0, %v2139
  %v2141 = vpop.f32.mrb[0].mxu0
  %v2142 = vpop.f32.mrb[0].mxu0
  %2143 = vdwg.mxu0
  %v2144 = vadd.f32 %v2015, %v464
  %v2145 = vadd.f32 %v2017, %v468
  %v2146 = vadd.f32 %v2056, %v472
  %v2147 = vadd.f32 %v2058, %v476
  %v2148 = vmul.f32 %v2144, 0.5
  %v2149 = vtanh.pop %v2148
  %v2150 = vmul.f32 %v2149, 0.5
  %v2151 = vadd.f32 %v2150, 0.5
  %v2152 = vmul.f32 %v2145, 0.5
  %v2153 = vtanh.pop %v2152
  %v2154 = vmul.f32 %v2153, 0.5
  %v2155 = vadd.f32 %v2154, 0.5
  %v2156 = vtanh.pop %v2146
  %v2157 = vmul.f32 %v2147, 0.5
  %v2158 = vtanh.pop %v2157
  %v2159 = vmul.f32 %v2158, 0.5
  %v2160 = vadd.f32 %v2159, 0.5
  %v2161 = vmul.f32 %v2155, %v1953
  %v2162 = vmul.f32 %v2151, %v2156
  %v2163 = vadd.f32 %v2161, %v2162
  %v2164 = vtanh.pop %v2163
  %v2165 = vmul.f32 %v2160, %v2164
  %v2166 = vadd.f32 %v447, %v2097
  %v2167 = vadd.f32 %v448, %v2099
  %v2168 = vadd.f32 %v449, %v2138
  %v2169 = vadd.f32 %v450, %v2140
  %v2170 = vmul.f32 %v2166, 0.5
  %v2171 = vtanh.pop %v2170
  %v2172 = vmul.f32 %v2171, 0.5
  %v2173 = vadd.f32 %v2172, 0.5
  %v2174 = vmul.f32 %v2167, 0.5
  %v2175 = vtanh.pop %v2174
  %v2176 = vmul.f32 %v2175, 0.5
  %v2177 = vadd.f32 %v2176, 0.5
  %v2178 = vtanh.pop %v2168
  %v2179 = vmul.f32 %v2169, 0.5
  %v2180 = vtanh.pop %v2179
  %v2181 = vmul.f32 %v2180, 0.5
  %v2182 = vadd.f32 %v2181, 0.5
  %v2183 = vmul.f32 %v2177, %v1975
  %v2184 = vmul.f32 %v2173, %v2178
  %v2185 = vadd.f32 %v2183, %v2184
  %v2186 = vtanh.pop %v2185
  %v2187 = vmul.f32 %v2182, %v2186
  %v2188 = vpack.c.bf16 %v2187, %v2187
  %v2189 = vpack.c.bf16 %v2165, %v2165
  %2190 = vmatprep.subr.bf16.mxu0 %v885
  %2191 = vmatpush1.bf16.msra.mxu0 %v884
  %2192 = vmatprep.subr.bf16.mxu0 %v893
  %2193 = vmatpush1.bf16.msra.mxu0 %v892
  %2194 = vmatprep.subr.bf16.mxu0 %v901
  %2195 = vmatpush1.bf16.msra.mxu0 %v900
  %2196 = vmatprep.subr.bf16.mxu0 %v909
  %2197 = vmatpush1.bf16.msra.mxu0 %v908
  %2198 = vmatprep.subr.bf16.mxu0 %v917
  %2199 = vmatpush1.bf16.msra.mxu0 %v916
  %2200 = vmatprep.subr.bf16.mxu0 %v925
  %2201 = vmatpush1.bf16.msra.mxu0 %v924
  %2202 = vmatprep.subr.bf16.mxu0 %v933
  %2203 = vmatpush1.bf16.msra.mxu0 %v932
  %2204 = vmatprep.subr.bf16.mxu0 %v941
  %2205 = vmatpush1.bf16.msra.mxu0 %v940
  %2206 = vmatprep.subr.bf16.mxu0 %v949
  %2207 = vmatpush1.bf16.msra.mxu0 %v948
  %2208 = vmatprep.subr.bf16.mxu0 %v957
  %2209 = vmatpush1.bf16.msra.mxu0 %v956
  %2210 = vmatprep.subr.bf16.mxu0 %v965
  %2211 = vmatpush1.bf16.msra.mxu0 %v964
  %2212 = vmatprep.subr.bf16.mxu0 %v973
  %2213 = vmatpush1.bf16.msra.mxu0 %v972
  %2214 = vmatprep.subr.bf16.mxu0 %v981
  %2215 = vmatpush1.bf16.msra.mxu0 %v980
  %2216 = vmatprep.subr.bf16.mxu0 %v989
  %2217 = vmatpush1.bf16.msra.mxu0 %v988
  %2218 = vmatprep.subr.bf16.mxu0 %v997
  %2219 = vmatpush1.bf16.msra.mxu0 %v996
  %2220 = vmatprep.subr.bf16.mxu0 %v1005
  %2221 = vmatpush1.bf16.msra.mxu0 %v1004
  %2222 = vmatprep.mubr.bf16.mxu0 %v2189
  %2223 = vmatmul.mubr.bf16.gmra.mrb[0].mxu0 %v2188
  %v2224 = vpop.f32.mrb[0].mxu0
  %v2225 = vadd.f32 0.0, %v2224
  %v2226 = vpop.f32.mrb[0].mxu0
  %v2227 = vadd.f32 0.0, %v2226
  %v2228 = vpop.f32.mrb[0].mxu0
  %v2229 = vpop.f32.mrb[0].mxu0
  %2230 = vdwg.mxu0
  %2231 = vmatprep.subr.bf16.mxu0 %v887
  %2232 = vmatpush1.bf16.msra.mxu0 %v886
  %2233 = vmatprep.subr.bf16.mxu0 %v895
  %2234 = vmatpush1.bf16.msra.mxu0 %v894
  %2235 = vmatprep.subr.bf16.mxu0 %v903
  %2236 = vmatpush1.bf16.msra.mxu0 %v902
  %2237 = vmatprep.subr.bf16.mxu0 %v911
  %2238 = vmatpush1.bf16.msra.mxu0 %v910
  %2239 = vmatprep.subr.bf16.mxu0 %v919
  %2240 = vmatpush1.bf16.msra.mxu0 %v918
  %2241 = vmatprep.subr.bf16.mxu0 %v927
  %2242 = vmatpush1.bf16.msra.mxu0 %v926
  %2243 = vmatprep.subr.bf16.mxu0 %v935
  %2244 = vmatpush1.bf16.msra.mxu0 %v934
  %2245 = vmatprep.subr.bf16.mxu0 %v943
  %2246 = vmatpush1.bf16.msra.mxu0 %v942
  %2247 = vmatprep.subr.bf16.mxu0 %v951
  %2248 = vmatpush1.bf16.msra.mxu0 %v950
  %2249 = vmatprep.subr.bf16.mxu0 %v959
  %2250 = vmatpush1.bf16.msra.mxu0 %v958
  %2251 = vmatprep.subr.bf16.mxu0 %v967
  %2252 = vmatpush1.bf16.msra.mxu0 %v966
  %2253 = vmatprep.subr.bf16.mxu0 %v975
  %2254 = vmatpush1.bf16.msra.mxu0 %v974
  %2255 = vmatprep.subr.bf16.mxu0 %v983
  %2256 = vmatpush1.bf16.msra.mxu0 %v982
  %2257 = vmatprep.subr.bf16.mxu0 %v991
  %2258 = vmatpush1.bf16.msra.mxu0 %v990
  %2259 = vmatprep.subr.bf16.mxu0 %v999
  %2260 = vmatpush1.bf16.msra.mxu0 %v998
  %2261 = vmatprep.subr.bf16.mxu0 %v1007
  %2262 = vmatpush1.bf16.msra.mxu0 %v1006
  %2263 = vmatprep.mubr.bf16.mxu0 %v2189
  %2264 = vmatmul.mubr.bf16.gmra.mrb[0].mxu0 %v2188
  %v2265 = vpop.f32.mrb[0].mxu0
  %v2266 = vadd.f32 0.0, %v2265
  %v2267 = vpop.f32.mrb[0].mxu0
  %v2268 = vadd.f32 0.0, %v2267
  %v2269 = vpop.f32.mrb[0].mxu0
  %v2270 = vpop.f32.mrb[0].mxu0
  %2271 = vdwg.mxu0
  %2272 = vmatprep.subr.bf16.mxu0 %v889
  %2273 = vmatpush1.bf16.msra.mxu0 %v888
  %2274 = vmatprep.subr.bf16.mxu0 %v897
  %2275 = vmatpush1.bf16.msra.mxu0 %v896
  %2276 = vmatprep.subr.bf16.mxu0 %v905
  %2277 = vmatpush1.bf16.msra.mxu0 %v904
  %2278 = vmatprep.subr.bf16.mxu0 %v913
  %2279 = vmatpush1.bf16.msra.mxu0 %v912
  %2280 = vmatprep.subr.bf16.mxu0 %v921
  %2281 = vmatpush1.bf16.msra.mxu0 %v920
  %2282 = vmatprep.subr.bf16.mxu0 %v929
  %2283 = vmatpush1.bf16.msra.mxu0 %v928
  %2284 = vmatprep.subr.bf16.mxu0 %v937
  %2285 = vmatpush1.bf16.msra.mxu0 %v936
  %2286 = vmatprep.subr.bf16.mxu0 %v945
  %2287 = vmatpush1.bf16.msra.mxu0 %v944
  %2288 = vmatprep.subr.bf16.mxu0 %v953
  %2289 = vmatpush1.bf16.msra.mxu0 %v952
  %2290 = vmatprep.subr.bf16.mxu0 %v961
  %2291 = vmatpush1.bf16.msra.mxu0 %v960
  %2292 = vmatprep.subr.bf16.mxu0 %v969
  %2293 = vmatpush1.bf16.msra.mxu0 %v968
  %2294 = vmatprep.subr.bf16.mxu0 %v977
  %2295 = vmatpush1.bf16.msra.mxu0 %v976
  %2296 = vmatprep.subr.bf16.mxu0 %v985
  %2297 = vmatpush1.bf16.msra.mxu0 %v984
  %2298 = vmatprep.subr.bf16.mxu0 %v993
  %2299 = vmatpush1.bf16.msra.mxu0 %v992
  %2300 = vmatprep.subr.bf16.mxu0 %v1001
  %2301 = vmatpush1.bf16.msra.mxu0 %v1000
  %2302 = vmatprep.subr.bf16.mxu0 %v1009
  %2303 = vmatpush1.bf16.msra.mxu0 %v1008
  %2304 = vmatprep.mubr.bf16.mxu0 %v2189
  %2305 = vmatmul.mubr.bf16.gmra.mrb[0].mxu0 %v2188
  %v2306 = vpop.f32.mrb[0].mxu0
  %v2307 = vadd.f32 0.0, %v2306
  %v2308 = vpop.f32.mrb[0].mxu0
  %v2309 = vadd.f32 0.0, %v2308
  %v2310 = vpop.f32.mrb[0].mxu0
  %v2311 = vpop.f32.mrb[0].mxu0
  %2312 = vdwg.mxu0
  %2313 = vmatprep.subr.bf16.mxu0 %v891
  %2314 = vmatpush1.bf16.msra.mxu0 %v890
  %2315 = vmatprep.subr.bf16.mxu0 %v899
  %2316 = vmatpush1.bf16.msra.mxu0 %v898
  %2317 = vmatprep.subr.bf16.mxu0 %v907
  %2318 = vmatpush1.bf16.msra.mxu0 %v906
  %2319 = vmatprep.subr.bf16.mxu0 %v915
  %2320 = vmatpush1.bf16.msra.mxu0 %v914
  %2321 = vmatprep.subr.bf16.mxu0 %v923
  %2322 = vmatpush1.bf16.msra.mxu0 %v922
  %2323 = vmatprep.subr.bf16.mxu0 %v931
  %2324 = vmatpush1.bf16.msra.mxu0 %v930
  %2325 = vmatprep.subr.bf16.mxu0 %v939
  %2326 = vmatpush1.bf16.msra.mxu0 %v938
  %2327 = vmatprep.subr.bf16.mxu0 %v947
  %2328 = vmatpush1.bf16.msra.mxu0 %v946
  %2329 = vmatprep.subr.bf16.mxu0 %v955
  %2330 = vmatpush1.bf16.msra.mxu0 %v954
  %2331 = vmatprep.subr.bf16.mxu0 %v963
  %2332 = vmatpush1.bf16.msra.mxu0 %v962
  %2333 = vmatprep.subr.bf16.mxu0 %v971
  %2334 = vmatpush1.bf16.msra.mxu0 %v970
  %2335 = vmatprep.subr.bf16.mxu0 %v979
  %2336 = vmatpush1.bf16.msra.mxu0 %v978
  %2337 = vmatprep.subr.bf16.mxu0 %v987
  %2338 = vmatpush1.bf16.msra.mxu0 %v986
  %2339 = vmatprep.subr.bf16.mxu0 %v995
  %2340 = vmatpush1.bf16.msra.mxu0 %v994
  %2341 = vmatprep.subr.bf16.mxu0 %v1003
  %2342 = vmatpush1.bf16.msra.mxu0 %v1002
  %2343 = vmatprep.subr.bf16.mxu0 %v1011
  %2344 = vmatpush1.bf16.msra.mxu0 %v1010
  %2345 = vmatprep.mubr.bf16.mxu0 %v2189
  %2346 = vmatmul.mubr.bf16.gmra.mrb[0].mxu0 %v2188
  %v2347 = vpop.f32.mrb[0].mxu0
  %v2348 = vadd.f32 0.0, %v2347
  %v2349 = vpop.f32.mrb[0].mxu0
  %v2350 = vadd.f32 0.0, %v2349
  %v2351 = vpop.f32.mrb[0].mxu0
  %v2352 = vpop.f32.mrb[0].mxu0
  %2353 = vdwg.mxu0
  %v2354 = vadd.f32 %v2225, %v464
  %v2355 = vadd.f32 %v2227, %v468
  %v2356 = vadd.f32 %v2266, %v472
  %v2357 = vadd.f32 %v2268, %v476
  %v2358 = vmul.f32 %v2354, 0.5
  %v2359 = vtanh.pop %v2358
  %v2360 = vmul.f32 %v2359, 0.5
  %v2361 = vadd.f32 %v2360, 0.5
  %v2362 = vmul.f32 %v2355, 0.5
  %v2363 = vtanh.pop %v2362
  %v2364 = vmul.f32 %v2363, 0.5
  %v2365 = vadd.f32 %v2364, 0.5
  %v2366 = vtanh.pop %v2356
  %v2367 = vmul.f32 %v2357, 0.5
  %v2368 = vtanh.pop %v2367
  %v2369 = vmul.f32 %v2368, 0.5
  %v2370 = vadd.f32 %v2369, 0.5
  %v2371 = vmul.f32 %v2365, %v2163
  %v2372 = vmul.f32 %v2361, %v2366
  %v2373 = vadd.f32 %v2371, %v2372
  %v2374 = vtanh.pop %v2373
  %v2375 = vmul.f32 %v2370, %v2374
  %v2376 = vadd.f32 %v451, %v2307
  %v2377 = vadd.f32 %v452, %v2309
  %v2378 = vadd.f32 %v453, %v2348
  %v2379 = vadd.f32 %v454, %v2350
  %v2380 = vmul.f32 %v2376, 0.5
  %v2381 = vtanh.pop %v2380
  %v2382 = vmul.f32 %v2381, 0.5
  %v2383 = vadd.f32 %v2382, 0.5
  %v2384 = vmul.f32 %v2377, 0.5
  %v2385 = vtanh.pop %v2384
  %v2386 = vmul.f32 %v2385, 0.5
  %v2387 = vadd.f32 %v2386, 0.5
  %v2388 = vtanh.pop %v2378
  %v2389 = vmul.f32 %v2379, 0.5
  %v2390 = vtanh.pop %v2389
  %v2391 = vmul.f32 %v2390, 0.5
  %v2392 = vadd.f32 %v2391, 0.5
  %v2393 = vmul.f32 %v2387, %v2185
  %v2394 = vmul.f32 %v2383, %v2388
  %v2395 = vadd.f32 %v2393, %v2394
  %v2396 = vtanh.pop %v2395
  %v2397 = vmul.f32 %v2392, %v2396
  %v2398 = vpack.c.bf16 %v2397, %v2397
  %v2399 = vpack.c.bf16 %v2375, %v2375
  %2400 = vmatprep.subr.bf16.mxu0 %v885
  %2401 = vmatpush1.bf16.msra.mxu0 %v884
  %2402 = vmatprep.subr.bf16.mxu0 %v893
  %2403 = vmatpush1.bf16.msra.mxu0 %v892
  %2404 = vmatprep.subr.bf16.mxu0 %v901
  %2405 = vmatpush1.bf16.msra.mxu0 %v900
  %2406 = vmatprep.subr.bf16.mxu0 %v909
  %2407 = vmatpush1.bf16.msra.mxu0 %v908
  %2408 = vmatprep.subr.bf16.mxu0 %v917
  %2409 = vmatpush1.bf16.msra.mxu0 %v916
  %2410 = vmatprep.subr.bf16.mxu0 %v925
  %2411 = vmatpush1.bf16.msra.mxu0 %v924
  %2412 = vmatprep.subr.bf16.mxu0 %v933
  %2413 = vmatpush1.bf16.msra.mxu0 %v932
  %2414 = vmatprep.subr.bf16.mxu0 %v941
  %2415 = vmatpush1.bf16.msra.mxu0 %v940
  %2416 = vmatprep.subr.bf16.mxu0 %v949
  %2417 = vmatpush1.bf16.msra.mxu0 %v948
  %2418 = vmatprep.subr.bf16.mxu0 %v957
  %2419 = vmatpush1.bf16.msra.mxu0 %v956
  %2420 = vmatprep.subr.bf16.mxu0 %v965
  %2421 = vmatpush1.bf16.msra.mxu0 %v964
  %2422 = vmatprep.subr.bf16.mxu0 %v973
  %2423 = vmatpush1.bf16.msra.mxu0 %v972
  %2424 = vmatprep.subr.bf16.mxu0 %v981
  %2425 = vmatpush1.bf16.msra.mxu0 %v980
  %2426 = vmatprep.subr.bf16.mxu0 %v989
  %2427 = vmatpush1.bf16.msra.mxu0 %v988
  %2428 = vmatprep.subr.bf16.mxu0 %v997
  %2429 = vmatpush1.bf16.msra.mxu0 %v996
  %2430 = vmatprep.subr.bf16.mxu0 %v1005
  %2431 = vmatpush1.bf16.msra.mxu0 %v1004
  %2432 = vmatprep.mubr.bf16.mxu0 %v2399
  %2433 = vmatmul.mubr.bf16.gmra.mrb[0].mxu0 %v2398
  %v2434 = vpop.f32.mrb[0].mxu0
  %v2435 = vadd.f32 0.0, %v2434
  %v2436 = vpop.f32.mrb[0].mxu0
  %v2437 = vadd.f32 0.0, %v2436
  %v2438 = vpop.f32.mrb[0].mxu0
  %v2439 = vpop.f32.mrb[0].mxu0
  %2440 = vdwg.mxu0
  %2441 = vmatprep.subr.bf16.mxu0 %v887
  %2442 = vmatpush1.bf16.msra.mxu0 %v886
  %2443 = vmatprep.subr.bf16.mxu0 %v895
  %2444 = vmatpush1.bf16.msra.mxu0 %v894
  %2445 = vmatprep.subr.bf16.mxu0 %v903
  %2446 = vmatpush1.bf16.msra.mxu0 %v902
  %2447 = vmatprep.subr.bf16.mxu0 %v911
  %2448 = vmatpush1.bf16.msra.mxu0 %v910
  %2449 = vmatprep.subr.bf16.mxu0 %v919
  %2450 = vmatpush1.bf16.msra.mxu0 %v918
  %2451 = vmatprep.subr.bf16.mxu0 %v927
  %2452 = vmatpush1.bf16.msra.mxu0 %v926
  %2453 = vmatprep.subr.bf16.mxu0 %v935
  %2454 = vmatpush1.bf16.msra.mxu0 %v934
  %2455 = vmatprep.subr.bf16.mxu0 %v943
  %2456 = vmatpush1.bf16.msra.mxu0 %v942
  %2457 = vmatprep.subr.bf16.mxu0 %v951
  %2458 = vmatpush1.bf16.msra.mxu0 %v950
  %2459 = vmatprep.subr.bf16.mxu0 %v959
  %2460 = vmatpush1.bf16.msra.mxu0 %v958
  %2461 = vmatprep.subr.bf16.mxu0 %v967
  %2462 = vmatpush1.bf16.msra.mxu0 %v966
  %2463 = vmatprep.subr.bf16.mxu0 %v975
  %2464 = vmatpush1.bf16.msra.mxu0 %v974
  %2465 = vmatprep.subr.bf16.mxu0 %v983
  %2466 = vmatpush1.bf16.msra.mxu0 %v982
  %2467 = vmatprep.subr.bf16.mxu0 %v991
  %2468 = vmatpush1.bf16.msra.mxu0 %v990
  %2469 = vmatprep.subr.bf16.mxu0 %v999
  %2470 = vmatpush1.bf16.msra.mxu0 %v998
  %2471 = vmatprep.subr.bf16.mxu0 %v1007
  %2472 = vmatpush1.bf16.msra.mxu0 %v1006
  %2473 = vmatprep.mubr.bf16.mxu0 %v2399
  %2474 = vmatmul.mubr.bf16.gmra.mrb[0].mxu0 %v2398
  %v2475 = vpop.f32.mrb[0].mxu0
  %v2476 = vadd.f32 0.0, %v2475
  %v2477 = vpop.f32.mrb[0].mxu0
  %v2478 = vadd.f32 0.0, %v2477
  %v2479 = vpop.f32.mrb[0].mxu0
  %v2480 = vpop.f32.mrb[0].mxu0
  %2481 = vdwg.mxu0
  %2482 = vmatprep.subr.bf16.mxu0 %v889
  %2483 = vmatpush1.bf16.msra.mxu0 %v888
  %2484 = vmatprep.subr.bf16.mxu0 %v897
  %2485 = vmatpush1.bf16.msra.mxu0 %v896
  %2486 = vmatprep.subr.bf16.mxu0 %v905
  %2487 = vmatpush1.bf16.msra.mxu0 %v904
  %2488 = vmatprep.subr.bf16.mxu0 %v913
  %2489 = vmatpush1.bf16.msra.mxu0 %v912
  %2490 = vmatprep.subr.bf16.mxu0 %v921
  %2491 = vmatpush1.bf16.msra.mxu0 %v920
  %2492 = vmatprep.subr.bf16.mxu0 %v929
  %2493 = vmatpush1.bf16.msra.mxu0 %v928
  %2494 = vmatprep.subr.bf16.mxu0 %v937
  %2495 = vmatpush1.bf16.msra.mxu0 %v936
  %2496 = vmatprep.subr.bf16.mxu0 %v945
  %2497 = vmatpush1.bf16.msra.mxu0 %v944
  %2498 = vmatprep.subr.bf16.mxu0 %v953
  %2499 = vmatpush1.bf16.msra.mxu0 %v952
  %2500 = vmatprep.subr.bf16.mxu0 %v961
  %2501 = vmatpush1.bf16.msra.mxu0 %v960
  %2502 = vmatprep.subr.bf16.mxu0 %v969
  %2503 = vmatpush1.bf16.msra.mxu0 %v968
  %2504 = vmatprep.subr.bf16.mxu0 %v977
  %2505 = vmatpush1.bf16.msra.mxu0 %v976
  %2506 = vmatprep.subr.bf16.mxu0 %v985
  %2507 = vmatpush1.bf16.msra.mxu0 %v984
  %2508 = vmatprep.subr.bf16.mxu0 %v993
  %2509 = vmatpush1.bf16.msra.mxu0 %v992
  %2510 = vmatprep.subr.bf16.mxu0 %v1001
  %2511 = vmatpush1.bf16.msra.mxu0 %v1000
  %2512 = vmatprep.subr.bf16.mxu0 %v1009
  %2513 = vmatpush1.bf16.msra.mxu0 %v1008
  %2514 = vmatprep.mubr.bf16.mxu0 %v2399
  %2515 = vmatmul.mubr.bf16.gmra.mrb[0].mxu0 %v2398
  %v2516 = vpop.f32.mrb[0].mxu0
  %v2517 = vadd.f32 0.0, %v2516
  %v2518 = vpop.f32.mrb[0].mxu0
  %v2519 = vadd.f32 0.0, %v2518
  %v2520 = vpop.f32.mrb[0].mxu0
  %v2521 = vpop.f32.mrb[0].mxu0
  %2522 = vdwg.mxu0
  %2523 = vmatprep.subr.bf16.mxu0 %v891
  %2524 = vmatpush1.bf16.msra.mxu0 %v890
  %2525 = vmatprep.subr.bf16.mxu0 %v899
  %2526 = vmatpush1.bf16.msra.mxu0 %v898
  %2527 = vmatprep.subr.bf16.mxu0 %v907
  %2528 = vmatpush1.bf16.msra.mxu0 %v906
  %2529 = vmatprep.subr.bf16.mxu0 %v915
  %2530 = vmatpush1.bf16.msra.mxu0 %v914
  %2531 = vmatprep.subr.bf16.mxu0 %v923
  %2532 = vmatpush1.bf16.msra.mxu0 %v922
  %2533 = vmatprep.subr.bf16.mxu0 %v931
  %2534 = vmatpush1.bf16.msra.mxu0 %v930
  %2535 = vmatprep.subr.bf16.mxu0 %v939
  %2536 = vmatpush1.bf16.msra.mxu0 %v938
  %2537 = vmatprep.subr.bf16.mxu0 %v947
  %2538 = vmatpush1.bf16.msra.mxu0 %v946
  %2539 = vmatprep.subr.bf16.mxu0 %v955
  %2540 = vmatpush1.bf16.msra.mxu0 %v954
  %2541 = vmatprep.subr.bf16.mxu0 %v963
  %2542 = vmatpush1.bf16.msra.mxu0 %v962
  %2543 = vmatprep.subr.bf16.mxu0 %v971
  %2544 = vmatpush1.bf16.msra.mxu0 %v970
  %2545 = vmatprep.subr.bf16.mxu0 %v979
  %2546 = vmatpush1.bf16.msra.mxu0 %v978
  %2547 = vmatprep.subr.bf16.mxu0 %v987
  %2548 = vmatpush1.bf16.msra.mxu0 %v986
  %2549 = vmatprep.subr.bf16.mxu0 %v995
  %2550 = vmatpush1.bf16.msra.mxu0 %v994
  %2551 = vmatprep.subr.bf16.mxu0 %v1003
  %2552 = vmatpush1.bf16.msra.mxu0 %v1002
  %2553 = vmatprep.subr.bf16.mxu0 %v1011
  %2554 = vmatpush1.bf16.msra.mxu0 %v1010
  %2555 = vmatprep.mubr.bf16.mxu0 %v2399
  %2556 = vmatmul.mubr.bf16.gmra.mrb[0].mxu0 %v2398
  %v2557 = vpop.f32.mrb[0].mxu0
  %v2558 = vadd.f32 0.0, %v2557
  %v2559 = vpop.f32.mrb[0].mxu0
  %v2560 = vadd.f32 0.0, %v2559
  %v2561 = vpop.f32.mrb[0].mxu0
  %v2562 = vpop.f32.mrb[0].mxu0
  %2563 = vdwg.mxu0
  %v2564 = vadd.f32 %v2435, %v464
  %v2565 = vadd.f32 %v2437, %v468
  %v2566 = vadd.f32 %v2476, %v472
  %v2567 = vadd.f32 %v2478, %v476
  %v2568 = vmul.f32 %v2564, 0.5
  %v2569 = vtanh.pop %v2568
  %v2570 = vmul.f32 %v2569, 0.5
  %v2571 = vadd.f32 %v2570, 0.5
  %v2572 = vmul.f32 %v2565, 0.5
  %v2573 = vtanh.pop %v2572
  %v2574 = vmul.f32 %v2573, 0.5
  %v2575 = vadd.f32 %v2574, 0.5
  %v2576 = vtanh.pop %v2566
  %v2577 = vmul.f32 %v2567, 0.5
  %v2578 = vtanh.pop %v2577
  %v2579 = vmul.f32 %v2578, 0.5
  %v2580 = vadd.f32 %v2579, 0.5
  %v2581 = vmul.f32 %v2575, %v2373
  %v2582 = vmul.f32 %v2571, %v2576
  %v2583 = vadd.f32 %v2581, %v2582
  %v2584 = vtanh.pop %v2583
  %v2585 = vmul.f32 %v2580, %v2584
  %v2586 = vadd.f32 %v455, %v2517
  %v2587 = vadd.f32 %v456, %v2519
  %v2588 = vadd.f32 %v457, %v2558
  %v2589 = vadd.f32 %v458, %v2560
  %v2590 = vmul.f32 %v2586, 0.5
  %v2591 = vtanh.pop %v2590
  %v2592 = vmul.f32 %v2591, 0.5
  %v2593 = vadd.f32 %v2592, 0.5
  %v2594 = vmul.f32 %v2587, 0.5
  %v2595 = vtanh.pop %v2594
  %v2596 = vmul.f32 %v2595, 0.5
  %v2597 = vadd.f32 %v2596, 0.5
  %v2598 = vtanh.pop %v2588
  %v2599 = vmul.f32 %v2589, 0.5
  %v2600 = vtanh.pop %v2599
  %v2601 = vmul.f32 %v2600, 0.5
  %v2602 = vadd.f32 %v2601, 0.5
  %v2603 = vmul.f32 %v2597, %v2395
  %v2604 = vmul.f32 %v2593, %v2598
  %v2605 = vadd.f32 %v2603, %v2604
  %v2606 = vtanh.pop %v2605
  %v2607 = vmul.f32 %v2602, %v2606
  %v2608 = vpack.c.bf16 %v2607, %v2607
  %v2609 = vpack.c.bf16 %v2585, %v2585
  %2610 = vmatprep.subr.bf16.mxu0 %v885
  %2611 = vmatpush1.bf16.msra.mxu0 %v884
  %2612 = vmatprep.subr.bf16.mxu0 %v893
  %2613 = vmatpush1.bf16.msra.mxu0 %v892
  %2614 = vmatprep.subr.bf16.mxu0 %v901
  %2615 = vmatpush1.bf16.msra.mxu0 %v900
  %2616 = vmatprep.subr.bf16.mxu0 %v909
  %2617 = vmatpush1.bf16.msra.mxu0 %v908
  %2618 = vmatprep.subr.bf16.mxu0 %v917
  %2619 = vmatpush1.bf16.msra.mxu0 %v916
  %2620 = vmatprep.subr.bf16.mxu0 %v925
  %2621 = vmatpush1.bf16.msra.mxu0 %v924
  %2622 = vmatprep.subr.bf16.mxu0 %v933
  %2623 = vmatpush1.bf16.msra.mxu0 %v932
  %2624 = vmatprep.subr.bf16.mxu0 %v941
  %2625 = vmatpush1.bf16.msra.mxu0 %v940
  %2626 = vmatprep.subr.bf16.mxu0 %v949
  %2627 = vmatpush1.bf16.msra.mxu0 %v948
  %2628 = vmatprep.subr.bf16.mxu0 %v957
  %2629 = vmatpush1.bf16.msra.mxu0 %v956
  %2630 = vmatprep.subr.bf16.mxu0 %v965
  %2631 = vmatpush1.bf16.msra.mxu0 %v964
  %2632 = vmatprep.subr.bf16.mxu0 %v973
  %2633 = vmatpush1.bf16.msra.mxu0 %v972
  %2634 = vmatprep.subr.bf16.mxu0 %v981
  %2635 = vmatpush1.bf16.msra.mxu0 %v980
  %2636 = vmatprep.subr.bf16.mxu0 %v989
  %2637 = vmatpush1.bf16.msra.mxu0 %v988
  %2638 = vmatprep.subr.bf16.mxu0 %v997
  %2639 = vmatpush1.bf16.msra.mxu0 %v996
  %2640 = vmatprep.subr.bf16.mxu0 %v1005
  %2641 = vmatpush1.bf16.msra.mxu0 %v1004
  %2642 = vmatprep.mubr.bf16.mxu0 %v2609
  %2643 = vmatmul.mubr.bf16.gmra.mrb[0].mxu0 %v2608
  %v2644 = vpop.f32.mrb[0].mxu0
  %v2645 = vadd.f32 0.0, %v2644
  %v2646 = vpop.f32.mrb[0].mxu0
  %v2647 = vadd.f32 0.0, %v2646
  %v2648 = vpop.f32.mrb[0].mxu0
  %v2649 = vpop.f32.mrb[0].mxu0
  %2650 = vdwg.mxu0
  %2651 = vmatprep.subr.bf16.mxu0 %v887
  %2652 = vmatpush1.bf16.msra.mxu0 %v886
  %2653 = vmatprep.subr.bf16.mxu0 %v895
  %2654 = vmatpush1.bf16.msra.mxu0 %v894
  %2655 = vmatprep.subr.bf16.mxu0 %v903
  %2656 = vmatpush1.bf16.msra.mxu0 %v902
  %2657 = vmatprep.subr.bf16.mxu0 %v911
  %2658 = vmatpush1.bf16.msra.mxu0 %v910
  %2659 = vmatprep.subr.bf16.mxu0 %v919
  %2660 = vmatpush1.bf16.msra.mxu0 %v918
  %2661 = vmatprep.subr.bf16.mxu0 %v927
  %2662 = vmatpush1.bf16.msra.mxu0 %v926
  %2663 = vmatprep.subr.bf16.mxu0 %v935
  %2664 = vmatpush1.bf16.msra.mxu0 %v934
  %2665 = vmatprep.subr.bf16.mxu0 %v943
  %2666 = vmatpush1.bf16.msra.mxu0 %v942
  %2667 = vmatprep.subr.bf16.mxu0 %v951
  %2668 = vmatpush1.bf16.msra.mxu0 %v950
  %2669 = vmatprep.subr.bf16.mxu0 %v959
  %2670 = vmatpush1.bf16.msra.mxu0 %v958
  %2671 = vmatprep.subr.bf16.mxu0 %v967
  %2672 = vmatpush1.bf16.msra.mxu0 %v966
  %2673 = vmatprep.subr.bf16.mxu0 %v975
  %2674 = vmatpush1.bf16.msra.mxu0 %v974
  %2675 = vmatprep.subr.bf16.mxu0 %v983
  %2676 = vmatpush1.bf16.msra.mxu0 %v982
  %2677 = vmatprep.subr.bf16.mxu0 %v991
  %2678 = vmatpush1.bf16.msra.mxu0 %v990
  %2679 = vmatprep.subr.bf16.mxu0 %v999
  %2680 = vmatpush1.bf16.msra.mxu0 %v998
  %2681 = vmatprep.subr.bf16.mxu0 %v1007
  %2682 = vmatpush1.bf16.msra.mxu0 %v1006
  %2683 = vmatprep.mubr.bf16.mxu0 %v2609
  %2684 = vmatmul.mubr.bf16.gmra.mrb[0].mxu0 %v2608
  %v2685 = vpop.f32.mrb[0].mxu0
  %v2686 = vadd.f32 0.0, %v2685
  %v2687 = vpop.f32.mrb[0].mxu0
  %v2688 = vadd.f32 0.0, %v2687
  %v2689 = vpop.f32.mrb[0].mxu0
  %v2690 = vpop.f32.mrb[0].mxu0
  %2691 = vdwg.mxu0
  %v2692 = vadd.f32 %v2645, %v464
  %v2693 = vadd.f32 %v2647, %v468
  %v2694 = vadd.f32 %v2686, %v472
  %v2695 = vadd.f32 %v2688, %v476
  %v2696 = vmul.f32 %v2692, 0.5
  %v2697 = vtanh.pop %v2696
  %v2698 = vmul.f32 %v2697, 0.5
  %v2699 = vadd.f32 %v2698, 0.5
  %v2700 = vmul.f32 %v2693, 0.5
  %v2701 = vtanh.pop %v2700
  %v2702 = vmul.f32 %v2701, 0.5
  %v2703 = vadd.f32 %v2702, 0.5
  %v2704 = vtanh.pop %v2694
  %v2705 = vmul.f32 %v2695, 0.5
  %v2706 = vtanh.pop %v2705
  %v2707 = vmul.f32 %v2706, 0.5
  %v2708 = vadd.f32 %v2707, 0.5
  %v2709 = vmul.f32 %v2703, %v2583
  %v2710 = vmul.f32 %v2699, %v2704
  %v2711 = vadd.f32 %v2709, %v2710
  %v2712 = vtanh.pop %v2711
  %v2713 = vmul.f32 %v2708, %v2712
  %v2714 = vpack.c.bf16 %v2713, %v2713
  %v2715 = vld [vmem:[%s5] sm:$0xf]
  %v2716 = vld [vmem:[%s5 + $0x4] sm:$0xf]
  %v2717 = vld [vmem:[%s5 + $0x8] sm:$0xf]
  %v2718 = vld [vmem:[%s5 + $0xc] sm:$0xf]
  %v2719 = vld [vmem:[%s5 + $0x10] sm:$0xf]
  %v2720 = vld [vmem:[%s5 + $0x14] sm:$0xf]
  %v2721 = vld [vmem:[%s5 + $0x18] sm:$0xf]
  %v2722 = vld [vmem:[%s5 + $0x1c] sm:$0xf]
  %v2723 = vld [vmem:[%s5 + $0x20] sm:$0xf]
  %v2724 = vld [vmem:[%s5 + $0x24] sm:$0xf]
  %v2725 = vld [vmem:[%s5 + $0x28] sm:$0xf]
  %v2726 = vld [vmem:[%s5 + $0x2c] sm:$0xf]
  %v2727 = vld [vmem:[%s5 + $0x30] sm:$0xf]
  %v2728 = vld [vmem:[%s5 + $0x34] sm:$0xf]
  %v2729 = vld [vmem:[%s5 + $0x38] sm:$0xf]
  %v2730 = vld [vmem:[%s5 + $0x3c] sm:$0xf]
  %v2731 = vld [vmem:[%s6] sm:$0x1]
  %v2733 = vlaneseq
  %v2734 = vshrl.u32 %v2733, 7
  %v2735 = vsub.s32 0, %v2734
  %v2736 = vrot.slane %v2731, %v2735
  %v2754 = vunpack.c.l.b16 %v2715
  %v2755 = vunpack.c.l.b16 %v2716
  %v2756 = vunpack.c.l.b16 %v2717
  %v2757 = vunpack.c.l.b16 %v2718
  %v2758 = vunpack.c.l.b16 %v2719
  %v2759 = vunpack.c.l.b16 %v2720
  %v2760 = vunpack.c.l.b16 %v2721
  %v2761 = vunpack.c.l.b16 %v2722
  %v2762 = vunpack.c.l.b16 %v2723
  %v2763 = vunpack.c.l.b16 %v2724
  %v2764 = vunpack.c.l.b16 %v2725
  %v2765 = vunpack.c.l.b16 %v2726
  %v2766 = vunpack.c.l.b16 %v2727
  %v2767 = vunpack.c.l.b16 %v2728
  %v2768 = vunpack.c.l.b16 %v2729
  %v2769 = vunpack.c.l.b16 %v2730
  %v2770 = vpack.c.b16 %v2755, %v2754
  %v2771 = vpack.c.b16 %v2757, %v2756
  %v2772 = vpack.c.b16 %v2759, %v2758
  %v2773 = vpack.c.b16 %v2761, %v2760
  %v2774 = vpack.c.b16 %v2763, %v2762
  %v2775 = vpack.c.b16 %v2765, %v2764
  %v2776 = vpack.c.b16 %v2767, %v2766
  %v2777 = vpack.c.b16 %v2769, %v2768
  %2786 = vmatprep.subr.bf16.mxu0 0
  %2787 = vmatpush1.bf16.msra.mxu0 %v2770
  %2788 = vmatprep.subr.bf16.mxu0 0
  %2789 = vmatpush1.bf16.msra.mxu0 %v2771
  %2790 = vmatprep.subr.bf16.mxu0 0
  %2791 = vmatpush1.bf16.msra.mxu0 %v2772
  %2792 = vmatprep.subr.bf16.mxu0 0
  %2793 = vmatpush1.bf16.msra.mxu0 %v2773
  %2794 = vmatprep.subr.bf16.mxu0 0
  %2795 = vmatpush1.bf16.msra.mxu0 %v2774
  %2796 = vmatprep.subr.bf16.mxu0 0
  %2797 = vmatpush1.bf16.msra.mxu0 %v2775
  %2798 = vmatprep.subr.bf16.mxu0 0
  %2799 = vmatpush1.bf16.msra.mxu0 %v2776
  %2800 = vmatprep.subr.bf16.mxu0 0
  %2801 = vmatpush1.bf16.msra.mxu0 %v2777
  %2802 = vmatprep.subr.bf16.mxu0 0
  %2803 = vmatpush1.bf16.msra.mxu0 0
  %2804 = vmatprep.subr.bf16.mxu0 0
  %2805 = vmatpush1.bf16.msra.mxu0 0
  %2806 = vmatprep.subr.bf16.mxu0 0
  %2807 = vmatpush1.bf16.msra.mxu0 0
  %2808 = vmatprep.subr.bf16.mxu0 0
  %2809 = vmatpush1.bf16.msra.mxu0 0
  %2810 = vmatprep.subr.bf16.mxu0 0
  %2811 = vmatpush1.bf16.msra.mxu0 0
  %2812 = vmatprep.subr.bf16.mxu0 0
  %2813 = vmatpush1.bf16.msra.mxu0 0
  %2814 = vmatprep.subr.bf16.mxu0 0
  %2815 = vmatpush1.bf16.msra.mxu0 0
  %2816 = vmatprep.subr.bf16.mxu0 0
  %2817 = vmatpush1.bf16.msra.mxu0 0
  %2818 = vmatprep.mubr.bf16.mxu0 0
  %2819 = vmatmul.mubr.bf16.gmra.mrb[0].mxu0 %v2714
  %v2820 = vpop.f32.mrb[0].mxu0
  %v2821 = vadd.f32 %v2736, %v2820
  %v2822 = vpop.f32.mrb[0].mxu0
  %v2823 = vpop.f32.mrb[0].mxu0
  %v2824 = vpop.f32.mrb[0].mxu0
  %2825 = vdwg.mxu0
  %2826 = vst [vmem:[%s7] sm:$0xff] %v2821
  // Predicated region
  $region30: #{trajectory_prediction_forward.1} parent=0 // pred_check
    _
  $region31: #{trajectory_prediction_forward.1} parent=0 // pred_check_branch
    %2828 = sbr.rel (0) target = $region33
  $region32: #{trajectory_prediction_forward.1} parent=0 // pred_region
    _
  $region33: #{trajectory_prediction_forward.1} parent=0 // pred_fallthru
    _
  // Predicated region
  $region34: #{trajectory_prediction_forward.1} parent=0 // pred_check
    _
  $region35: #{trajectory_prediction_forward.1} parent=0 // pred_check_branch
    %2830 = sbr.rel (0) target = $region37
  $region36: #{trajectory_prediction_forward.1} parent=0 // pred_region
    _
  $region37: #{trajectory_prediction_forward.1} parent=0 // pred_fallthru
    _

</llo_original>
